<compile_context>
chip_gen: v6e
topology: v6e:2x2x1
jax: 0.10.0
libtpu: 0.0.40
codegen_flags: <defaults>
</compile_context>

<pallas_src>
import functools

import jax
import jax.numpy as jnp
from jax.experimental import pallas as pl
from jax.experimental.pallas import tpu as pltpu


# ----------------------------------------------------------------------------
# Fused per-cluster kernel (whole batch processed inside one grid step)
# ----------------------------------------------------------------------------
def _make_fused_kernel(*, B, F, L1, Lp, Lp_pad, T, motif_k, cin_pad,
                       body_meta, shape_k, n_mlp, early_scale, off):
    """Ref order:
       inputs : seq, cw, motif_w, motif_b, (body_w, body_b)*, shape_w, shape_b,
                (mlp_w, mlp_b)*, out_w, out_b
       outputs: profile (1, B, T, Lp_pad), counts (1, T, B)
       scratch: im_motif, pad_buf, im_body, im_shape
    """
    n_body = len(body_meta)

    def kernel(*refs):
        it = iter(refs)
        seq_ref = next(it)
        cw_ref = next(it)
        mw_ref = next(it)
        mb_ref = next(it)
        body_w, body_b = [], []
        for _ in range(n_body):
            body_w.append(next(it))
            body_b.append(next(it))
        sw_ref = next(it)
        sb_ref = next(it)
        mlp_w, mlp_b = [], []
        for _ in range(n_mlp):
            mlp_w.append(next(it))
            mlp_b.append(next(it))
        ow_ref = next(it)
        ob_ref = next(it)
        prof_ref = next(it)
        cnt_ref = next(it)
        im_motif = next(it)
        pad_buf = next(it)
        im_body = next(it)
        im_shape = next(it)

        bf16 = jnp.bfloat16
        lane_b = jax.lax.broadcasted_iota(jnp.int32, (1, B), 1)
        col = jax.lax.broadcasted_iota(jnp.int32, (T, Lp_pad), 1)

        mw = mw_ref[...]                                  # (F, motif_k*cin_pad) bf16
        mb = mb_ref[...]                                  # (F, 1) f32
        sw = sw_ref[0]                                    # (T, shape_k*F) bf16
        sb = sb_ref[0]                                    # (T, 1) f32
        cw_vals = cw_ref[0] if early_scale else None      # (B, 1) f32

        gap = jnp.zeros((F, B), jnp.float32)              # GAP features, batch in lanes

        for b in range(B):
            # ---- motif detector: valid conv as one deep im2col MXU matmul ----
            seq_b = seq_ref[b]                            # (cin_pad, W) f32
            for t in range(motif_k):
                im_motif[t * cin_pad:(t + 1) * cin_pad, :] = seq_b[:, t:t + L1]
            x = jnp.dot(mw, im_motif[...].astype(bf16),
                        preferred_element_type=jnp.float32) + mb      # (F, L1) f32
            if early_scale:
                x = x * cw_vals[b:b + 1, :]

            # zero the padding margins once; only [off:off+L1] is ever rewritten
            pad_buf[...] = jnp.zeros(pad_buf.shape, pad_buf.dtype)

            # ---- dilated residual conv body ('same' padding staged in VMEM) ----
            for li, (k, d, padl) in enumerate(body_meta):
                pad_buf[:, off:off + L1] = x              # 128-aligned lane offset
                pb = pad_buf[...]                         # (F, pbuf_cols)
                for t in range(k):
                    s0 = off - padl + t * d
                    im_body[t * F:(t + 1) * F, :] = pb[:, s0:s0 + L1]
                conv = jnp.dot(body_w[li][0],
                               im_body[0:k * F, :].astype(bf16),
                               preferred_element_type=jnp.float32) + body_b[li][0]
                # TODO(synk): ResidualConv definition not in reference source;
                #             assumed y = x + relu(conv1d_same(x, dilation)).
                x = x + jnp.maximum(conv, 0.0)

            # ---- profile head: valid conv + masked softmax, lane-dense store ----
            pad_buf[:, off:off + L1] = x                  # margins already zero
            pb = pad_buf[...]
            for t in range(shape_k):
                im_shape[t * F:(t + 1) * F, :] = pb[:, off + t:off + t + Lp_pad]
            s = jnp.dot(sw, im_shape[...].astype(bf16),
                        preferred_element_type=jnp.float32) + sb      # (T, Lp_pad)
            s = jnp.where(col < Lp, s, -1e30)             # mask padded lanes
            s = s - jnp.max(s, axis=1, keepdims=True)
            e = jnp.exp(s)
            prob = e * pl.reciprocal(jnp.sum(e, axis=1, keepdims=True), approx=True)
            prof_ref[0, b] = prob.astype(prof_ref.dtype)  # dense 128-lane store

            # ---- global average pool for the counts head (placed in column b) ----
            mean_b = jnp.mean(x, axis=1, keepdims=True)   # (F, 1)
            gap = gap + mean_b * (lane_b == b).astype(jnp.float32)

        # ---- counts head: MLP batched over the B columns + softplus ----
        h = gap                                           # (F, B) f32
        for li in range(n_mlp):
            h = jnp.maximum(
                jnp.dot(mlp_w[li][0], h.astype(bf16),
                        preferred_element_type=jnp.float32) + mlp_b[li][0], 0.0)
        c = jnp.dot(ow_ref[0], h.astype(bf16),
                    preferred_element_type=jnp.float32) + ob_ref[0]   # (T, B)
        cnt_ref[0] = (jnp.maximum(c, 0.0)
                      + jnp.log1p(jnp.exp(-jnp.abs(c)))).astype(cnt_ref.dtype)

    return kernel


# ----------------------------------------------------------------------------
# pallas_call wrapper: one fused launch for the whole forward
# ----------------------------------------------------------------------------
def _fused_pallas_forward(seq, cluster_weights, arrays, cfg, scale_function_placement):
    B, cin, Wlen = seq.shape
    F, T = cfg["filters"], cfg["num_tasks"]
    K1, Kp = cfg["conv1_k"], cfg["profile_k"]
    cin_pad = cfg["cin_pad"]
    C = cfg["n_clusters"]
    dils, ks = cfg["dilations"], cfg["ksizes"]

    L1 = Wlen - K1 + 1
    Lp = L1 - Kp + 1
    Lp_pad = ((Lp + 127) // 128) * 128
    body_meta = tuple((k, d, ((k - 1) * d) // 2) for k, d in zip(ks, dils))
    max_total = max([(k - 1) * d for k, d in zip(ks, dils)], default=0)
    max_padl = max([m[2] for m in body_meta], default=0)
    off = ((max_padl + 127) // 128) * 128      # 128-aligned lane offset of x in pad_buf
    pbuf_cols = off + max(L1 + max_total, Lp_pad + Kp - 1)
    max_body_k = max(ks) if ks else 1

    # pad 4 input channels -> 8 so motif im2col sublane blocks stay 8-aligned
    seq8 = jnp.pad(seq, ((0, 0), (0, cin_pad - cin), (0, 0)))
    cw_in = jnp.transpose(cluster_weights)[:, :, None]            # (C, B, 1)

    def whole(arr):
        nd = arr.ndim
        return pl.BlockSpec(arr.shape, lambda c, _nd=nd: (0,) * _nd)

    def per_cluster(arr):
        nd = arr.ndim
        return pl.BlockSpec((1,) + arr.shape[1:],
                            lambda c, _nd=nd: (c,) + (0,) * (_nd - 1))

    inputs = [seq8, cw_in, arrays["motif_w"], arrays["motif_b"]]
    in_specs = [whole(seq8), per_cluster(cw_in),
                whole(arrays["motif_w"]), whole(arrays["motif_b"])]
    for wl, bl in zip(arrays["body_ws"], arrays["body_bs"]):
        inputs += [wl, bl]
        in_specs += [per_cluster(wl), per_cluster(bl)]
    inputs += [arrays["shape_w"], arrays["shape_b"]]
    in_specs += [per_cluster(arrays["shape_w"]), per_cluster(arrays["shape_b"])]
    for wl, bl in zip(arrays["mlp_ws"], arrays["mlp_bs"]):
        inputs += [wl, bl]
        in_specs += [per_cluster(wl), per_cluster(bl)]
    inputs += [arrays["out_w"], arrays["out_b"]]
    in_specs += [per_cluster(arrays["out_w"]), per_cluster(arrays["out_b"])]

    kern = _make_fused_kernel(
        B=B, F=F, L1=L1, Lp=Lp, Lp_pad=Lp_pad, T=T, motif_k=K1, cin_pad=cin_pad,
        body_meta=body_meta, shape_k=Kp, n_mlp=len(arrays["mlp_ws"]),
        early_scale=(scale_function_placement == "early"), off=off)

    prof_pad, counts_tb = pl.pallas_call(
        kern,
        out_shape=(jax.ShapeDtypeStruct((C, B, T, Lp_pad), jnp.float32),
                   jax.ShapeDtypeStruct((C, T, B), jnp.float32)),
        grid=(C,),
        in_specs=in_specs,
        out_specs=(pl.BlockSpec((1, B, T, Lp_pad), lambda c: (c, 0, 0, 0)),
                   pl.BlockSpec((1, T, B), lambda c: (c, 0, 0))),
        scratch_shapes=[
            pltpu.VMEM((K1 * cin_pad, L1), jnp.float32),    # motif im2col
            pltpu.VMEM((F, pbuf_cols), jnp.float32),        # 'same'-padding staging
            pltpu.VMEM((max_body_k * F, L1), jnp.float32),  # body im2col
            pltpu.VMEM((Kp * F, Lp_pad), jnp.float32),      # profile-head im2col
        ],
        compiler_params=pltpu.CompilerParams(
            dimension_semantics=("parallel",)),             # megacore over clusters
    )(*inputs)

    profiles = prof_pad[:, :, :, :Lp]                       # (C, B, T, Lp)
    counts = jnp.transpose(counts_tb, (0, 2, 1))            # (C, B, T)
    return profiles, counts


# ----------------------------------------------------------------------------
# Parameters (torch layouts) and conversion to kernel-ready stacked arrays
# ----------------------------------------------------------------------------
def init_params(key, *, expected_clusters, filters, n_non_dil_layers,
                non_dil_kernel_size, n_dil_layers, dil_kernel_size,
                conv1_kernel_size, profile_kernel_size, counts_head_mlp_layers,
                num_tasks, in_channels=4):
    """Random params in PyTorch layouts (Conv1d: (Cout, Cin, K); Linear: (out, in))."""
    keys = iter(jax.random.split(key, 4096))

    def nrm(shape, scale=0.05):
        return scale * jax.random.normal(next(keys), shape, jnp.float32)

    dilations = [1] * n_non_dil_layers + [2 ** (i + 1) for i in range(n_dil_layers)]
    ksizes = [non_dil_kernel_size] * n_non_dil_layers + [dil_kernel_size] * n_dil_layers
    params = {
        "motif_w": nrm((filters, in_channels, conv1_kernel_size)),
        "motif_b": nrm((filters,)),
        "dilations": tuple(dilations),
        "ksizes": tuple(ksizes),
        "clusters": [],
    }
    for _ in range(expected_clusters):
        params["clusters"].append({
            "body": [{"w": nrm((filters, filters, k)), "b": nrm((filters,))}
                     for k in ksizes],
            "shape_w": nrm((num_tasks, filters, profile_kernel_size)),
            "shape_b": nrm((num_tasks,)),
            "mlp_ws": [nrm((filters, filters)) for _ in range(counts_head_mlp_layers)],
            "mlp_bs": [nrm((filters,)) for _ in range(counts_head_mlp_layers)],
            "out_w": nrm((num_tasks, filters)),
            "out_b": nrm((num_tasks,)),
        })
    return params


def _flatten_conv_w(w):
    # torch Conv1d weight (Cout, Cin, K) -> (Cout, K*Cin); column index = tap*Cin + cin
    cout, cin, k = w.shape
    return jnp.transpose(w, (0, 2, 1)).reshape(cout, k * cin)


def prepare_params(params, *, in_channels=4, cin_pad=8):
    """Convert torch-layout params into stacked, kernel-ready (bf16 weight) arrays."""
    F = params["motif_w"].shape[0]
    K1 = params["motif_w"].shape[2]
    clusters = params["clusters"]
    T, _, Kp = clusters[0]["shape_w"].shape
    cfg = {
        "filters": F, "num_tasks": T, "conv1_k": K1, "profile_k": Kp,
        "cin_pad": cin_pad, "n_clusters": len(clusters),
        "dilations": tuple(params["dilations"]), "ksizes": tuple(params["ksizes"]),
    }
    mw = jnp.transpose(params["motif_w"], (0, 2, 1))        # (F, K1, Cin)
    mw = jnp.pad(mw, ((0, 0), (0, 0), (0, cin_pad - in_channels)))
    arrays = {
        "motif_w": mw.reshape(F, K1 * cin_pad).astype(jnp.bfloat16),
        "motif_b": params["motif_b"].reshape(F, 1),
        "body_ws": [], "body_bs": [], "mlp_ws": [], "mlp_bs": [],
    }
    for li in range(len(params["ksizes"])):
        arrays["body_ws"].append(jnp.stack(
            [_flatten_conv_w(c["body"][li]["w"]) for c in clusters]).astype(jnp.bfloat16))
        arrays["body_bs"].append(jnp.stack(
            [c["body"][li]["b"].reshape(-1, 1) for c in clusters]))
    arrays["shape_w"] = jnp.stack(
        [_flatten_conv_w(c["shape_w"]) for c in clusters]).astype(jnp.bfloat16)
    arrays["shape_b"] = jnp.stack([c["shape_b"].reshape(-1, 1) for c in clusters])
    for li in range(len(clusters[0]["mlp_ws"])):
        arrays["mlp_ws"].append(
            jnp.stack([c["mlp_ws"][li] for c in clusters]).astype(jnp.bfloat16))
        arrays["mlp_bs"].append(
            jnp.stack([c["mlp_bs"][li].reshape(-1, 1) for c in clusters]))
    arrays["out_w"] = jnp.stack([c["out_w"] for c in clusters]).astype(jnp.bfloat16)
    arrays["out_b"] = jnp.stack([c["out_b"].reshape(-1, 1) for c in clusters])
    return cfg, arrays


# ----------------------------------------------------------------------------
# Model glue (matches SeqOnlyRegressor.forward semantics)
# ----------------------------------------------------------------------------
def seq_only_regressor_forward(x, per_cluster_load, arrays, *, cfg,
                               scale_function_placement="late-ch"):
    seq, atac = x            # atac is unused by the seq-only model (as in the reference)
    profiles, counts = _fused_pallas_forward(
        seq, per_cluster_load, arrays, cfg, scale_function_placement)
    per_cluster_profiles, per_cluster_counts = [], []
    for cid in range(cfg["n_clusters"]):
        prof = profiles[cid]                     # (B, T, Lp)
        cnt = counts[cid]                        # (B, T)
        cw = per_cluster_load[:, cid]
        if scale_function_placement == "late":
            prof = prof * cw[:, None, None]
            cnt = cnt * cw[:, None]
        elif scale_function_placement == "late-ch":
            cnt = cnt * cw[:, None]
        per_cluster_profiles.append(prof)
        per_cluster_counts.append(cnt)
    return per_cluster_profiles, per_cluster_counts, per_cluster_load, []


# ----------------------------------------------------------------------------
if __name__ == "__main__":
    B, W = 2, 128
    expected_clusters = 2
    filters = 32
    n_non_dil_layers = 0
    non_dil_kernel_size = 3
    n_dil_layers = 2            # dilations 2, 4
    dil_kernel_size = 3
    conv1_kernel_size = 9
    profile_kernel_size = 15
    counts_head_mlp_layers = 2
    num_tasks = 1

    key = jax.random.PRNGKey(0)
    kp, kseq, katac, kload = jax.random.split(key, 4)
    params = init_params(
        kp, expected_clusters=expected_clusters, filters=filters,
        n_non_dil_layers=n_non_dil_layers, non_dil_kernel_size=non_dil_kernel_size,
        n_dil_layers=n_dil_layers, dil_kernel_size=dil_kernel_size,
        conv1_kernel_size=conv1_kernel_size, profile_kernel_size=profile_kernel_size,
        counts_head_mlp_layers=counts_head_mlp_layers, num_tasks=num_tasks)
    cfg, arrays = prepare_params(params)

    seq = jax.random.normal(kseq, (B, 4, W), jnp.float32)
    atac = jax.random.normal(katac, (B, expected_clusters, W), jnp.float32)
    per_cluster_load = jax.nn.softmax(
        jax.random.normal(kload, (B, expected_clusters), jnp.float32), axis=-1)

    fwd = jax.jit(functools.partial(
        seq_only_regressor_forward, cfg=cfg, scale_function_placement="late-ch"))
    profiles, counts, cw, acts = fwd((seq, atac), per_cluster_load, arrays)
    jax.block_until_ready((profiles, counts, cw))

    L1 = W - conv1_kernel_size + 1
    Lp = L1 - profile_kernel_size + 1
    assert len(profiles) == expected_clusters and len(counts) == expected_clusters
    assert profiles[0].shape == (B, num_tasks, Lp)
    assert counts[0].shape == (B, num_tasks)
    assert cw.shape == (B, expected_clusters)
    assert acts == []
    # profile head is a softmax over the sequence axis -> rows sum to ~1
    assert bool(jnp.all(jnp.abs(jnp.sum(profiles[0], axis=2) - 1.0) < 1e-2))
    assert bool(jnp.all(jnp.isfinite(counts[0])))
    print("KERNEL_OK")
</pallas_src>

<mosaic_0001>
module attributes {stable_mosaic.version = 11 : i64} {
  func.func @kernel(%arg0: i32, %arg1: memref<2x8x128xf32, #tpu.memory_space<vmem>>, %arg2: memref<1x2x1xf32, #tpu.memory_space<vmem>>, %arg3: memref<32x72xbf16, #tpu.memory_space<vmem>>, %arg4: memref<32x1xf32, #tpu.memory_space<vmem>>, %arg5: memref<1x32x96xbf16, #tpu.memory_space<vmem>>, %arg6: memref<1x32x1xf32, #tpu.memory_space<vmem>>, %arg7: memref<1x32x96xbf16, #tpu.memory_space<vmem>>, %arg8: memref<1x32x1xf32, #tpu.memory_space<vmem>>, %arg9: memref<1x1x480xbf16, #tpu.memory_space<vmem>>, %arg10: memref<1x1x1xf32, #tpu.memory_space<vmem>>, %arg11: memref<1x32x32xbf16, #tpu.memory_space<vmem>>, %arg12: memref<1x32x1xf32, #tpu.memory_space<vmem>>, %arg13: memref<1x32x32xbf16, #tpu.memory_space<vmem>>, %arg14: memref<1x32x1xf32, #tpu.memory_space<vmem>>, %arg15: memref<1x1x32xbf16, #tpu.memory_space<vmem>>, %arg16: memref<1x1x1xf32, #tpu.memory_space<vmem>>, %arg17: memref<1x2x1x128xf32, #tpu.memory_space<vmem>>, %arg18: memref<1x1x2xf32, #tpu.memory_space<vmem>>, %arg19: memref<72x120xf32, #tpu.memory_space<vmem>>, %arg20: memref<32x270xf32, #tpu.memory_space<vmem>>, %arg21: memref<96x120xf32, #tpu.memory_space<vmem>>, %arg22: memref<480x128xf32, #tpu.memory_space<vmem>>) attributes {dimension_semantics = [#tpu.dimension_semantics<parallel>], iteration_bounds = array<i64: 2>, scalar_prefetch = 0 : i64, scratch_operands = 4 : i64, tpu.core_type = #tpu.core_type<tc>, window_params = [{pipeline_mode = #tpu.pipeline_mode<synchronous>, transform_indices = @transform_0, window_bounds = array<i64: 2, 8, 128>}, {transform_indices = @transform_1, window_bounds = array<i64: 1, 2, 1>}, {pipeline_mode = #tpu.pipeline_mode<synchronous>, transform_indices = @transform_2, window_bounds = array<i64: 32, 72>}, {pipeline_mode = #tpu.pipeline_mode<synchronous>, transform_indices = @transform_3, window_bounds = array<i64: 32, 1>}, {transform_indices = @transform_4, window_bounds = array<i64: 1, 32, 96>}, {transform_indices = @transform_5, window_bounds = array<i64: 1, 32, 1>}, {transform_indices = @transform_6, window_bounds = array<i64: 1, 32, 96>}, {transform_indices = @transform_7, window_bounds = array<i64: 1, 32, 1>}, {transform_indices = @transform_8, window_bounds = array<i64: 1, 1, 480>}, {transform_indices = @transform_9, window_bounds = array<i64: 1, 1, 1>}, {transform_indices = @transform_10, window_bounds = array<i64: 1, 32, 32>}, {transform_indices = @transform_11, window_bounds = array<i64: 1, 32, 1>}, {transform_indices = @transform_12, window_bounds = array<i64: 1, 32, 32>}, {transform_indices = @transform_13, window_bounds = array<i64: 1, 32, 1>}, {transform_indices = @transform_14, window_bounds = array<i64: 1, 1, 32>}, {transform_indices = @transform_15, window_bounds = array<i64: 1, 1, 1>}, {transform_indices = @transform_16, window_bounds = array<i64: 1, 2, 1, 128>}, {transform_indices = @transform_17, window_bounds = array<i64: 1, 1, 2>}]} {
    %0 = tpu.iota {dimensions = array<i32: 1>} : vector<1x2xi32>
    %1 = tpu.iota {dimensions = array<i32: 1>} : vector<1x128xi32>
    %c0 = arith.constant 0 : index
    %c0_0 = arith.constant 0 : index
    %2 = vector.load %arg3[%c0, %c0_0] : memref<32x72xbf16, #tpu.memory_space<vmem>>, vector<32x72xbf16>
    %c0_1 = arith.constant 0 : index
    %c0_2 = arith.constant 0 : index
    %3 = vector.load %arg4[%c0_1, %c0_2] : memref<32x1xf32, #tpu.memory_space<vmem>>, vector<32x1xf32>
    %c0_3 = arith.constant 0 : index
    %c0_4 = arith.constant 0 : index
    %c0_5 = arith.constant 0 : index
    %4 = vector.load %arg9[%c0_3, %c0_4, %c0_5] : memref<1x1x480xbf16, #tpu.memory_space<vmem>>, vector<1x1x480xbf16>
    %5 = vector.shape_cast %4 : vector<1x1x480xbf16> to vector<1x480xbf16>
    %c0_6 = arith.constant 0 : index
    %c0_7 = arith.constant 0 : index
    %c0_8 = arith.constant 0 : index
    %6 = vector.load %arg10[%c0_6, %c0_7, %c0_8] : memref<1x1x1xf32, #tpu.memory_space<vmem>>, vector<1x1x1xf32>
    %7 = vector.shape_cast %6 : vector<1x1x1xf32> to vector<1x1xf32>
    %cst = arith.constant 0.000000e+00 : f32
    %8 = vector.broadcast %cst : f32 to vector<32x2xf32>
    %c0_9 = arith.constant 0 : index
    %c0_10 = arith.constant 0 : index
    %c0_11 = arith.constant 0 : index
    %9 = vector.load %arg1[%c0_9, %c0_10, %c0_11] : memref<2x8x128xf32, #tpu.memory_space<vmem>>, vector<1x8x128xf32>
    %10 = vector.shape_cast %9 : vector<1x8x128xf32> to vector<8x128xf32>
    %11 = vector.extract_strided_slice %10 {offsets = [0, 0], sizes = [8, 120], strides = [1, 1]} : vector<8x128xf32> to vector<8x120xf32>
    %c0_12 = arith.constant 0 : index
    %c0_13 = arith.constant 0 : index
    %12 = vector.load %arg19[%c0_12, %c0_13] : memref<72x120xf32, #tpu.memory_space<vmem>>, vector<8x120xf32>
    tpu.vector_store %arg19[%c0_12, %c0_13], %11 {strides = array<i32>} : memref<72x120xf32, #tpu.memory_space<vmem>>, vector<8x120xf32>,
    %13 = vector.extract_strided_slice %10 {offsets = [0, 1], sizes = [8, 120], strides = [1, 1]} : vector<8x128xf32> to vector<8x120xf32>
    %c8 = arith.constant 8 : index
    %c0_14 = arith.constant 0 : index
    %14 = vector.load %arg19[%c8, %c0_14] : memref<72x120xf32, #tpu.memory_space<vmem>>, vector<8x120xf32>
    tpu.vector_store %arg19[%c8, %c0_14], %13 {strides = array<i32>} : memref<72x120xf32, #tpu.memory_space<vmem>>, vector<8x120xf32>,
    %15 = vector.extract_strided_slice %10 {offsets = [0, 2], sizes = [8, 120], strides = [1, 1]} : vector<8x128xf32> to vector<8x120xf32>
    %c16 = arith.constant 16 : index
    %c0_15 = arith.constant 0 : index
    %16 = vector.load %arg19[%c16, %c0_15] : memref<72x120xf32, #tpu.memory_space<vmem>>, vector<8x120xf32>
    tpu.vector_store %arg19[%c16, %c0_15], %15 {strides = array<i32>} : memref<72x120xf32, #tpu.memory_space<vmem>>, vector<8x120xf32>,
    %17 = vector.extract_strided_slice %10 {offsets = [0, 3], sizes = [8, 120], strides = [1, 1]} : vector<8x128xf32> to vector<8x120xf32>
    %c24 = arith.constant 24 : index
    %c0_16 = arith.constant 0 : index
    %18 = vector.load %arg19[%c24, %c0_16] : memref<72x120xf32, #tpu.memory_space<vmem>>, vector<8x120xf32>
    tpu.vector_store %arg19[%c24, %c0_16], %17 {strides = array<i32>} : memref<72x120xf32, #tpu.memory_space<vmem>>, vector<8x120xf32>,
    %19 = vector.extract_strided_slice %10 {offsets = [0, 4], sizes = [8, 120], strides = [1, 1]} : vector<8x128xf32> to vector<8x120xf32>
    %c32 = arith.constant 32 : index
    %c0_17 = arith.constant 0 : index
    %20 = vector.load %arg19[%c32, %c0_17] : memref<72x120xf32, #tpu.memory_space<vmem>>, vector<8x120xf32>
    tpu.vector_store %arg19[%c32, %c0_17], %19 {strides = array<i32>} : memref<72x120xf32, #tpu.memory_space<vmem>>, vector<8x120xf32>,
    %21 = vector.extract_strided_slice %10 {offsets = [0, 5], sizes = [8, 120], strides = [1, 1]} : vector<8x128xf32> to vector<8x120xf32>
    %c40 = arith.constant 40 : index
    %c0_18 = arith.constant 0 : index
    %22 = vector.load %arg19[%c40, %c0_18] : memref<72x120xf32, #tpu.memory_space<vmem>>, vector<8x120xf32>
    tpu.vector_store %arg19[%c40, %c0_18], %21 {strides = array<i32>} : memref<72x120xf32, #tpu.memory_space<vmem>>, vector<8x120xf32>,
    %23 = vector.extract_strided_slice %10 {offsets = [0, 6], sizes = [8, 120], strides = [1, 1]} : vector<8x128xf32> to vector<8x120xf32>
    %c48 = arith.constant 48 : index
    %c0_19 = arith.constant 0 : index
    %24 = vector.load %arg19[%c48, %c0_19] : memref<72x120xf32, #tpu.memory_space<vmem>>, vector<8x120xf32>
    tpu.vector_store %arg19[%c48, %c0_19], %23 {strides = array<i32>} : memref<72x120xf32, #tpu.memory_space<vmem>>, vector<8x120xf32>,
    %25 = vector.extract_strided_slice %10 {offsets = [0, 7], sizes = [8, 120], strides = [1, 1]} : vector<8x128xf32> to vector<8x120xf32>
    %c56 = arith.constant 56 : index
    %c0_20 = arith.constant 0 : index
    %26 = vector.load %arg19[%c56, %c0_20] : memref<72x120xf32, #tpu.memory_space<vmem>>, vector<8x120xf32>
    tpu.vector_store %arg19[%c56, %c0_20], %25 {strides = array<i32>} : memref<72x120xf32, #tpu.memory_space<vmem>>, vector<8x120xf32>,
    %27 = vector.extract_strided_slice %10 {offsets = [0, 8], sizes = [8, 120], strides = [1, 1]} : vector<8x128xf32> to vector<8x120xf32>
    %c64 = arith.constant 64 : index
    %c0_21 = arith.constant 0 : index
    %28 = vector.load %arg19[%c64, %c0_21] : memref<72x120xf32, #tpu.memory_space<vmem>>, vector<8x120xf32>
    tpu.vector_store %arg19[%c64, %c0_21], %27 {strides = array<i32>} : memref<72x120xf32, #tpu.memory_space<vmem>>, vector<8x120xf32>,
    %c0_22 = arith.constant 0 : index
    %c0_23 = arith.constant 0 : index
    %29 = vector.load %arg19[%c0_22, %c0_23] : memref<72x120xf32, #tpu.memory_space<vmem>>, vector<72x120xf32>
    %30 = arith.truncf %29 : vector<72x120xf32> to vector<72x120xbf16>
    %cst_24 = arith.constant dense<0.000000e+00> : vector<32x120xf32>
    %31 = tpu.matmul %2, %30, %cst_24 {dimension_numbers = #tpu.dot_dimension_numbers<[1], [0], [0], [1], [0, 0, 1, 1], [], []>} : vector<32x72xbf16>, vector<72x120xbf16>, vector<32x120xf32> -> vector<32x120xf32>
    %32 = vector.broadcast %3 : vector<32x1xf32> to vector<32x120xf32>
    %33 = arith.addf %31, %32 : vector<32x120xf32>
    %cst_25 = arith.constant 0.000000e+00 : f32
    %34 = vector.broadcast %cst_25 : f32 to vector<32x270xf32>
    %c0_26 = arith.constant 0 : index
    %c0_27 = arith.constant 0 : index
    %35 = vector.load %arg20[%c0_26, %c0_27] : memref<32x270xf32, #tpu.memory_space<vmem>>, vector<32x270xf32>
    tpu.vector_store %arg20[%c0_26, %c0_27], %34 {strides = array<i32>} : memref<32x270xf32, #tpu.memory_space<vmem>>, vector<32x270xf32>,
    %c0_28 = arith.constant 0 : index
    %c128 = arith.constant 128 : index
    %36 = vector.load %arg20[%c0_28, %c128] : memref<32x270xf32, #tpu.memory_space<vmem>>, vector<32x120xf32>
    tpu.vector_store %arg20[%c0_28, %c128], %33 {strides = array<i32>} : memref<32x270xf32, #tpu.memory_space<vmem>>, vector<32x120xf32>,
    %c0_29 = arith.constant 0 : index
    %c0_30 = arith.constant 0 : index
    %37 = vector.load %arg20[%c0_29, %c0_30] : memref<32x270xf32, #tpu.memory_space<vmem>>, vector<32x270xf32>
    %38 = vector.extract_strided_slice %37 {offsets = [0, 126], sizes = [32, 120], strides = [1, 1]} : vector<32x270xf32> to vector<32x120xf32>
    %c0_31 = arith.constant 0 : index
    %c0_32 = arith.constant 0 : index
    %39 = vector.load %arg21[%c0_31, %c0_32] : memref<96x120xf32, #tpu.memory_space<vmem>>, vector<32x120xf32>
    tpu.vector_store %arg21[%c0_31, %c0_32], %38 {strides = array<i32>} : memref<96x120xf32, #tpu.memory_space<vmem>>, vector<32x120xf32>,
    %40 = vector.extract_strided_slice %37 {offsets = [0, 128], sizes = [32, 120], strides = [1, 1]} : vector<32x270xf32> to vector<32x120xf32>
    %c32_33 = arith.constant 32 : index
    %c0_34 = arith.constant 0 : index
    %41 = vector.load %arg21[%c32_33, %c0_34] : memref<96x120xf32, #tpu.memory_space<vmem>>, vector<32x120xf32>
    tpu.vector_store %arg21[%c32_33, %c0_34], %40 {strides = array<i32>} : memref<96x120xf32, #tpu.memory_space<vmem>>, vector<32x120xf32>,
    %42 = vector.extract_strided_slice %37 {offsets = [0, 130], sizes = [32, 120], strides = [1, 1]} : vector<32x270xf32> to vector<32x120xf32>
    %c64_35 = arith.constant 64 : index
    %c0_36 = arith.constant 0 : index
    %43 = vector.load %arg21[%c64_35, %c0_36] : memref<96x120xf32, #tpu.memory_space<vmem>>, vector<32x120xf32>
    tpu.vector_store %arg21[%c64_35, %c0_36], %42 {strides = array<i32>} : memref<96x120xf32, #tpu.memory_space<vmem>>, vector<32x120xf32>,
    %c0_37 = arith.constant 0 : index
    %c0_38 = arith.constant 0 : index
    %c0_39 = arith.constant 0 : index
    %44 = vector.load %arg5[%c0_37, %c0_38, %c0_39] : memref<1x32x96xbf16, #tpu.memory_space<vmem>>, vector<1x32x96xbf16>
    %45 = vector.shape_cast %44 : vector<1x32x96xbf16> to vector<32x96xbf16>
    %c0_40 = arith.constant 0 : index
    %c0_41 = arith.constant 0 : index
    %46 = vector.load %arg21[%c0_40, %c0_41] : memref<96x120xf32, #tpu.memory_space<vmem>>, vector<96x120xf32>
    %47 = arith.truncf %46 : vector<96x120xf32> to vector<96x120xbf16>
    %cst_42 = arith.constant dense<0.000000e+00> : vector<32x120xf32>
    %48 = tpu.matmul %45, %47, %cst_42 {dimension_numbers = #tpu.dot_dimension_numbers<[1], [0], [0], [1], [0, 0, 1, 1], [], []>} : vector<32x96xbf16>, vector<96x120xbf16>, vector<32x120xf32> -> vector<32x120xf32>
    %c0_43 = arith.constant 0 : index
    %c0_44 = arith.constant 0 : index
    %c0_45 = arith.constant 0 : index
    %49 = vector.load %arg6[%c0_43, %c0_44, %c0_45] : memref<1x32x1xf32, #tpu.memory_space<vmem>>, vector<1x32x1xf32>
    %50 = vector.shape_cast %49 : vector<1x32x1xf32> to vector<32x1xf32>
    %51 = vector.broadcast %50 : vector<32x1xf32> to vector<32x120xf32>
    %52 = arith.addf %48, %51 : vector<32x120xf32>
    %cst_46 = arith.constant 0.000000e+00 : f32
    %53 = vector.broadcast %cst_46 : f32 to vector<32x120xf32>
    %54 = arith.maximumf %52, %53 : vector<32x120xf32>
    %55 = arith.addf %33, %54 : vector<32x120xf32>
    %c0_47 = arith.constant 0 : index
    %c128_48 = arith.constant 128 : index
    %56 = vector.load %arg20[%c0_47, %c128_48] : memref<32x270xf32, #tpu.memory_space<vmem>>, vector<32x120xf32>
    tpu.vector_store %arg20[%c0_47, %c128_48], %55 {strides = array<i32>} : memref<32x270xf32, #tpu.memory_space<vmem>>, vector<32x120xf32>,
    %c0_49 = arith.constant 0 : index
    %c0_50 = arith.constant 0 : index
    %57 = vector.load %arg20[%c0_49, %c0_50] : memref<32x270xf32, #tpu.memory_space<vmem>>, vector<32x270xf32>
    %58 = vector.extract_strided_slice %57 {offsets = [0, 124], sizes = [32, 120], strides = [1, 1]} : vector<32x270xf32> to vector<32x120xf32>
    %c0_51 = arith.constant 0 : index
    %c0_52 = arith.constant 0 : index
    %59 = vector.load %arg21[%c0_51, %c0_52] : memref<96x120xf32, #tpu.memory_space<vmem>>, vector<32x120xf32>
    tpu.vector_store %arg21[%c0_51, %c0_52], %58 {strides = array<i32>} : memref<96x120xf32, #tpu.memory_space<vmem>>, vector<32x120xf32>,
    %60 = vector.extract_strided_slice %57 {offsets = [0, 128], sizes = [32, 120], strides = [1, 1]} : vector<32x270xf32> to vector<32x120xf32>
    %c32_53 = arith.constant 32 : index
    %c0_54 = arith.constant 0 : index
    %61 = vector.load %arg21[%c32_53, %c0_54] : memref<96x120xf32, #tpu.memory_space<vmem>>, vector<32x120xf32>
    tpu.vector_store %arg21[%c32_53, %c0_54], %60 {strides = array<i32>} : memref<96x120xf32, #tpu.memory_space<vmem>>, vector<32x120xf32>,
    %62 = vector.extract_strided_slice %57 {offsets = [0, 132], sizes = [32, 120], strides = [1, 1]} : vector<32x270xf32> to vector<32x120xf32>
    %c64_55 = arith.constant 64 : index
    %c0_56 = arith.constant 0 : index
    %63 = vector.load %arg21[%c64_55, %c0_56] : memref<96x120xf32, #tpu.memory_space<vmem>>, vector<32x120xf32>
    tpu.vector_store %arg21[%c64_55, %c0_56], %62 {strides = array<i32>} : memref<96x120xf32, #tpu.memory_space<vmem>>, vector<32x120xf32>,
    %c0_57 = arith.constant 0 : index
    %c0_58 = arith.constant 0 : index
    %c0_59 = arith.constant 0 : index
    %64 = vector.load %arg7[%c0_57, %c0_58, %c0_59] : memref<1x32x96xbf16, #tpu.memory_space<vmem>>, vector<1x32x96xbf16>
    %65 = vector.shape_cast %64 : vector<1x32x96xbf16> to vector<32x96xbf16>
    %c0_60 = arith.constant 0 : index
    %c0_61 = arith.constant 0 : index
    %66 = vector.load %arg21[%c0_60, %c0_61] : memref<96x120xf32, #tpu.memory_space<vmem>>, vector<96x120xf32>
    %67 = arith.truncf %66 : vector<96x120xf32> to vector<96x120xbf16>
    %cst_62 = arith.constant dense<0.000000e+00> : vector<32x120xf32>
    %68 = tpu.matmul %65, %67, %cst_62 {dimension_numbers = #tpu.dot_dimension_numbers<[1], [0], [0], [1], [0, 0, 1, 1], [], []>} : vector<32x96xbf16>, vector<96x120xbf16>, vector<32x120xf32> -> vector<32x120xf32>
    %c0_63 = arith.constant 0 : index
    %c0_64 = arith.constant 0 : index
    %c0_65 = arith.constant 0 : index
    %69 = vector.load %arg8[%c0_63, %c0_64, %c0_65] : memref<1x32x1xf32, #tpu.memory_space<vmem>>, vector<1x32x1xf32>
    %70 = vector.shape_cast %69 : vector<1x32x1xf32> to vector<32x1xf32>
    %71 = vector.broadcast %70 : vector<32x1xf32> to vector<32x120xf32>
    %72 = arith.addf %68, %71 : vector<32x120xf32>
    %cst_66 = arith.constant 0.000000e+00 : f32
    %73 = vector.broadcast %cst_66 : f32 to vector<32x120xf32>
    %74 = arith.maximumf %72, %73 : vector<32x120xf32>
    %75 = arith.addf %55, %74 : vector<32x120xf32>
    %c0_67 = arith.constant 0 : index
    %c128_68 = arith.constant 128 : index
    %76 = vector.load %arg20[%c0_67, %c128_68] : memref<32x270xf32, #tpu.memory_space<vmem>>, vector<32x120xf32>
    tpu.vector_store %arg20[%c0_67, %c128_68], %75 {strides = array<i32>} : memref<32x270xf32, #tpu.memory_space<vmem>>, vector<32x120xf32>,
    %c0_69 = arith.constant 0 : index
    %c0_70 = arith.constant 0 : index
    %77 = vector.load %arg20[%c0_69, %c0_70] : memref<32x270xf32, #tpu.memory_space<vmem>>, vector<32x270xf32>
    %78 = vector.extract_strided_slice %77 {offsets = [0, 128], sizes = [32, 128], strides = [1, 1]} : vector<32x270xf32> to vector<32x128xf32>
    %c0_71 = arith.constant 0 : index
    %c0_72 = arith.constant 0 : index
    %79 = vector.load %arg22[%c0_71, %c0_72] : memref<480x128xf32, #tpu.memory_space<vmem>>, vector<32x128xf32>
    tpu.vector_store %arg22[%c0_71, %c0_72], %78 {strides = array<i32>} : memref<480x128xf32, #tpu.memory_space<vmem>>, vector<32x128xf32>,
    %80 = vector.extract_strided_slice %77 {offsets = [0, 129], sizes = [32, 128], strides = [1, 1]} : vector<32x270xf32> to vector<32x128xf32>
    %c32_73 = arith.constant 32 : index
    %c0_74 = arith.constant 0 : index
    %81 = vector.load %arg22[%c32_73, %c0_74] : memref<480x128xf32, #tpu.memory_space<vmem>>, vector<32x128xf32>
    tpu.vector_store %arg22[%c32_73, %c0_74], %80 {strides = array<i32>} : memref<480x128xf32, #tpu.memory_space<vmem>>, vector<32x128xf32>,
    %82 = vector.extract_strided_slice %77 {offsets = [0, 130], sizes = [32, 128], strides = [1, 1]} : vector<32x270xf32> to vector<32x128xf32>
    %c64_75 = arith.constant 64 : index
    %c0_76 = arith.constant 0 : index
    %83 = vector.load %arg22[%c64_75, %c0_76] : memref<480x128xf32, #tpu.memory_space<vmem>>, vector<32x128xf32>
    tpu.vector_store %arg22[%c64_75, %c0_76], %82 {strides = array<i32>} : memref<480x128xf32, #tpu.memory_space<vmem>>, vector<32x128xf32>,
    %84 = vector.extract_strided_slice %77 {offsets = [0, 131], sizes = [32, 128], strides = [1, 1]} : vector<32x270xf32> to vector<32x128xf32>
    %c96 = arith.constant 96 : index
    %c0_77 = arith.constant 0 : index
    %85 = vector.load %arg22[%c96, %c0_77] : memref<480x128xf32, #tpu.memory_space<vmem>>, vector<32x128xf32>
    tpu.vector_store %arg22[%c96, %c0_77], %84 {strides = array<i32>} : memref<480x128xf32, #tpu.memory_space<vmem>>, vector<32x128xf32>,
    %86 = vector.extract_strided_slice %77 {offsets = [0, 132], sizes = [32, 128], strides = [1, 1]} : vector<32x270xf32> to vector<32x128xf32>
    %c128_78 = arith.constant 128 : index
    %c0_79 = arith.constant 0 : index
    %87 = vector.load %arg22[%c128_78, %c0_79] : memref<480x128xf32, #tpu.memory_space<vmem>>, vector<32x128xf32>
    tpu.vector_store %arg22[%c128_78, %c0_79], %86 {strides = array<i32>} : memref<480x128xf32, #tpu.memory_space<vmem>>, vector<32x128xf32>,
    %88 = vector.extract_strided_slice %77 {offsets = [0, 133], sizes = [32, 128], strides = [1, 1]} : vector<32x270xf32> to vector<32x128xf32>
    %c160 = arith.constant 160 : index
    %c0_80 = arith.constant 0 : index
    %89 = vector.load %arg22[%c160, %c0_80] : memref<480x128xf32, #tpu.memory_space<vmem>>, vector<32x128xf32>
    tpu.vector_store %arg22[%c160, %c0_80], %88 {strides = array<i32>} : memref<480x128xf32, #tpu.memory_space<vmem>>, vector<32x128xf32>,
    %90 = vector.extract_strided_slice %77 {offsets = [0, 134], sizes = [32, 128], strides = [1, 1]} : vector<32x270xf32> to vector<32x128xf32>
    %c192 = arith.constant 192 : index
    %c0_81 = arith.constant 0 : index
    %91 = vector.load %arg22[%c192, %c0_81] : memref<480x128xf32, #tpu.memory_space<vmem>>, vector<32x128xf32>
    tpu.vector_store %arg22[%c192, %c0_81], %90 {strides = array<i32>} : memref<480x128xf32, #tpu.memory_space<vmem>>, vector<32x128xf32>,
    %92 = vector.extract_strided_slice %77 {offsets = [0, 135], sizes = [32, 128], strides = [1, 1]} : vector<32x270xf32> to vector<32x128xf32>
    %c224 = arith.constant 224 : index
    %c0_82 = arith.constant 0 : index
    %93 = vector.load %arg22[%c224, %c0_82] : memref<480x128xf32, #tpu.memory_space<vmem>>, vector<32x128xf32>
    tpu.vector_store %arg22[%c224, %c0_82], %92 {strides = array<i32>} : memref<480x128xf32, #tpu.memory_space<vmem>>, vector<32x128xf32>,
    %94 = vector.extract_strided_slice %77 {offsets = [0, 136], sizes = [32, 128], strides = [1, 1]} : vector<32x270xf32> to vector<32x128xf32>
    %c256 = arith.constant 256 : index
    %c0_83 = arith.constant 0 : index
    %95 = vector.load %arg22[%c256, %c0_83] : memref<480x128xf32, #tpu.memory_space<vmem>>, vector<32x128xf32>
    tpu.vector_store %arg22[%c256, %c0_83], %94 {strides = array<i32>} : memref<480x128xf32, #tpu.memory_space<vmem>>, vector<32x128xf32>,
    %96 = vector.extract_strided_slice %77 {offsets = [0, 137], sizes = [32, 128], strides = [1, 1]} : vector<32x270xf32> to vector<32x128xf32>
    %c288 = arith.constant 288 : index
    %c0_84 = arith.constant 0 : index
    %97 = vector.load %arg22[%c288, %c0_84] : memref<480x128xf32, #tpu.memory_space<vmem>>, vector<32x128xf32>
    tpu.vector_store %arg22[%c288, %c0_84], %96 {strides = array<i32>} : memref<480x128xf32, #tpu.memory_space<vmem>>, vector<32x128xf32>,
    %98 = vector.extract_strided_slice %77 {offsets = [0, 138], sizes = [32, 128], strides = [1, 1]} : vector<32x270xf32> to vector<32x128xf32>
    %c320 = arith.constant 320 : index
    %c0_85 = arith.constant 0 : index
    %99 = vector.load %arg22[%c320, %c0_85] : memref<480x128xf32, #tpu.memory_space<vmem>>, vector<32x128xf32>
    tpu.vector_store %arg22[%c320, %c0_85], %98 {strides = array<i32>} : memref<480x128xf32, #tpu.memory_space<vmem>>, vector<32x128xf32>,
    %100 = vector.extract_strided_slice %77 {offsets = [0, 139], sizes = [32, 128], strides = [1, 1]} : vector<32x270xf32> to vector<32x128xf32>
    %c352 = arith.constant 352 : index
    %c0_86 = arith.constant 0 : index
    %101 = vector.load %arg22[%c352, %c0_86] : memref<480x128xf32, #tpu.memory_space<vmem>>, vector<32x128xf32>
    tpu.vector_store %arg22[%c352, %c0_86], %100 {strides = array<i32>} : memref<480x128xf32, #tpu.memory_space<vmem>>, vector<32x128xf32>,
    %102 = vector.extract_strided_slice %77 {offsets = [0, 140], sizes = [32, 128], strides = [1, 1]} : vector<32x270xf32> to vector<32x128xf32>
    %c384 = arith.constant 384 : index
    %c0_87 = arith.constant 0 : index
    %103 = vector.load %arg22[%c384, %c0_87] : memref<480x128xf32, #tpu.memory_space<vmem>>, vector<32x128xf32>
    tpu.vector_store %arg22[%c384, %c0_87], %102 {strides = array<i32>} : memref<480x128xf32, #tpu.memory_space<vmem>>, vector<32x128xf32>,
    %104 = vector.extract_strided_slice %77 {offsets = [0, 141], sizes = [32, 128], strides = [1, 1]} : vector<32x270xf32> to vector<32x128xf32>
    %c416 = arith.constant 416 : index
    %c0_88 = arith.constant 0 : index
    %105 = vector.load %arg22[%c416, %c0_88] : memref<480x128xf32, #tpu.memory_space<vmem>>, vector<32x128xf32>
    tpu.vector_store %arg22[%c416, %c0_88], %104 {strides = array<i32>} : memref<480x128xf32, #tpu.memory_space<vmem>>, vector<32x128xf32>,
    %106 = vector.extract_strided_slice %77 {offsets = [0, 142], sizes = [32, 128], strides = [1, 1]} : vector<32x270xf32> to vector<32x128xf32>
    %c448 = arith.constant 448 : index
    %c0_89 = arith.constant 0 : index
    %107 = vector.load %arg22[%c448, %c0_89] : memref<480x128xf32, #tpu.memory_space<vmem>>, vector<32x128xf32>
    tpu.vector_store %arg22[%c448, %c0_89], %106 {strides = array<i32>} : memref<480x128xf32, #tpu.memory_space<vmem>>, vector<32x128xf32>,
    %c0_90 = arith.constant 0 : index
    %c0_91 = arith.constant 0 : index
    %108 = vector.load %arg22[%c0_90, %c0_91] : memref<480x128xf32, #tpu.memory_space<vmem>>, vector<480x128xf32>
    %109 = arith.truncf %108 : vector<480x128xf32> to vector<480x128xbf16>
    %cst_92 = arith.constant dense<0.000000e+00> : vector<1x128xf32>
    %110 = tpu.matmul %5, %109, %cst_92 {dimension_numbers = #tpu.dot_dimension_numbers<[1], [0], [0], [1], [0, 0, 1, 1], [], []>} : vector<1x480xbf16>, vector<480x128xbf16>, vector<1x128xf32> -> vector<1x128xf32>
    %111 = vector.broadcast %7 : vector<1x1xf32> to vector<1x128xf32>
    %112 = arith.addf %110, %111 : vector<1x128xf32>
    %c106_i32 = arith.constant 106 : i32
    %113 = vector.broadcast %c106_i32 : i32 to vector<1x128xi32>
    %114 = arith.cmpi slt, %1, %113 : vector<1x128xi32>
    %cst_93 = arith.constant -1.000000e+30 : f32
    %115 = vector.broadcast %cst_93 : f32 to vector<1x128xf32>
    %116 = arith.select %114, %112, %115 : vector<1x128xi1>, vector<1x128xf32>
    %cst_94 = arith.constant dense<0xFF800000> : vector<1xf32>
    %117 = vector.multi_reduction <maximumf>, %116, %cst_94 [1] : vector<1x128xf32> to vector<1xf32>
    %118 = vector.shape_cast %117 : vector<1xf32> to vector<1x1xf32>
    %119 = vector.broadcast %118 : vector<1x1xf32> to vector<1x128xf32>
    %120 = arith.subf %116, %119 : vector<1x128xf32>
    %121 = math.exp %120 : vector<1x128xf32>
    %cst_95 = arith.constant dense<0.000000e+00> : vector<1xf32>
    %122 = vector.multi_reduction <add>, %121, %cst_95 [1] : vector<1x128xf32> to vector<1xf32>
    %123 = vector.shape_cast %122 : vector<1xf32> to vector<1x1xf32>
    %124 = tpu.reciprocal %123 {approx = true} : vector<1x1xf32> -> vector<1x1xf32>
    %125 = vector.broadcast %124 : vector<1x1xf32> to vector<1x128xf32>
    %126 = arith.mulf %121, %125 : vector<1x128xf32>
    %c0_96 = arith.constant 0 : index
    %c0_97 = arith.constant 0 : index
    %c0_98 = arith.constant 0 : index
    %c0_99 = arith.constant 0 : index
    %127 = vector.load %arg17[%c0_96, %c0_97, %c0_98, %c0_99] : memref<1x2x1x128xf32, #tpu.memory_space<vmem>>, vector<1x1x1x128xf32>
    %128 = vector.shape_cast %127 : vector<1x1x1x128xf32> to vector<1x128xf32>
    %129 = vector.shape_cast %126 : vector<1x128xf32> to vector<1x1x1x128xf32>
    tpu.vector_store %arg17[%c0_96, %c0_97, %c0_98, %c0_99], %129 {strides = array<i32>} : memref<1x2x1x128xf32, #tpu.memory_space<vmem>>, vector<1x1x1x128xf32>,
    %cst_100 = arith.constant dense<0.000000e+00> : vector<32xf32>
    %130 = vector.multi_reduction <add>, %75, %cst_100 [1] : vector<32x120xf32> to vector<32xf32>
    %131 = vector.shape_cast %130 : vector<32xf32> to vector<32x1xf32>
    %cst_101 = arith.constant 1.200000e+02 : f32
    %132 = vector.broadcast %cst_101 : f32 to vector<32x1xf32>
    %133 = arith.divf %131, %132 : vector<32x1xf32>
    %c0_i32 = arith.constant 0 : i32
    %134 = vector.broadcast %c0_i32 : i32 to vector<1x2xi32>
    %135 = arith.cmpi eq, %0, %134 : vector<1x2xi32>
    %136 = arith.extui %135 : vector<1x2xi1> to vector<1x2xi32>
    %137 = arith.sitofp %136 : vector<1x2xi32> to vector<1x2xf32>
    %138 = vector.broadcast %133 : vector<32x1xf32> to vector<32x2xf32>
    %139 = vector.broadcast %137 : vector<1x2xf32> to vector<32x2xf32>
    %140 = arith.mulf %138, %139 : vector<32x2xf32>
    %141 = arith.addf %8, %140 : vector<32x2xf32>
    %c1 = arith.constant 1 : index
    %c0_102 = arith.constant 0 : index
    %c0_103 = arith.constant 0 : index
    %142 = vector.load %arg1[%c1, %c0_102, %c0_103] : memref<2x8x128xf32, #tpu.memory_space<vmem>>, vector<1x8x128xf32>
    %143 = vector.shape_cast %142 : vector<1x8x128xf32> to vector<8x128xf32>
    %144 = vector.extract_strided_slice %143 {offsets = [0, 0], sizes = [8, 120], strides = [1, 1]} : vector<8x128xf32> to vector<8x120xf32>
    %c0_104 = arith.constant 0 : index
    %c0_105 = arith.constant 0 : index
    %145 = vector.load %arg19[%c0_104, %c0_105] : memref<72x120xf32, #tpu.memory_space<vmem>>, vector<8x120xf32>
    tpu.vector_store %arg19[%c0_104, %c0_105], %144 {strides = array<i32>} : memref<72x120xf32, #tpu.memory_space<vmem>>, vector<8x120xf32>,
    %146 = vector.extract_strided_slice %143 {offsets = [0, 1], sizes = [8, 120], strides = [1, 1]} : vector<8x128xf32> to vector<8x120xf32>
    %c8_106 = arith.constant 8 : index
    %c0_107 = arith.constant 0 : index
    %147 = vector.load %arg19[%c8_106, %c0_107] : memref<72x120xf32, #tpu.memory_space<vmem>>, vector<8x120xf32>
    tpu.vector_store %arg19[%c8_106, %c0_107], %146 {strides = array<i32>} : memref<72x120xf32, #tpu.memory_space<vmem>>, vector<8x120xf32>,
    %148 = vector.extract_strided_slice %143 {offsets = [0, 2], sizes = [8, 120], strides = [1, 1]} : vector<8x128xf32> to vector<8x120xf32>
    %c16_108 = arith.constant 16 : index
    %c0_109 = arith.constant 0 : index
    %149 = vector.load %arg19[%c16_108, %c0_109] : memref<72x120xf32, #tpu.memory_space<vmem>>, vector<8x120xf32>
    tpu.vector_store %arg19[%c16_108, %c0_109], %148 {strides = array<i32>} : memref<72x120xf32, #tpu.memory_space<vmem>>, vector<8x120xf32>,
    %150 = vector.extract_strided_slice %143 {offsets = [0, 3], sizes = [8, 120], strides = [1, 1]} : vector<8x128xf32> to vector<8x120xf32>
    %c24_110 = arith.constant 24 : index
    %c0_111 = arith.constant 0 : index
    %151 = vector.load %arg19[%c24_110, %c0_111] : memref<72x120xf32, #tpu.memory_space<vmem>>, vector<8x120xf32>
    tpu.vector_store %arg19[%c24_110, %c0_111], %150 {strides = array<i32>} : memref<72x120xf32, #tpu.memory_space<vmem>>, vector<8x120xf32>,
    %152 = vector.extract_strided_slice %143 {offsets = [0, 4], sizes = [8, 120], strides = [1, 1]} : vector<8x128xf32> to vector<8x120xf32>
    %c32_112 = arith.constant 32 : index
    %c0_113 = arith.constant 0 : index
    %153 = vector.load %arg19[%c32_112, %c0_113] : memref<72x120xf32, #tpu.memory_space<vmem>>, vector<8x120xf32>
    tpu.vector_store %arg19[%c32_112, %c0_113], %152 {strides = array<i32>} : memref<72x120xf32, #tpu.memory_space<vmem>>, vector<8x120xf32>,
    %154 = vector.extract_strided_slice %143 {offsets = [0, 5], sizes = [8, 120], strides = [1, 1]} : vector<8x128xf32> to vector<8x120xf32>
    %c40_114 = arith.constant 40 : index
    %c0_115 = arith.constant 0 : index
    %155 = vector.load %arg19[%c40_114, %c0_115] : memref<72x120xf32, #tpu.memory_space<vmem>>, vector<8x120xf32>
    tpu.vector_store %arg19[%c40_114, %c0_115], %154 {strides = array<i32>} : memref<72x120xf32, #tpu.memory_space<vmem>>, vector<8x120xf32>,
    %156 = vector.extract_strided_slice %143 {offsets = [0, 6], sizes = [8, 120], strides = [1, 1]} : vector<8x128xf32> to vector<8x120xf32>
    %c48_116 = arith.constant 48 : index
    %c0_117 = arith.constant 0 : index
    %157 = vector.load %arg19[%c48_116, %c0_117] : memref<72x120xf32, #tpu.memory_space<vmem>>, vector<8x120xf32>
    tpu.vector_store %arg19[%c48_116, %c0_117], %156 {strides = array<i32>} : memref<72x120xf32, #tpu.memory_space<vmem>>, vector<8x120xf32>,
    %158 = vector.extract_strided_slice %143 {offsets = [0, 7], sizes = [8, 120], strides = [1, 1]} : vector<8x128xf32> to vector<8x120xf32>
    %c56_118 = arith.constant 56 : index
    %c0_119 = arith.constant 0 : index
    %159 = vector.load %arg19[%c56_118, %c0_119] : memref<72x120xf32, #tpu.memory_space<vmem>>, vector<8x120xf32>
    tpu.vector_store %arg19[%c56_118, %c0_119], %158 {strides = array<i32>} : memref<72x120xf32, #tpu.memory_space<vmem>>, vector<8x120xf32>,
    %160 = vector.extract_strided_slice %143 {offsets = [0, 8], sizes = [8, 120], strides = [1, 1]} : vector<8x128xf32> to vector<8x120xf32>
    %c64_120 = arith.constant 64 : index
    %c0_121 = arith.constant 0 : index
    %161 = vector.load %arg19[%c64_120, %c0_121] : memref<72x120xf32, #tpu.memory_space<vmem>>, vector<8x120xf32>
    tpu.vector_store %arg19[%c64_120, %c0_121], %160 {strides = array<i32>} : memref<72x120xf32, #tpu.memory_space<vmem>>, vector<8x120xf32>,
    %c0_122 = arith.constant 0 : index
    %c0_123 = arith.constant 0 : index
    %162 = vector.load %arg19[%c0_122, %c0_123] : memref<72x120xf32, #tpu.memory_space<vmem>>, vector<72x120xf32>
    %163 = arith.truncf %162 : vector<72x120xf32> to vector<72x120xbf16>
    %cst_124 = arith.constant dense<0.000000e+00> : vector<32x120xf32>
    %164 = tpu.matmul %2, %163, %cst_124 {dimension_numbers = #tpu.dot_dimension_numbers<[1], [0], [0], [1], [0, 0, 1, 1], [], []>} : vector<32x72xbf16>, vector<72x120xbf16>, vector<32x120xf32> -> vector<32x120xf32>
    %165 = vector.broadcast %3 : vector<32x1xf32> to vector<32x120xf32>
    %166 = arith.addf %164, %165 : vector<32x120xf32>
    %cst_125 = arith.constant 0.000000e+00 : f32
    %167 = vector.broadcast %cst_125 : f32 to vector<32x270xf32>
    %c0_126 = arith.constant 0 : index
    %c0_127 = arith.constant 0 : index
    %168 = vector.load %arg20[%c0_126, %c0_127] : memref<32x270xf32, #tpu.memory_space<vmem>>, vector<32x270xf32>
    tpu.vector_store %arg20[%c0_126, %c0_127], %167 {strides = array<i32>} : memref<32x270xf32, #tpu.memory_space<vmem>>, vector<32x270xf32>,
    %c0_128 = arith.constant 0 : index
    %c128_129 = arith.constant 128 : index
    %169 = vector.load %arg20[%c0_128, %c128_129] : memref<32x270xf32, #tpu.memory_space<vmem>>, vector<32x120xf32>
    tpu.vector_store %arg20[%c0_128, %c128_129], %166 {strides = array<i32>} : memref<32x270xf32, #tpu.memory_space<vmem>>, vector<32x120xf32>,
    %c0_130 = arith.constant 0 : index
    %c0_131 = arith.constant 0 : index
    %170 = vector.load %arg20[%c0_130, %c0_131] : memref<32x270xf32, #tpu.memory_space<vmem>>, vector<32x270xf32>
    %171 = vector.extract_strided_slice %170 {offsets = [0, 126], sizes = [32, 120], strides = [1, 1]} : vector<32x270xf32> to vector<32x120xf32>
    %c0_132 = arith.constant 0 : index
    %c0_133 = arith.constant 0 : index
    %172 = vector.load %arg21[%c0_132, %c0_133] : memref<96x120xf32, #tpu.memory_space<vmem>>, vector<32x120xf32>
    tpu.vector_store %arg21[%c0_132, %c0_133], %171 {strides = array<i32>} : memref<96x120xf32, #tpu.memory_space<vmem>>, vector<32x120xf32>,
    %173 = vector.extract_strided_slice %170 {offsets = [0, 128], sizes = [32, 120], strides = [1, 1]} : vector<32x270xf32> to vector<32x120xf32>
    %c32_134 = arith.constant 32 : index
    %c0_135 = arith.constant 0 : index
    %174 = vector.load %arg21[%c32_134, %c0_135] : memref<96x120xf32, #tpu.memory_space<vmem>>, vector<32x120xf32>
    tpu.vector_store %arg21[%c32_134, %c0_135], %173 {strides = array<i32>} : memref<96x120xf32, #tpu.memory_space<vmem>>, vector<32x120xf32>,
    %175 = vector.extract_strided_slice %170 {offsets = [0, 130], sizes = [32, 120], strides = [1, 1]} : vector<32x270xf32> to vector<32x120xf32>
    %c64_136 = arith.constant 64 : index
    %c0_137 = arith.constant 0 : index
    %176 = vector.load %arg21[%c64_136, %c0_137] : memref<96x120xf32, #tpu.memory_space<vmem>>, vector<32x120xf32>
    tpu.vector_store %arg21[%c64_136, %c0_137], %175 {strides = array<i32>} : memref<96x120xf32, #tpu.memory_space<vmem>>, vector<32x120xf32>,
    %c0_138 = arith.constant 0 : index
    %c0_139 = arith.constant 0 : index
    %c0_140 = arith.constant 0 : index
    %177 = vector.load %arg5[%c0_138, %c0_139, %c0_140] : memref<1x32x96xbf16, #tpu.memory_space<vmem>>, vector<1x32x96xbf16>
    %178 = vector.shape_cast %177 : vector<1x32x96xbf16> to vector<32x96xbf16>
    %c0_141 = arith.constant 0 : index
    %c0_142 = arith.constant 0 : index
    %179 = vector.load %arg21[%c0_141, %c0_142] : memref<96x120xf32, #tpu.memory_space<vmem>>, vector<96x120xf32>
    %180 = arith.truncf %179 : vector<96x120xf32> to vector<96x120xbf16>
    %cst_143 = arith.constant dense<0.000000e+00> : vector<32x120xf32>
    %181 = tpu.matmul %178, %180, %cst_143 {dimension_numbers = #tpu.dot_dimension_numbers<[1], [0], [0], [1], [0, 0, 1, 1], [], []>} : vector<32x96xbf16>, vector<96x120xbf16>, vector<32x120xf32> -> vector<32x120xf32>
    %c0_144 = arith.constant 0 : index
    %c0_145 = arith.constant 0 : index
    %c0_146 = arith.constant 0 : index
    %182 = vector.load %arg6[%c0_144, %c0_145, %c0_146] : memref<1x32x1xf32, #tpu.memory_space<vmem>>, vector<1x32x1xf32>
    %183 = vector.shape_cast %182 : vector<1x32x1xf32> to vector<32x1xf32>
    %184 = vector.broadcast %183 : vector<32x1xf32> to vector<32x120xf32>
    %185 = arith.addf %181, %184 : vector<32x120xf32>
    %cst_147 = arith.constant 0.000000e+00 : f32
    %186 = vector.broadcast %cst_147 : f32 to vector<32x120xf32>
    %187 = arith.maximumf %185, %186 : vector<32x120xf32>
    %188 = arith.addf %166, %187 : vector<32x120xf32>
    %c0_148 = arith.constant 0 : index
    %c128_149 = arith.constant 128 : index
    %189 = vector.load %arg20[%c0_148, %c128_149] : memref<32x270xf32, #tpu.memory_space<vmem>>, vector<32x120xf32>
    tpu.vector_store %arg20[%c0_148, %c128_149], %188 {strides = array<i32>} : memref<32x270xf32, #tpu.memory_space<vmem>>, vector<32x120xf32>,
    %c0_150 = arith.constant 0 : index
    %c0_151 = arith.constant 0 : index
    %190 = vector.load %arg20[%c0_150, %c0_151] : memref<32x270xf32, #tpu.memory_space<vmem>>, vector<32x270xf32>
    %191 = vector.extract_strided_slice %190 {offsets = [0, 124], sizes = [32, 120], strides = [1, 1]} : vector<32x270xf32> to vector<32x120xf32>
    %c0_152 = arith.constant 0 : index
    %c0_153 = arith.constant 0 : index
    %192 = vector.load %arg21[%c0_152, %c0_153] : memref<96x120xf32, #tpu.memory_space<vmem>>, vector<32x120xf32>
    tpu.vector_store %arg21[%c0_152, %c0_153], %191 {strides = array<i32>} : memref<96x120xf32, #tpu.memory_space<vmem>>, vector<32x120xf32>,
    %193 = vector.extract_strided_slice %190 {offsets = [0, 128], sizes = [32, 120], strides = [1, 1]} : vector<32x270xf32> to vector<32x120xf32>
    %c32_154 = arith.constant 32 : index
    %c0_155 = arith.constant 0 : index
    %194 = vector.load %arg21[%c32_154, %c0_155] : memref<96x120xf32, #tpu.memory_space<vmem>>, vector<32x120xf32>
    tpu.vector_store %arg21[%c32_154, %c0_155], %193 {strides = array<i32>} : memref<96x120xf32, #tpu.memory_space<vmem>>, vector<32x120xf32>,
    %195 = vector.extract_strided_slice %190 {offsets = [0, 132], sizes = [32, 120], strides = [1, 1]} : vector<32x270xf32> to vector<32x120xf32>
    %c64_156 = arith.constant 64 : index
    %c0_157 = arith.constant 0 : index
    %196 = vector.load %arg21[%c64_156, %c0_157] : memref<96x120xf32, #tpu.memory_space<vmem>>, vector<32x120xf32>
    tpu.vector_store %arg21[%c64_156, %c0_157], %195 {strides = array<i32>} : memref<96x120xf32, #tpu.memory_space<vmem>>, vector<32x120xf32>,
    %c0_158 = arith.constant 0 : index
    %c0_159 = arith.constant 0 : index
    %c0_160 = arith.constant 0 : index
    %197 = vector.load %arg7[%c0_158, %c0_159, %c0_160] : memref<1x32x96xbf16, #tpu.memory_space<vmem>>, vector<1x32x96xbf16>
    %198 = vector.shape_cast %197 : vector<1x32x96xbf16> to vector<32x96xbf16>
    %c0_161 = arith.constant 0 : index
    %c0_162 = arith.constant 0 : index
    %199 = vector.load %arg21[%c0_161, %c0_162] : memref<96x120xf32, #tpu.memory_space<vmem>>, vector<96x120xf32>
    %200 = arith.truncf %199 : vector<96x120xf32> to vector<96x120xbf16>
    %cst_163 = arith.constant dense<0.000000e+00> : vector<32x120xf32>
    %201 = tpu.matmul %198, %200, %cst_163 {dimension_numbers = #tpu.dot_dimension_numbers<[1], [0], [0], [1], [0, 0, 1, 1], [], []>} : vector<32x96xbf16>, vector<96x120xbf16>, vector<32x120xf32> -> vector<32x120xf32>
    %c0_164 = arith.constant 0 : index
    %c0_165 = arith.constant 0 : index
    %c0_166 = arith.constant 0 : index
    %202 = vector.load %arg8[%c0_164, %c0_165, %c0_166] : memref<1x32x1xf32, #tpu.memory_space<vmem>>, vector<1x32x1xf32>
    %203 = vector.shape_cast %202 : vector<1x32x1xf32> to vector<32x1xf32>
    %204 = vector.broadcast %203 : vector<32x1xf32> to vector<32x120xf32>
    %205 = arith.addf %201, %204 : vector<32x120xf32>
    %cst_167 = arith.constant 0.000000e+00 : f32
    %206 = vector.broadcast %cst_167 : f32 to vector<32x120xf32>
    %207 = arith.maximumf %205, %206 : vector<32x120xf32>
    %208 = arith.addf %188, %207 : vector<32x120xf32>
    %c0_168 = arith.constant 0 : index
    %c128_169 = arith.constant 128 : index
    %209 = vector.load %arg20[%c0_168, %c128_169] : memref<32x270xf32, #tpu.memory_space<vmem>>, vector<32x120xf32>
    tpu.vector_store %arg20[%c0_168, %c128_169], %208 {strides = array<i32>} : memref<32x270xf32, #tpu.memory_space<vmem>>, vector<32x120xf32>,
    %c0_170 = arith.constant 0 : index
    %c0_171 = arith.constant 0 : index
    %210 = vector.load %arg20[%c0_170, %c0_171] : memref<32x270xf32, #tpu.memory_space<vmem>>, vector<32x270xf32>
    %211 = vector.extract_strided_slice %210 {offsets = [0, 128], sizes = [32, 128], strides = [1, 1]} : vector<32x270xf32> to vector<32x128xf32>
    %c0_172 = arith.constant 0 : index
    %c0_173 = arith.constant 0 : index
    %212 = vector.load %arg22[%c0_172, %c0_173] : memref<480x128xf32, #tpu.memory_space<vmem>>, vector<32x128xf32>
    tpu.vector_store %arg22[%c0_172, %c0_173], %211 {strides = array<i32>} : memref<480x128xf32, #tpu.memory_space<vmem>>, vector<32x128xf32>,
    %213 = vector.extract_strided_slice %210 {offsets = [0, 129], sizes = [32, 128], strides = [1, 1]} : vector<32x270xf32> to vector<32x128xf32>
    %c32_174 = arith.constant 32 : index
    %c0_175 = arith.constant 0 : index
    %214 = vector.load %arg22[%c32_174, %c0_175] : memref<480x128xf32, #tpu.memory_space<vmem>>, vector<32x128xf32>
    tpu.vector_store %arg22[%c32_174, %c0_175], %213 {strides = array<i32>} : memref<480x128xf32, #tpu.memory_space<vmem>>, vector<32x128xf32>,
    %215 = vector.extract_strided_slice %210 {offsets = [0, 130], sizes = [32, 128], strides = [1, 1]} : vector<32x270xf32> to vector<32x128xf32>
    %c64_176 = arith.constant 64 : index
    %c0_177 = arith.constant 0 : index
    %216 = vector.load %arg22[%c64_176, %c0_177] : memref<480x128xf32, #tpu.memory_space<vmem>>, vector<32x128xf32>
    tpu.vector_store %arg22[%c64_176, %c0_177], %215 {strides = array<i32>} : memref<480x128xf32, #tpu.memory_space<vmem>>, vector<32x128xf32>,
    %217 = vector.extract_strided_slice %210 {offsets = [0, 131], sizes = [32, 128], strides = [1, 1]} : vector<32x270xf32> to vector<32x128xf32>
    %c96_178 = arith.constant 96 : index
    %c0_179 = arith.constant 0 : index
    %218 = vector.load %arg22[%c96_178, %c0_179] : memref<480x128xf32, #tpu.memory_space<vmem>>, vector<32x128xf32>
    tpu.vector_store %arg22[%c96_178, %c0_179], %217 {strides = array<i32>} : memref<480x128xf32, #tpu.memory_space<vmem>>, vector<32x128xf32>,
    %219 = vector.extract_strided_slice %210 {offsets = [0, 132], sizes = [32, 128], strides = [1, 1]} : vector<32x270xf32> to vector<32x128xf32>
    %c128_180 = arith.constant 128 : index
    %c0_181 = arith.constant 0 : index
    %220 = vector.load %arg22[%c128_180, %c0_181] : memref<480x128xf32, #tpu.memory_space<vmem>>, vector<32x128xf32>
    tpu.vector_store %arg22[%c128_180, %c0_181], %219 {strides = array<i32>} : memref<480x128xf32, #tpu.memory_space<vmem>>, vector<32x128xf32>,
    %221 = vector.extract_strided_slice %210 {offsets = [0, 133], sizes = [32, 128], strides = [1, 1]} : vector<32x270xf32> to vector<32x128xf32>
    %c160_182 = arith.constant 160 : index
    %c0_183 = arith.constant 0 : index
    %222 = vector.load %arg22[%c160_182, %c0_183] : memref<480x128xf32, #tpu.memory_space<vmem>>, vector<32x128xf32>
    tpu.vector_store %arg22[%c160_182, %c0_183], %221 {strides = array<i32>} : memref<480x128xf32, #tpu.memory_space<vmem>>, vector<32x128xf32>,
    %223 = vector.extract_strided_slice %210 {offsets = [0, 134], sizes = [32, 128], strides = [1, 1]} : vector<32x270xf32> to vector<32x128xf32>
    %c192_184 = arith.constant 192 : index
    %c0_185 = arith.constant 0 : index
    %224 = vector.load %arg22[%c192_184, %c0_185] : memref<480x128xf32, #tpu.memory_space<vmem>>, vector<32x128xf32>
    tpu.vector_store %arg22[%c192_184, %c0_185], %223 {strides = array<i32>} : memref<480x128xf32, #tpu.memory_space<vmem>>, vector<32x128xf32>,
    %225 = vector.extract_strided_slice %210 {offsets = [0, 135], sizes = [32, 128], strides = [1, 1]} : vector<32x270xf32> to vector<32x128xf32>
    %c224_186 = arith.constant 224 : index
    %c0_187 = arith.constant 0 : index
    %226 = vector.load %arg22[%c224_186, %c0_187] : memref<480x128xf32, #tpu.memory_space<vmem>>, vector<32x128xf32>
    tpu.vector_store %arg22[%c224_186, %c0_187], %225 {strides = array<i32>} : memref<480x128xf32, #tpu.memory_space<vmem>>, vector<32x128xf32>,
    %227 = vector.extract_strided_slice %210 {offsets = [0, 136], sizes = [32, 128], strides = [1, 1]} : vector<32x270xf32> to vector<32x128xf32>
    %c256_188 = arith.constant 256 : index
    %c0_189 = arith.constant 0 : index
    %228 = vector.load %arg22[%c256_188, %c0_189] : memref<480x128xf32, #tpu.memory_space<vmem>>, vector<32x128xf32>
    tpu.vector_store %arg22[%c256_188, %c0_189], %227 {strides = array<i32>} : memref<480x128xf32, #tpu.memory_space<vmem>>, vector<32x128xf32>,
    %229 = vector.extract_strided_slice %210 {offsets = [0, 137], sizes = [32, 128], strides = [1, 1]} : vector<32x270xf32> to vector<32x128xf32>
    %c288_190 = arith.constant 288 : index
    %c0_191 = arith.constant 0 : index
    %230 = vector.load %arg22[%c288_190, %c0_191] : memref<480x128xf32, #tpu.memory_space<vmem>>, vector<32x128xf32>
    tpu.vector_store %arg22[%c288_190, %c0_191], %229 {strides = array<i32>} : memref<480x128xf32, #tpu.memory_space<vmem>>, vector<32x128xf32>,
    %231 = vector.extract_strided_slice %210 {offsets = [0, 138], sizes = [32, 128], strides = [1, 1]} : vector<32x270xf32> to vector<32x128xf32>
    %c320_192 = arith.constant 320 : index
    %c0_193 = arith.constant 0 : index
    %232 = vector.load %arg22[%c320_192, %c0_193] : memref<480x128xf32, #tpu.memory_space<vmem>>, vector<32x128xf32>
    tpu.vector_store %arg22[%c320_192, %c0_193], %231 {strides = array<i32>} : memref<480x128xf32, #tpu.memory_space<vmem>>, vector<32x128xf32>,
    %233 = vector.extract_strided_slice %210 {offsets = [0, 139], sizes = [32, 128], strides = [1, 1]} : vector<32x270xf32> to vector<32x128xf32>
    %c352_194 = arith.constant 352 : index
    %c0_195 = arith.constant 0 : index
    %234 = vector.load %arg22[%c352_194, %c0_195] : memref<480x128xf32, #tpu.memory_space<vmem>>, vector<32x128xf32>
    tpu.vector_store %arg22[%c352_194, %c0_195], %233 {strides = array<i32>} : memref<480x128xf32, #tpu.memory_space<vmem>>, vector<32x128xf32>,
    %235 = vector.extract_strided_slice %210 {offsets = [0, 140], sizes = [32, 128], strides = [1, 1]} : vector<32x270xf32> to vector<32x128xf32>
    %c384_196 = arith.constant 384 : index
    %c0_197 = arith.constant 0 : index
    %236 = vector.load %arg22[%c384_196, %c0_197] : memref<480x128xf32, #tpu.memory_space<vmem>>, vector<32x128xf32>
    tpu.vector_store %arg22[%c384_196, %c0_197], %235 {strides = array<i32>} : memref<480x128xf32, #tpu.memory_space<vmem>>, vector<32x128xf32>,
    %237 = vector.extract_strided_slice %210 {offsets = [0, 141], sizes = [32, 128], strides = [1, 1]} : vector<32x270xf32> to vector<32x128xf32>
    %c416_198 = arith.constant 416 : index
    %c0_199 = arith.constant 0 : index
    %238 = vector.load %arg22[%c416_198, %c0_199] : memref<480x128xf32, #tpu.memory_space<vmem>>, vector<32x128xf32>
    tpu.vector_store %arg22[%c416_198, %c0_199], %237 {strides = array<i32>} : memref<480x128xf32, #tpu.memory_space<vmem>>, vector<32x128xf32>,
    %239 = vector.extract_strided_slice %210 {offsets = [0, 142], sizes = [32, 128], strides = [1, 1]} : vector<32x270xf32> to vector<32x128xf32>
    %c448_200 = arith.constant 448 : index
    %c0_201 = arith.constant 0 : index
    %240 = vector.load %arg22[%c448_200, %c0_201] : memref<480x128xf32, #tpu.memory_space<vmem>>, vector<32x128xf32>
    tpu.vector_store %arg22[%c448_200, %c0_201], %239 {strides = array<i32>} : memref<480x128xf32, #tpu.memory_space<vmem>>, vector<32x128xf32>,
    %c0_202 = arith.constant 0 : index
    %c0_203 = arith.constant 0 : index
    %241 = vector.load %arg22[%c0_202, %c0_203] : memref<480x128xf32, #tpu.memory_space<vmem>>, vector<480x128xf32>
    %242 = arith.truncf %241 : vector<480x128xf32> to vector<480x128xbf16>
    %cst_204 = arith.constant dense<0.000000e+00> : vector<1x128xf32>
    %243 = tpu.matmul %5, %242, %cst_204 {dimension_numbers = #tpu.dot_dimension_numbers<[1], [0], [0], [1], [0, 0, 1, 1], [], []>} : vector<1x480xbf16>, vector<480x128xbf16>, vector<1x128xf32> -> vector<1x128xf32>
    %244 = vector.broadcast %7 : vector<1x1xf32> to vector<1x128xf32>
    %245 = arith.addf %243, %244 : vector<1x128xf32>
    %c106_i32_205 = arith.constant 106 : i32
    %246 = vector.broadcast %c106_i32_205 : i32 to vector<1x128xi32>
    %247 = arith.cmpi slt, %1, %246 : vector<1x128xi32>
    %cst_206 = arith.constant -1.000000e+30 : f32
    %248 = vector.broadcast %cst_206 : f32 to vector<1x128xf32>
    %249 = arith.select %247, %245, %248 : vector<1x128xi1>, vector<1x128xf32>
    %cst_207 = arith.constant dense<0xFF800000> : vector<1xf32>
    %250 = vector.multi_reduction <maximumf>, %249, %cst_207 [1] : vector<1x128xf32> to vector<1xf32>
    %251 = vector.shape_cast %250 : vector<1xf32> to vector<1x1xf32>
    %252 = vector.broadcast %251 : vector<1x1xf32> to vector<1x128xf32>
    %253 = arith.subf %249, %252 : vector<1x128xf32>
    %254 = math.exp %253 : vector<1x128xf32>
    %cst_208 = arith.constant dense<0.000000e+00> : vector<1xf32>
    %255 = vector.multi_reduction <add>, %254, %cst_208 [1] : vector<1x128xf32> to vector<1xf32>
    %256 = vector.shape_cast %255 : vector<1xf32> to vector<1x1xf32>
    %257 = tpu.reciprocal %256 {approx = true} : vector<1x1xf32> -> vector<1x1xf32>
    %258 = vector.broadcast %257 : vector<1x1xf32> to vector<1x128xf32>
    %259 = arith.mulf %254, %258 : vector<1x128xf32>
    %c0_209 = arith.constant 0 : index
    %c1_210 = arith.constant 1 : index
    %c0_211 = arith.constant 0 : index
    %c0_212 = arith.constant 0 : index
    %260 = vector.load %arg17[%c0_209, %c1_210, %c0_211, %c0_212] : memref<1x2x1x128xf32, #tpu.memory_space<vmem>>, vector<1x1x1x128xf32>
    %261 = vector.shape_cast %260 : vector<1x1x1x128xf32> to vector<1x128xf32>
    %262 = vector.shape_cast %259 : vector<1x128xf32> to vector<1x1x1x128xf32>
    tpu.vector_store %arg17[%c0_209, %c1_210, %c0_211, %c0_212], %262 {strides = array<i32>} : memref<1x2x1x128xf32, #tpu.memory_space<vmem>>, vector<1x1x1x128xf32>,
    %cst_213 = arith.constant dense<0.000000e+00> : vector<32xf32>
    %263 = vector.multi_reduction <add>, %208, %cst_213 [1] : vector<32x120xf32> to vector<32xf32>
    %264 = vector.shape_cast %263 : vector<32xf32> to vector<32x1xf32>
    %cst_214 = arith.constant 1.200000e+02 : f32
    %265 = vector.broadcast %cst_214 : f32 to vector<32x1xf32>
    %266 = arith.divf %264, %265 : vector<32x1xf32>
    %c1_i32 = arith.constant 1 : i32
    %267 = vector.broadcast %c1_i32 : i32 to vector<1x2xi32>
    %268 = arith.cmpi eq, %0, %267 : vector<1x2xi32>
    %269 = arith.extui %268 : vector<1x2xi1> to vector<1x2xi32>
    %270 = arith.sitofp %269 : vector<1x2xi32> to vector<1x2xf32>
    %271 = vector.broadcast %266 : vector<32x1xf32> to vector<32x2xf32>
    %272 = vector.broadcast %270 : vector<1x2xf32> to vector<32x2xf32>
    %273 = arith.mulf %271, %272 : vector<32x2xf32>
    %274 = arith.addf %141, %273 : vector<32x2xf32>
    %c0_215 = arith.constant 0 : index
    %c0_216 = arith.constant 0 : index
    %c0_217 = arith.constant 0 : index
    %275 = vector.load %arg11[%c0_215, %c0_216, %c0_217] : memref<1x32x32xbf16, #tpu.memory_space<vmem>>, vector<1x32x32xbf16>
    %276 = vector.shape_cast %275 : vector<1x32x32xbf16> to vector<32x32xbf16>
    %277 = arith.truncf %274 : vector<32x2xf32> to vector<32x2xbf16>
    %cst_218 = arith.constant dense<0.000000e+00> : vector<32x2xf32>
    %278 = tpu.matmul %276, %277, %cst_218 {dimension_numbers = #tpu.dot_dimension_numbers<[1], [0], [0], [1], [0, 0, 1, 1], [], []>} : vector<32x32xbf16>, vector<32x2xbf16>, vector<32x2xf32> -> vector<32x2xf32>
    %c0_219 = arith.constant 0 : index
    %c0_220 = arith.constant 0 : index
    %c0_221 = arith.constant 0 : index
    %279 = vector.load %arg12[%c0_219, %c0_220, %c0_221] : memref<1x32x1xf32, #tpu.memory_space<vmem>>, vector<1x32x1xf32>
    %280 = vector.shape_cast %279 : vector<1x32x1xf32> to vector<32x1xf32>
    %281 = vector.broadcast %280 : vector<32x1xf32> to vector<32x2xf32>
    %282 = arith.addf %278, %281 : vector<32x2xf32>
    %cst_222 = arith.constant 0.000000e+00 : f32
    %283 = vector.broadcast %cst_222 : f32 to vector<32x2xf32>
    %284 = arith.maximumf %282, %283 : vector<32x2xf32>
    %c0_223 = arith.constant 0 : index
    %c0_224 = arith.constant 0 : index
    %c0_225 = arith.constant 0 : index
    %285 = vector.load %arg13[%c0_223, %c0_224, %c0_225] : memref<1x32x32xbf16, #tpu.memory_space<vmem>>, vector<1x32x32xbf16>
    %286 = vector.shape_cast %285 : vector<1x32x32xbf16> to vector<32x32xbf16>
    %287 = arith.truncf %284 : vector<32x2xf32> to vector<32x2xbf16>
    %cst_226 = arith.constant dense<0.000000e+00> : vector<32x2xf32>
    %288 = tpu.matmul %286, %287, %cst_226 {dimension_numbers = #tpu.dot_dimension_numbers<[1], [0], [0], [1], [0, 0, 1, 1], [], []>} : vector<32x32xbf16>, vector<32x2xbf16>, vector<32x2xf32> -> vector<32x2xf32>
    %c0_227 = arith.constant 0 : index
    %c0_228 = arith.constant 0 : index
    %c0_229 = arith.constant 0 : index
    %289 = vector.load %arg14[%c0_227, %c0_228, %c0_229] : memref<1x32x1xf32, #tpu.memory_space<vmem>>, vector<1x32x1xf32>
    %290 = vector.shape_cast %289 : vector<1x32x1xf32> to vector<32x1xf32>
    %291 = vector.broadcast %290 : vector<32x1xf32> to vector<32x2xf32>
    %292 = arith.addf %288, %291 : vector<32x2xf32>
    %cst_230 = arith.constant 0.000000e+00 : f32
    %293 = vector.broadcast %cst_230 : f32 to vector<32x2xf32>
    %294 = arith.maximumf %292, %293 : vector<32x2xf32>
    %c0_231 = arith.constant 0 : index
    %c0_232 = arith.constant 0 : index
    %c0_233 = arith.constant 0 : index
    %295 = vector.load %arg15[%c0_231, %c0_232, %c0_233] : memref<1x1x32xbf16, #tpu.memory_space<vmem>>, vector<1x1x32xbf16>
    %296 = vector.shape_cast %295 : vector<1x1x32xbf16> to vector<1x32xbf16>
    %297 = arith.truncf %294 : vector<32x2xf32> to vector<32x2xbf16>
    %cst_234 = arith.constant dense<0.000000e+00> : vector<1x2xf32>
    %298 = tpu.matmul %296, %297, %cst_234 {dimension_numbers = #tpu.dot_dimension_numbers<[1], [0], [0], [1], [0, 0, 1, 1], [], []>} : vector<1x32xbf16>, vector<32x2xbf16>, vector<1x2xf32> -> vector<1x2xf32>
    %c0_235 = arith.constant 0 : index
    %c0_236 = arith.constant 0 : index
    %c0_237 = arith.constant 0 : index
    %299 = vector.load %arg16[%c0_235, %c0_236, %c0_237] : memref<1x1x1xf32, #tpu.memory_space<vmem>>, vector<1x1x1xf32>
    %300 = vector.shape_cast %299 : vector<1x1x1xf32> to vector<1x1xf32>
    %301 = vector.broadcast %300 : vector<1x1xf32> to vector<1x2xf32>
    %302 = arith.addf %298, %301 : vector<1x2xf32>
    %cst_238 = arith.constant 0.000000e+00 : f32
    %303 = vector.broadcast %cst_238 : f32 to vector<1x2xf32>
    %304 = arith.maximumf %302, %303 : vector<1x2xf32>
    %305 = math.absf %302 : vector<1x2xf32>
    %cst_239 = arith.constant 0.000000e+00 : f32
    %306 = vector.broadcast %cst_239 : f32 to vector<1x2xf32>
    %307 = arith.subf %306, %305 : vector<1x2xf32>
    %308 = math.exp %307 : vector<1x2xf32>
    %309 = math.log1p %308 : vector<1x2xf32>
    %310 = arith.addf %304, %309 : vector<1x2xf32>
    %c0_240 = arith.constant 0 : index
    %c0_241 = arith.constant 0 : index
    %c0_242 = arith.constant 0 : index
    %311 = vector.load %arg18[%c0_240, %c0_241, %c0_242] : memref<1x1x2xf32, #tpu.memory_space<vmem>>, vector<1x1x2xf32>
    %312 = vector.shape_cast %311 : vector<1x1x2xf32> to vector<1x2xf32>
    %313 = vector.shape_cast %310 : vector<1x2xf32> to vector<1x1x2xf32>
    tpu.vector_store %arg18[%c0_240, %c0_241, %c0_242], %313 {strides = array<i32>} : memref<1x1x2xf32, #tpu.memory_space<vmem>>, vector<1x1x2xf32>,
    return
  }
  func.func @transform_0(%arg0: i32) -> (i32, i32, i32) {
    %c0_i32 = arith.constant 0 : i32
    %c0_i32_0 = arith.constant 0 : i32
    %c0_i32_1 = arith.constant 0 : i32
    %c0_i32_2 = arith.constant 0 : i32
    return %c0_i32, %c0_i32_0, %c0_i32_1 : i32, i32, i32
  }
  func.func @transform_1(%arg0: i32) -> (i32, i32, i32) {
    %c0_i32 = arith.constant 0 : i32
    %c0_i32_0 = arith.constant 0 : i32
    %c0_i32_1 = arith.constant 0 : i32
    return %arg0, %c0_i32, %c0_i32_0 : i32, i32, i32
  }
  func.func @transform_2(%arg0: i32) -> (i32, i32) {
    %c0_i32 = arith.constant 0 : i32
    %c0_i32_0 = arith.constant 0 : i32
    %c0_i32_1 = arith.constant 0 : i32
    return %c0_i32, %c0_i32_0 : i32, i32
  }
  func.func @transform_3(%arg0: i32) -> (i32, i32) {
    %c0_i32 = arith.constant 0 : i32
    %c0_i32_0 = arith.constant 0 : i32
    %c0_i32_1 = arith.constant 0 : i32
    return %c0_i32, %c0_i32_0 : i32, i32
  }
  func.func @transform_4(%arg0: i32) -> (i32, i32, i32) {
    %c0_i32 = arith.constant 0 : i32
    %c0_i32_0 = arith.constant 0 : i32
    %c0_i32_1 = arith.constant 0 : i32
    return %arg0, %c0_i32, %c0_i32_0 : i32, i32, i32
  }
  func.func @transform_5(%arg0: i32) -> (i32, i32, i32) {
    %c0_i32 = arith.constant 0 : i32
    %c0_i32_0 = arith.constant 0 : i32
    %c0_i32_1 = arith.constant 0 : i32
    return %arg0, %c0_i32, %c0_i32_0 : i32, i32, i32
  }
  func.func @transform_6(%arg0: i32) -> (i32, i32, i32) {
    %c0_i32 = arith.constant 0 : i32
    %c0_i32_0 = arith.constant 0 : i32
    %c0_i32_1 = arith.constant 0 : i32
    return %arg0, %c0_i32, %c0_i32_0 : i32, i32, i32
  }
  func.func @transform_7(%arg0: i32) -> (i32, i32, i32) {
    %c0_i32 = arith.constant 0 : i32
    %c0_i32_0 = arith.constant 0 : i32
    %c0_i32_1 = arith.constant 0 : i32
    return %arg0, %c0_i32, %c0_i32_0 : i32, i32, i32
  }
  func.func @transform_8(%arg0: i32) -> (i32, i32, i32) {
    %c0_i32 = arith.constant 0 : i32
    %c0_i32_0 = arith.constant 0 : i32
    %c0_i32_1 = arith.constant 0 : i32
    return %arg0, %c0_i32, %c0_i32_0 : i32, i32, i32
  }
  func.func @transform_9(%arg0: i32) -> (i32, i32, i32) {
    %c0_i32 = arith.constant 0 : i32
    %c0_i32_0 = arith.constant 0 : i32
    %c0_i32_1 = arith.constant 0 : i32
    return %arg0, %c0_i32, %c0_i32_0 : i32, i32, i32
  }
  func.func @transform_10(%arg0: i32) -> (i32, i32, i32) {
    %c0_i32 = arith.constant 0 : i32
    %c0_i32_0 = arith.constant 0 : i32
    %c0_i32_1 = arith.constant 0 : i32
    return %arg0, %c0_i32, %c0_i32_0 : i32, i32, i32
  }
  func.func @transform_11(%arg0: i32) -> (i32, i32, i32) {
    %c0_i32 = arith.constant 0 : i32
    %c0_i32_0 = arith.constant 0 : i32
    %c0_i32_1 = arith.constant 0 : i32
    return %arg0, %c0_i32, %c0_i32_0 : i32, i32, i32
  }
  func.func @transform_12(%arg0: i32) -> (i32, i32, i32) {
    %c0_i32 = arith.constant 0 : i32
    %c0_i32_0 = arith.constant 0 : i32
    %c0_i32_1 = arith.constant 0 : i32
    return %arg0, %c0_i32, %c0_i32_0 : i32, i32, i32
  }
  func.func @transform_13(%arg0: i32) -> (i32, i32, i32) {
    %c0_i32 = arith.constant 0 : i32
    %c0_i32_0 = arith.constant 0 : i32
    %c0_i32_1 = arith.constant 0 : i32
    return %arg0, %c0_i32, %c0_i32_0 : i32, i32, i32
  }
  func.func @transform_14(%arg0: i32) -> (i32, i32, i32) {
    %c0_i32 = arith.constant 0 : i32
    %c0_i32_0 = arith.constant 0 : i32
    %c0_i32_1 = arith.constant 0 : i32
    return %arg0, %c0_i32, %c0_i32_0 : i32, i32, i32
  }
  func.func @transform_15(%arg0: i32) -> (i32, i32, i32) {
    %c0_i32 = arith.constant 0 : i32
    %c0_i32_0 = arith.constant 0 : i32
    %c0_i32_1 = arith.constant 0 : i32
    return %arg0, %c0_i32, %c0_i32_0 : i32, i32, i32
  }
  func.func @transform_16(%arg0: i32) -> (i32, i32, i32, i32) {
    %c0_i32 = arith.constant 0 : i32
    %c0_i32_0 = arith.constant 0 : i32
    %c0_i32_1 = arith.constant 0 : i32
    %c0_i32_2 = arith.constant 0 : i32
    return %arg0, %c0_i32, %c0_i32_0, %c0_i32_1 : i32, i32, i32, i32
  }
  func.func @transform_17(%arg0: i32) -> (i32, i32, i32) {
    %c0_i32 = arith.constant 0 : i32
    %c0_i32_0 = arith.constant 0 : i32
    %c0_i32_1 = arith.constant 0 : i32
    return %arg0, %c0_i32, %c0_i32_0 : i32, i32, i32
  }
}

</mosaic_0001>

<llo_original>
// kernel: seq_only_regressor_forward.1
$region0: #{seq_only_regressor_forward.1}
  #allocation0 [shape = 'u32[]', space=smem, size = 0x4, offset = 0x4, fixed_abs, tag = 'smem constant byte address 0x4 - core index']
  #allocation1 [shape = 'u32[144,128]{1,0:T(1,128)}', space=vmem, size = 0x12000, scoped, tag = 'internal scratch']
  #allocation2 [shape = 'f32[72,120]{1,0:T(8,128)}', space=vmem, size = 0x9000, scoped, tag = 'scratch operand']
  #allocation3 [shape = 'f32[32,270]{1,0:T(8,128)}', space=vmem, size = 0xc000, scoped, tag = 'scratch operand']
  #allocation4 [shape = 'f32[96,120]{1,0:T(8,128)}', space=vmem, size = 0xc000, scoped, tag = 'scratch operand']
  #allocation5 [shape = 'f32[480,128]{1,0:T(8,128)}', space=vmem, size = 0x3c000, scoped, tag = 'scratch operand']
  %s0 = inlined_call_operand.vmem [shape: f32[2,8,128], index: 0, kind: input, shape index: {}]
  %s1 = inlined_call_operand.vmem [shape: f32[2,2,1], index: 1, kind: input, shape index: {}]
  %s2 = inlined_call_operand.vmem [shape: bf16[32,72], index: 2, kind: input, shape index: {}]
  %s3 = inlined_call_operand.vmem [shape: f32[32,1], index: 3, kind: input, shape index: {}]
  %s4 = inlined_call_operand.vmem [shape: bf16[2,32,96], index: 4, kind: input, shape index: {}]
  %s5 = inlined_call_operand.vmem [shape: f32[2,32,1], index: 5, kind: input, shape index: {}]
  %s6 = inlined_call_operand.vmem [shape: bf16[2,32,96], index: 6, kind: input, shape index: {}]
  %s7 = inlined_call_operand.vmem [shape: f32[2,32,1], index: 7, kind: input, shape index: {}]
  %s8 = inlined_call_operand.vmem [shape: bf16[2,1,480], index: 8, kind: input, shape index: {}]
  %s9 = inlined_call_operand.vmem [shape: f32[2,1,1], index: 9, kind: input, shape index: {}]
  %s10 = inlined_call_operand.vmem [shape: bf16[2,32,32], index: 10, kind: input, shape index: {}]
  %s11 = inlined_call_operand.vmem [shape: f32[2,32,1], index: 11, kind: input, shape index: {}]
  %s12 = inlined_call_operand.vmem [shape: bf16[2,32,32], index: 12, kind: input, shape index: {}]
  %s13 = inlined_call_operand.vmem [shape: f32[2,32,1], index: 13, kind: input, shape index: {}]
  %s14 = inlined_call_operand.vmem [shape: bf16[2,1,32], index: 14, kind: input, shape index: {}]
  %s15 = inlined_call_operand.vmem [shape: f32[2,1,1], index: 15, kind: input, shape index: {}]
  %s16 = inlined_call_operand.vmem [shape: f32[2,2,1,128], index: 16, kind: output, shape index: {0}]
  %s17 = inlined_call_operand.vmem [shape: f32[2,1,2], index: 17, kind: output, shape index: {1}]
  %18 = xla_tuple %s16, %s17
  %s19 = sld [smem:[#allocation0]]
  $region105: #{seq_only_regressor_forward.1} parent=0
    _
  %s21 = ssub.s32 1, %s19
  %s22 = scalar_select 0, %s21, %s19
  loop: start=0, step=1, limit=4
  $region2: #{seq_only_regressor_forward.1} parent=0 // loop_pre_header
    _
  $region3: #{seq_only_regressor_forward.1} parent=0 // loop_header
    %s24 = sphi 0, %s28
    %p25 = scmp.ge.s32.totalorder %s24, 4
    %s32 = sphi 0, %s32
    %s34 = sphi 0, %s32
    %s35 = sphi 0, %s34
    %s49 = sphi 0, %s35
    %s55 = sphi 0, %s57
    %s58 = sphi 0, %s55
    %s59 = sphi 0, %s58
    %s75 = sphi 0, %s59
    %s79 = sphi 0, %s79
    %s81 = sphi 0, %s79
    %s82 = sphi 0, %s81
    %s96 = sphi 0, %s82
    %s100 = sphi 0, %s100
    %s102 = sphi 0, %s100
    %s103 = sphi 0, %s102
    %s117 = sphi 0, %s103
    %s123 = sphi 0, %s125
    %s126 = sphi 0, %s123
    %s127 = sphi 0, %s126
    %s143 = sphi 0, %s127
    %s149 = sphi 0, %s151
    %s152 = sphi 0, %s149
    %s153 = sphi 0, %s152
    %s169 = sphi 0, %s153
    %s175 = sphi 0, %s177
    %s178 = sphi 0, %s175
    %s179 = sphi 0, %s178
    %s195 = sphi 0, %s179
    %s201 = sphi 0, %s203
    %s204 = sphi 0, %s201
    %s205 = sphi 0, %s204
    %s221 = sphi 0, %s205
    %s227 = sphi 0, %s229
    %s230 = sphi 0, %s227
    %s231 = sphi 0, %s230
    %s247 = sphi 0, %s231
    %s253 = sphi 0, %s255
    %s256 = sphi 0, %s253
    %s257 = sphi 0, %s256
    %s273 = sphi 0, %s257
    %s279 = sphi 0, %s281
    %s282 = sphi 0, %s279
    %s283 = sphi 0, %s282
    %s299 = sphi 0, %s283
    %s305 = sphi 0, %s307
    %s308 = sphi 0, %s305
    %s309 = sphi 0, %s308
    %s325 = sphi 0, %s309
    %s331 = sphi 0, %s333
    %s334 = sphi 0, %s331
    %s335 = sphi 0, %s334
    %s351 = sphi 0, %s335
    %s357 = sphi 0, %s359
    %s360 = sphi 0, %s357
    %s361 = sphi 0, %s360
    %s377 = sphi 0, %s361
    %s383 = sphi 0, %s385
    %s386 = sphi 0, %s383
    %s387 = sphi 0, %s386
    %s403 = sphi 0, %s387
    %s409 = sphi 0, %s411
    %s412 = sphi 0, %s409
    %s413 = sphi 0, %s412
    %s429 = sphi 0, %s413
    %s435 = sphi 0, %s437
    %s438 = sphi 0, %s435
    %s439 = sphi 0, %s438
    %s455 = sphi 0, %s439
    %s461 = sphi 0, %s463
    %s464 = sphi 0, %s461
    %s465 = sphi 0, %s464
    %s481 = sphi 0, %s465
  $region4: #{seq_only_regressor_forward.1} parent=0 // loop_header_branch
    %27 = sbr.rel (%p25) target = $region8
  $region5: #{seq_only_regressor_forward.1} parent=0 // loop_body
    %s29 = ssub.s32 %s24, 1
    %s30 = ssub.s32 %s24, 2
    %s31 = sadd.s32 %s24, 1
    %s33 = sadd.s32 %s32, 1
    %p36 = scmp.eq.s32.totalorder %s24, 1
    %p37 = scmp.ne.s32.totalorder %s32, %s34
    %p38 = scmp.eq.s32.totalorder %s24, 0
    %p39 = por %p37, %p38
    %p40 = scmp.ne.s32.totalorder %s32, %s34
    %p41 = scmp.eq.s32.totalorder %s29, 1
    %p42 = por %p40, %p41
    %p43 = scmp.ne.s32.totalorder %s34, %s35
    %p44 = scmp.eq.s32.totalorder %s29, 0
    %p45 = por %p43, %p44
    %p46 = scmp.ne.s32.totalorder %s34, %s35
    %p47 = scmp.eq.s32.totalorder %s30, 1
    %p48 = por %p46, %p47
    %p50 = scmp.ne.s32.totalorder %s35, %s49
    %p51 = scmp.eq.s32.totalorder %s30, 0
    %p52 = por %p50, %p51
    %s53 = ssub.s32 %s24, %s31
    %p54 = scmp.eq.s32.totalorder %s53, 0
    %s56 = sadd.s32 %s55, 1
    %s57 = scalar_select %p54, %s55, %s56
    %p60 = pneg %p54
    %p61 = scmp.eq.s32.totalorder %s24, 1
    %p62 = por %p60, %p61
    %p63 = scmp.ne.s32.totalorder %s55, %s58
    %p64 = scmp.eq.s32.totalorder %s24, 0
    %p65 = por %p63, %p64
    %p66 = scmp.ne.s32.totalorder %s55, %s58
    %p67 = scmp.eq.s32.totalorder %s29, 1
    %p68 = por %p66, %p67
    %p69 = scmp.ne.s32.totalorder %s58, %s59
    %p70 = scmp.eq.s32.totalorder %s29, 0
    %p71 = por %p69, %p70
    %p72 = scmp.ne.s32.totalorder %s58, %s59
    %p73 = scmp.eq.s32.totalorder %s30, 1
    %p74 = por %p72, %p73
    %p76 = scmp.ne.s32.totalorder %s59, %s75
    %p77 = scmp.eq.s32.totalorder %s30, 0
    %p78 = por %p76, %p77
    %s80 = sadd.s32 %s79, 1
    %p83 = scmp.eq.s32.totalorder %s24, 1
    %p84 = scmp.ne.s32.totalorder %s79, %s81
    %p85 = scmp.eq.s32.totalorder %s24, 0
    %p86 = por %p84, %p85
    %p87 = scmp.ne.s32.totalorder %s79, %s81
    %p88 = scmp.eq.s32.totalorder %s29, 1
    %p89 = por %p87, %p88
    %p90 = scmp.ne.s32.totalorder %s81, %s82
    %p91 = scmp.eq.s32.totalorder %s29, 0
    %p92 = por %p90, %p91
    %p93 = scmp.ne.s32.totalorder %s81, %s82
    %p94 = scmp.eq.s32.totalorder %s30, 1
    %p95 = por %p93, %p94
    %p97 = scmp.ne.s32.totalorder %s82, %s96
    %p98 = scmp.eq.s32.totalorder %s30, 0
    %p99 = por %p97, %p98
    %s101 = sadd.s32 %s100, 1
    %p104 = scmp.eq.s32.totalorder %s24, 1
    %p105 = scmp.ne.s32.totalorder %s100, %s102
    %p106 = scmp.eq.s32.totalorder %s24, 0
    %p107 = por %p105, %p106
    %p108 = scmp.ne.s32.totalorder %s100, %s102
    %p109 = scmp.eq.s32.totalorder %s29, 1
    %p110 = por %p108, %p109
    %p111 = scmp.ne.s32.totalorder %s102, %s103
    %p112 = scmp.eq.s32.totalorder %s29, 0
    %p113 = por %p111, %p112
    %p114 = scmp.ne.s32.totalorder %s102, %s103
    %p115 = scmp.eq.s32.totalorder %s30, 1
    %p116 = por %p114, %p115
    %p118 = scmp.ne.s32.totalorder %s103, %s117
    %p119 = scmp.eq.s32.totalorder %s30, 0
    %p120 = por %p118, %p119
    %s121 = ssub.s32 %s24, %s31
    %p122 = scmp.eq.s32.totalorder %s121, 0
    %s124 = sadd.s32 %s123, 1
    %s125 = scalar_select %p122, %s123, %s124
    %p128 = pneg %p122
    %p129 = scmp.eq.s32.totalorder %s24, 1
    %p130 = por %p128, %p129
    %p131 = scmp.ne.s32.totalorder %s123, %s126
    %p132 = scmp.eq.s32.totalorder %s24, 0
    %p133 = por %p131, %p132
    %p134 = scmp.ne.s32.totalorder %s123, %s126
    %p135 = scmp.eq.s32.totalorder %s29, 1
    %p136 = por %p134, %p135
    %p137 = scmp.ne.s32.totalorder %s126, %s127
    %p138 = scmp.eq.s32.totalorder %s29, 0
    %p139 = por %p137, %p138
    %p140 = scmp.ne.s32.totalorder %s126, %s127
    %p141 = scmp.eq.s32.totalorder %s30, 1
    %p142 = por %p140, %p141
    %p144 = scmp.ne.s32.totalorder %s127, %s143
    %p145 = scmp.eq.s32.totalorder %s30, 0
    %p146 = por %p144, %p145
    %s147 = ssub.s32 %s24, %s31
    %p148 = scmp.eq.s32.totalorder %s147, 0
    %s150 = sadd.s32 %s149, 1
    %s151 = scalar_select %p148, %s149, %s150
    %p154 = pneg %p148
    %p155 = scmp.eq.s32.totalorder %s24, 1
    %p156 = por %p154, %p155
    %p157 = scmp.ne.s32.totalorder %s149, %s152
    %p158 = scmp.eq.s32.totalorder %s24, 0
    %p159 = por %p157, %p158
    %p160 = scmp.ne.s32.totalorder %s149, %s152
    %p161 = scmp.eq.s32.totalorder %s29, 1
    %p162 = por %p160, %p161
    %p163 = scmp.ne.s32.totalorder %s152, %s153
    %p164 = scmp.eq.s32.totalorder %s29, 0
    %p165 = por %p163, %p164
    %p166 = scmp.ne.s32.totalorder %s152, %s153
    %p167 = scmp.eq.s32.totalorder %s30, 1
    %p168 = por %p166, %p167
    %p170 = scmp.ne.s32.totalorder %s153, %s169
    %p171 = scmp.eq.s32.totalorder %s30, 0
    %p172 = por %p170, %p171
    %s173 = ssub.s32 %s24, %s31
    %p174 = scmp.eq.s32.totalorder %s173, 0
    %s176 = sadd.s32 %s175, 1
    %s177 = scalar_select %p174, %s175, %s176
    %p180 = pneg %p174
    %p181 = scmp.eq.s32.totalorder %s24, 1
    %p182 = por %p180, %p181
    %p183 = scmp.ne.s32.totalorder %s175, %s178
    %p184 = scmp.eq.s32.totalorder %s24, 0
    %p185 = por %p183, %p184
    %p186 = scmp.ne.s32.totalorder %s175, %s178
    %p187 = scmp.eq.s32.totalorder %s29, 1
    %p188 = por %p186, %p187
    %p189 = scmp.ne.s32.totalorder %s178, %s179
    %p190 = scmp.eq.s32.totalorder %s29, 0
    %p191 = por %p189, %p190
    %p192 = scmp.ne.s32.totalorder %s178, %s179
    %p193 = scmp.eq.s32.totalorder %s30, 1
    %p194 = por %p192, %p193
    %p196 = scmp.ne.s32.totalorder %s179, %s195
    %p197 = scmp.eq.s32.totalorder %s30, 0
    %p198 = por %p196, %p197
    %s199 = ssub.s32 %s24, %s31
    %p200 = scmp.eq.s32.totalorder %s199, 0
    %s202 = sadd.s32 %s201, 1
    %s203 = scalar_select %p200, %s201, %s202
    %p206 = pneg %p200
    %p207 = scmp.eq.s32.totalorder %s24, 1
    %p208 = por %p206, %p207
    %p209 = scmp.ne.s32.totalorder %s201, %s204
    %p210 = scmp.eq.s32.totalorder %s24, 0
    %p211 = por %p209, %p210
    %p212 = scmp.ne.s32.totalorder %s201, %s204
    %p213 = scmp.eq.s32.totalorder %s29, 1
    %p214 = por %p212, %p213
    %p215 = scmp.ne.s32.totalorder %s204, %s205
    %p216 = scmp.eq.s32.totalorder %s29, 0
    %p217 = por %p215, %p216
    %p218 = scmp.ne.s32.totalorder %s204, %s205
    %p219 = scmp.eq.s32.totalorder %s30, 1
    %p220 = por %p218, %p219
    %p222 = scmp.ne.s32.totalorder %s205, %s221
    %p223 = scmp.eq.s32.totalorder %s30, 0
    %p224 = por %p222, %p223
    %s225 = ssub.s32 %s24, %s31
    %p226 = scmp.eq.s32.totalorder %s225, 0
    %s228 = sadd.s32 %s227, 1
    %s229 = scalar_select %p226, %s227, %s228
    %p232 = pneg %p226
    %p233 = scmp.eq.s32.totalorder %s24, 1
    %p234 = por %p232, %p233
    %p235 = scmp.ne.s32.totalorder %s227, %s230
    %p236 = scmp.eq.s32.totalorder %s24, 0
    %p237 = por %p235, %p236
    %p238 = scmp.ne.s32.totalorder %s227, %s230
    %p239 = scmp.eq.s32.totalorder %s29, 1
    %p240 = por %p238, %p239
    %p241 = scmp.ne.s32.totalorder %s230, %s231
    %p242 = scmp.eq.s32.totalorder %s29, 0
    %p243 = por %p241, %p242
    %p244 = scmp.ne.s32.totalorder %s230, %s231
    %p245 = scmp.eq.s32.totalorder %s30, 1
    %p246 = por %p244, %p245
    %p248 = scmp.ne.s32.totalorder %s231, %s247
    %p249 = scmp.eq.s32.totalorder %s30, 0
    %p250 = por %p248, %p249
    %s251 = ssub.s32 %s24, %s31
    %p252 = scmp.eq.s32.totalorder %s251, 0
    %s254 = sadd.s32 %s253, 1
    %s255 = scalar_select %p252, %s253, %s254
    %p258 = pneg %p252
    %p259 = scmp.eq.s32.totalorder %s24, 1
    %p260 = por %p258, %p259
    %p261 = scmp.ne.s32.totalorder %s253, %s256
    %p262 = scmp.eq.s32.totalorder %s24, 0
    %p263 = por %p261, %p262
    %p264 = scmp.ne.s32.totalorder %s253, %s256
    %p265 = scmp.eq.s32.totalorder %s29, 1
    %p266 = por %p264, %p265
    %p267 = scmp.ne.s32.totalorder %s256, %s257
    %p268 = scmp.eq.s32.totalorder %s29, 0
    %p269 = por %p267, %p268
    %p270 = scmp.ne.s32.totalorder %s256, %s257
    %p271 = scmp.eq.s32.totalorder %s30, 1
    %p272 = por %p270, %p271
    %p274 = scmp.ne.s32.totalorder %s257, %s273
    %p275 = scmp.eq.s32.totalorder %s30, 0
    %p276 = por %p274, %p275
    %s277 = ssub.s32 %s24, %s31
    %p278 = scmp.eq.s32.totalorder %s277, 0
    %s280 = sadd.s32 %s279, 1
    %s281 = scalar_select %p278, %s279, %s280
    %p284 = pneg %p278
    %p285 = scmp.eq.s32.totalorder %s24, 1
    %p286 = por %p284, %p285
    %p287 = scmp.ne.s32.totalorder %s279, %s282
    %p288 = scmp.eq.s32.totalorder %s24, 0
    %p289 = por %p287, %p288
    %p290 = scmp.ne.s32.totalorder %s279, %s282
    %p291 = scmp.eq.s32.totalorder %s29, 1
    %p292 = por %p290, %p291
    %p293 = scmp.ne.s32.totalorder %s282, %s283
    %p294 = scmp.eq.s32.totalorder %s29, 0
    %p295 = por %p293, %p294
    %p296 = scmp.ne.s32.totalorder %s282, %s283
    %p297 = scmp.eq.s32.totalorder %s30, 1
    %p298 = por %p296, %p297
    %p300 = scmp.ne.s32.totalorder %s283, %s299
    %p301 = scmp.eq.s32.totalorder %s30, 0
    %p302 = por %p300, %p301
    %s303 = ssub.s32 %s24, %s31
    %p304 = scmp.eq.s32.totalorder %s303, 0
    %s306 = sadd.s32 %s305, 1
    %s307 = scalar_select %p304, %s305, %s306
    %p310 = pneg %p304
    %p311 = scmp.eq.s32.totalorder %s24, 1
    %p312 = por %p310, %p311
    %p313 = scmp.ne.s32.totalorder %s305, %s308
    %p314 = scmp.eq.s32.totalorder %s24, 0
    %p315 = por %p313, %p314
    %p316 = scmp.ne.s32.totalorder %s305, %s308
    %p317 = scmp.eq.s32.totalorder %s29, 1
    %p318 = por %p316, %p317
    %p319 = scmp.ne.s32.totalorder %s308, %s309
    %p320 = scmp.eq.s32.totalorder %s29, 0
    %p321 = por %p319, %p320
    %p322 = scmp.ne.s32.totalorder %s308, %s309
    %p323 = scmp.eq.s32.totalorder %s30, 1
    %p324 = por %p322, %p323
    %p326 = scmp.ne.s32.totalorder %s309, %s325
    %p327 = scmp.eq.s32.totalorder %s30, 0
    %p328 = por %p326, %p327
    %s329 = ssub.s32 %s24, %s31
    %p330 = scmp.eq.s32.totalorder %s329, 0
    %s332 = sadd.s32 %s331, 1
    %s333 = scalar_select %p330, %s331, %s332
    %p336 = pneg %p330
    %p337 = scmp.eq.s32.totalorder %s24, 1
    %p338 = por %p336, %p337
    %p339 = scmp.ne.s32.totalorder %s331, %s334
    %p340 = scmp.eq.s32.totalorder %s24, 0
    %p341 = por %p339, %p340
    %p342 = scmp.ne.s32.totalorder %s331, %s334
    %p343 = scmp.eq.s32.totalorder %s29, 1
    %p344 = por %p342, %p343
    %p345 = scmp.ne.s32.totalorder %s334, %s335
    %p346 = scmp.eq.s32.totalorder %s29, 0
    %p347 = por %p345, %p346
    %p348 = scmp.ne.s32.totalorder %s334, %s335
    %p349 = scmp.eq.s32.totalorder %s30, 1
    %p350 = por %p348, %p349
    %p352 = scmp.ne.s32.totalorder %s335, %s351
    %p353 = scmp.eq.s32.totalorder %s30, 0
    %p354 = por %p352, %p353
    %s355 = ssub.s32 %s24, %s31
    %p356 = scmp.eq.s32.totalorder %s355, 0
    %s358 = sadd.s32 %s357, 1
    %s359 = scalar_select %p356, %s357, %s358
    %p362 = pneg %p356
    %p363 = scmp.eq.s32.totalorder %s24, 1
    %p364 = por %p362, %p363
    %p365 = scmp.ne.s32.totalorder %s357, %s360
    %p366 = scmp.eq.s32.totalorder %s24, 0
    %p367 = por %p365, %p366
    %p368 = scmp.ne.s32.totalorder %s357, %s360
    %p369 = scmp.eq.s32.totalorder %s29, 1
    %p370 = por %p368, %p369
    %p371 = scmp.ne.s32.totalorder %s360, %s361
    %p372 = scmp.eq.s32.totalorder %s29, 0
    %p373 = por %p371, %p372
    %p374 = scmp.ne.s32.totalorder %s360, %s361
    %p375 = scmp.eq.s32.totalorder %s30, 1
    %p376 = por %p374, %p375
    %p378 = scmp.ne.s32.totalorder %s361, %s377
    %p379 = scmp.eq.s32.totalorder %s30, 0
    %p380 = por %p378, %p379
    %s381 = ssub.s32 %s24, %s31
    %p382 = scmp.eq.s32.totalorder %s381, 0
    %s384 = sadd.s32 %s383, 1
    %s385 = scalar_select %p382, %s383, %s384
    %p388 = pneg %p382
    %p389 = scmp.eq.s32.totalorder %s24, 1
    %p390 = por %p388, %p389
    %p391 = scmp.ne.s32.totalorder %s383, %s386
    %p392 = scmp.eq.s32.totalorder %s24, 0
    %p393 = por %p391, %p392
    %p394 = scmp.ne.s32.totalorder %s383, %s386
    %p395 = scmp.eq.s32.totalorder %s29, 1
    %p396 = por %p394, %p395
    %p397 = scmp.ne.s32.totalorder %s386, %s387
    %p398 = scmp.eq.s32.totalorder %s29, 0
    %p399 = por %p397, %p398
    %p400 = scmp.ne.s32.totalorder %s386, %s387
    %p401 = scmp.eq.s32.totalorder %s30, 1
    %p402 = por %p400, %p401
    %p404 = scmp.ne.s32.totalorder %s387, %s403
    %p405 = scmp.eq.s32.totalorder %s30, 0
    %p406 = por %p404, %p405
    %s407 = ssub.s32 %s24, %s31
    %p408 = scmp.eq.s32.totalorder %s407, 0
    %s410 = sadd.s32 %s409, 1
    %s411 = scalar_select %p408, %s409, %s410
    %p414 = pneg %p408
    %p415 = scmp.eq.s32.totalorder %s24, 1
    %p416 = por %p414, %p415
    %p417 = scmp.ne.s32.totalorder %s409, %s412
    %p418 = scmp.eq.s32.totalorder %s24, 0
    %p419 = por %p417, %p418
    %p420 = scmp.ne.s32.totalorder %s409, %s412
    %p421 = scmp.eq.s32.totalorder %s29, 1
    %p422 = por %p420, %p421
    %p423 = scmp.ne.s32.totalorder %s412, %s413
    %p424 = scmp.eq.s32.totalorder %s29, 0
    %p425 = por %p423, %p424
    %p426 = scmp.ne.s32.totalorder %s412, %s413
    %p427 = scmp.eq.s32.totalorder %s30, 1
    %p428 = por %p426, %p427
    %p430 = scmp.ne.s32.totalorder %s413, %s429
    %p431 = scmp.eq.s32.totalorder %s30, 0
    %p432 = por %p430, %p431
    %s433 = ssub.s32 %s24, %s31
    %p434 = scmp.eq.s32.totalorder %s433, 0
    %s436 = sadd.s32 %s435, 1
    %s437 = scalar_select %p434, %s435, %s436
    %p440 = pneg %p434
    %p441 = scmp.eq.s32.totalorder %s24, 1
    %p442 = por %p440, %p441
    %p443 = scmp.ne.s32.totalorder %s435, %s438
    %p444 = scmp.eq.s32.totalorder %s24, 0
    %p445 = por %p443, %p444
    %p446 = scmp.ne.s32.totalorder %s435, %s438
    %p447 = scmp.eq.s32.totalorder %s29, 1
    %p448 = por %p446, %p447
    %p449 = scmp.ne.s32.totalorder %s438, %s439
    %p450 = scmp.eq.s32.totalorder %s29, 0
    %p451 = por %p449, %p450
    %p452 = scmp.ne.s32.totalorder %s438, %s439
    %p453 = scmp.eq.s32.totalorder %s30, 1
    %p454 = por %p452, %p453
    %p456 = scmp.ne.s32.totalorder %s439, %s455
    %p457 = scmp.eq.s32.totalorder %s30, 0
    %p458 = por %p456, %p457
    %s459 = ssub.s32 %s24, %s31
    %p460 = scmp.eq.s32.totalorder %s459, 0
    %s462 = sadd.s32 %s461, 1
    %s463 = scalar_select %p460, %s461, %s462
    %p466 = pneg %p460
    %p467 = scmp.eq.s32.totalorder %s24, 1
    %p468 = por %p466, %p467
    %p469 = scmp.ne.s32.totalorder %s461, %s464
    %p470 = scmp.eq.s32.totalorder %s24, 0
    %p471 = por %p469, %p470
    %p472 = scmp.ne.s32.totalorder %s461, %s464
    %p473 = scmp.eq.s32.totalorder %s29, 1
    %p474 = por %p472, %p473
    %p475 = scmp.ne.s32.totalorder %s464, %s465
    %p476 = scmp.eq.s32.totalorder %s29, 0
    %p477 = por %p475, %p476
    %p478 = scmp.ne.s32.totalorder %s464, %s465
    %p479 = scmp.eq.s32.totalorder %s30, 1
    %p480 = por %p478, %p479
    %p482 = scmp.ne.s32.totalorder %s465, %s481
    %p483 = scmp.eq.s32.totalorder %s30, 0
    %p484 = por %p482, %p483
    %p485 = scmp.le.s32.totalorder 1, %s24
    %p486 = scmp.lt.s32.totalorder %s24, 3
    %p487 = pnand %p485, %p486
    %p488 = pneg %p487
    // Predicated region
    $region9: #{seq_only_regressor_forward.1} parent=5 // pred_check
      _
    $region10: #{seq_only_regressor_forward.1} parent=5 // pred_check_branch
      %490 = sbr.rel (%p487) target = $region12
    $region11: #{seq_only_regressor_forward.1} parent=5 // pred_region
      %s491 = ssub.s32 %s24, 1
      // Predicated region
      $region13: #{seq_only_regressor_forward.1} parent=11 // pred_check
        %p492 = pneg %p45
      $region14: #{seq_only_regressor_forward.1} parent=11 // pred_check_branch
        %494 = sbr.rel (%p492) target = $region16
      $region15: #{seq_only_regressor_forward.1} parent=11 // pred_region
        _
      $region16: #{seq_only_regressor_forward.1} parent=11 // pred_fallthru
        _
      // Predicated region
      $region17: #{seq_only_regressor_forward.1} parent=11 // pred_check
        %p495 = pneg %p92
      $region18: #{seq_only_regressor_forward.1} parent=11 // pred_check_branch
        %497 = sbr.rel (%p495) target = $region20
      $region19: #{seq_only_regressor_forward.1} parent=11 // pred_region
        _
      $region20: #{seq_only_regressor_forward.1} parent=11 // pred_fallthru
        _
      // Predicated region
      $region21: #{seq_only_regressor_forward.1} parent=11 // pred_check
        %p498 = pneg %p113
      $region22: #{seq_only_regressor_forward.1} parent=11 // pred_check_branch
        %500 = sbr.rel (%p498) target = $region24
      $region23: #{seq_only_regressor_forward.1} parent=11 // pred_region
        _
      $region24: #{seq_only_regressor_forward.1} parent=11 // pred_fallthru
        _
    $region12: #{seq_only_regressor_forward.1} parent=5 // pred_fallthru
      _
    %p501 = scmp.lt.s32.totalorder %s24, 2
    // Predicated region
    $region25: #{seq_only_regressor_forward.1} parent=5 // pred_check
      %p502 = pneg %p501
    $region26: #{seq_only_regressor_forward.1} parent=5 // pred_check_branch
      %504 = sbr.rel (%p502) target = $region28
    $region27: #{seq_only_regressor_forward.1} parent=5 // pred_region
      // Predicated region
      $region29: #{seq_only_regressor_forward.1} parent=27 // pred_check
        %p505 = pneg %p65
      $region30: #{seq_only_regressor_forward.1} parent=27 // pred_check_branch
        %507 = sbr.rel (%p505) target = $region32
      $region31: #{seq_only_regressor_forward.1} parent=27 // pred_region
        %p508 = scmp.lt.s32.totalorder %s24, 1
        %s509 = scalar_select %p508, %s24, 1
        %s510 = smul.addr %s509, 2
        %s511 = scalar_lea.vmem %s1, %s510
      $region32: #{seq_only_regressor_forward.1} parent=27 // pred_fallthru
        _
      // Predicated region
      $region33: #{seq_only_regressor_forward.1} parent=27 // pred_check
        %p512 = pneg %p133
      $region34: #{seq_only_regressor_forward.1} parent=27 // pred_check_branch
        %514 = sbr.rel (%p512) target = $region36
      $region35: #{seq_only_regressor_forward.1} parent=27 // pred_region
        %p515 = scmp.lt.s32.totalorder %s24, 1
        %s516 = scalar_select %p515, %s24, 1
        %s517 = smul.addr %s516, 4
        %s518 = smul.addr %s517, 4
        %s519 = scalar_lea.vmem %s4, %s518
      $region36: #{seq_only_regressor_forward.1} parent=27 // pred_fallthru
        _
      // Predicated region
      $region37: #{seq_only_regressor_forward.1} parent=27 // pred_check
        %p520 = pneg %p159
      $region38: #{seq_only_regressor_forward.1} parent=27 // pred_check_branch
        %522 = sbr.rel (%p520) target = $region40
      $region39: #{seq_only_regressor_forward.1} parent=27 // pred_region
        %p523 = scmp.lt.s32.totalorder %s24, 1
        %s524 = scalar_select %p523, %s24, 1
        %s525 = smul.addr %s524, 4
        %s526 = smul.addr %s525, 8
        %s527 = scalar_lea.vmem %s5, %s526
      $region40: #{seq_only_regressor_forward.1} parent=27 // pred_fallthru
        _
      // Predicated region
      $region41: #{seq_only_regressor_forward.1} parent=27 // pred_check
        %p528 = pneg %p185
      $region42: #{seq_only_regressor_forward.1} parent=27 // pred_check_branch
        %530 = sbr.rel (%p528) target = $region44
      $region43: #{seq_only_regressor_forward.1} parent=27 // pred_region
        %p531 = scmp.lt.s32.totalorder %s24, 1
        %s532 = scalar_select %p531, %s24, 1
        %s533 = smul.addr %s532, 4
        %s534 = smul.addr %s533, 4
        %s535 = scalar_lea.vmem %s6, %s534
      $region44: #{seq_only_regressor_forward.1} parent=27 // pred_fallthru
        _
      // Predicated region
      $region45: #{seq_only_regressor_forward.1} parent=27 // pred_check
        %p536 = pneg %p211
      $region46: #{seq_only_regressor_forward.1} parent=27 // pred_check_branch
        %538 = sbr.rel (%p536) target = $region48
      $region47: #{seq_only_regressor_forward.1} parent=27 // pred_region
        %p539 = scmp.lt.s32.totalorder %s24, 1
        %s540 = scalar_select %p539, %s24, 1
        %s541 = smul.addr %s540, 4
        %s542 = smul.addr %s541, 8
        %s543 = scalar_lea.vmem %s7, %s542
      $region48: #{seq_only_regressor_forward.1} parent=27 // pred_fallthru
        _
      // Predicated region
      $region49: #{seq_only_regressor_forward.1} parent=27 // pred_check
        %p544 = pneg %p237
      $region50: #{seq_only_regressor_forward.1} parent=27 // pred_check_branch
        %546 = sbr.rel (%p544) target = $region52
      $region51: #{seq_only_regressor_forward.1} parent=27 // pred_region
        %p547 = scmp.lt.s32.totalorder %s24, 1
        %s548 = scalar_select %p547, %s24, 1
        %s549 = smul.addr %s548, 4
        %s550 = scalar_lea.vmem %s8, %s549
      $region52: #{seq_only_regressor_forward.1} parent=27 // pred_fallthru
        _
      // Predicated region
      $region53: #{seq_only_regressor_forward.1} parent=27 // pred_check
        %p551 = pneg %p263
      $region54: #{seq_only_regressor_forward.1} parent=27 // pred_check_branch
        %553 = sbr.rel (%p551) target = $region56
      $region55: #{seq_only_regressor_forward.1} parent=27 // pred_region
        %p554 = scmp.lt.s32.totalorder %s24, 1
        %s555 = scalar_select %p554, %s24, 1
        %s556 = scalar_lea.vmem %s9, %s555
      $region56: #{seq_only_regressor_forward.1} parent=27 // pred_fallthru
        _
      // Predicated region
      $region57: #{seq_only_regressor_forward.1} parent=27 // pred_check
        %p557 = pneg %p289
      $region58: #{seq_only_regressor_forward.1} parent=27 // pred_check_branch
        %559 = sbr.rel (%p557) target = $region60
      $region59: #{seq_only_regressor_forward.1} parent=27 // pred_region
        %p560 = scmp.lt.s32.totalorder %s24, 1
        %s561 = scalar_select %p560, %s24, 1
        %s562 = smul.addr %s561, 4
        %s563 = smul.addr %s562, 4
        %s564 = scalar_lea.vmem %s10, %s563
      $region60: #{seq_only_regressor_forward.1} parent=27 // pred_fallthru
        _
      // Predicated region
      $region61: #{seq_only_regressor_forward.1} parent=27 // pred_check
        %p565 = pneg %p315
      $region62: #{seq_only_regressor_forward.1} parent=27 // pred_check_branch
        %567 = sbr.rel (%p565) target = $region64
      $region63: #{seq_only_regressor_forward.1} parent=27 // pred_region
        %p568 = scmp.lt.s32.totalorder %s24, 1
        %s569 = scalar_select %p568, %s24, 1
        %s570 = smul.addr %s569, 4
        %s571 = smul.addr %s570, 8
        %s572 = scalar_lea.vmem %s11, %s571
      $region64: #{seq_only_regressor_forward.1} parent=27 // pred_fallthru
        _
      // Predicated region
      $region65: #{seq_only_regressor_forward.1} parent=27 // pred_check
        %p573 = pneg %p341
      $region66: #{seq_only_regressor_forward.1} parent=27 // pred_check_branch
        %575 = sbr.rel (%p573) target = $region68
      $region67: #{seq_only_regressor_forward.1} parent=27 // pred_region
        %p576 = scmp.lt.s32.totalorder %s24, 1
        %s577 = scalar_select %p576, %s24, 1
        %s578 = smul.addr %s577, 4
        %s579 = smul.addr %s578, 4
        %s580 = scalar_lea.vmem %s12, %s579
      $region68: #{seq_only_regressor_forward.1} parent=27 // pred_fallthru
        _
      // Predicated region
      $region69: #{seq_only_regressor_forward.1} parent=27 // pred_check
        %p581 = pneg %p367
      $region70: #{seq_only_regressor_forward.1} parent=27 // pred_check_branch
        %583 = sbr.rel (%p581) target = $region72
      $region71: #{seq_only_regressor_forward.1} parent=27 // pred_region
        %p584 = scmp.lt.s32.totalorder %s24, 1
        %s585 = scalar_select %p584, %s24, 1
        %s586 = smul.addr %s585, 4
        %s587 = smul.addr %s586, 8
        %s588 = scalar_lea.vmem %s13, %s587
      $region72: #{seq_only_regressor_forward.1} parent=27 // pred_fallthru
        _
      // Predicated region
      $region73: #{seq_only_regressor_forward.1} parent=27 // pred_check
        %p589 = pneg %p393
      $region74: #{seq_only_regressor_forward.1} parent=27 // pred_check_branch
        %591 = sbr.rel (%p589) target = $region76
      $region75: #{seq_only_regressor_forward.1} parent=27 // pred_region
        %p592 = scmp.lt.s32.totalorder %s24, 1
        %s593 = scalar_select %p592, %s24, 1
        %s594 = scalar_lea.vmem %s14, %s593
      $region76: #{seq_only_regressor_forward.1} parent=27 // pred_fallthru
        _
      // Predicated region
      $region77: #{seq_only_regressor_forward.1} parent=27 // pred_check
        %p595 = pneg %p419
      $region78: #{seq_only_regressor_forward.1} parent=27 // pred_check_branch
        %597 = sbr.rel (%p595) target = $region80
      $region79: #{seq_only_regressor_forward.1} parent=27 // pred_region
        %p598 = scmp.lt.s32.totalorder %s24, 1
        %s599 = scalar_select %p598, %s24, 1
        %s600 = scalar_lea.vmem %s15, %s599
      $region80: #{seq_only_regressor_forward.1} parent=27 // pred_fallthru
        _
    $region28: #{seq_only_regressor_forward.1} parent=5 // pred_fallthru
      _
    %p601 = scmp.le.s32.totalorder 1, %s24
    %p602 = scmp.lt.s32.totalorder %s24, 3
    %p603 = pnand %p601, %p602
    %p604 = pneg %p603
    // Predicated region
    $region81: #{seq_only_regressor_forward.1} parent=5 // pred_check
      _
    $region82: #{seq_only_regressor_forward.1} parent=5 // pred_check_branch
      %606 = sbr.rel (%p603) target = $region84
    $region83: #{seq_only_regressor_forward.1} parent=5 // pred_region
      %s607 = ssub.s32 %s24, 1
      %p608 = pneg %p45
      %p609 = pneg %p42
      %p610 = scmp.lt.s32.totalorder %s29, 1
      %s611 = scalar_select %p610, %s29, 1
      %s612 = smul.addr %s611, 2
      %s613 = scalar_lea.vmem %s1, %s612
      %p614 = pneg %p71
      %p615 = pneg %p68
      %p616 = pneg %p92
      %p617 = pneg %p89
      %p618 = pneg %p113
      %p619 = pneg %p110
      %p620 = scmp.lt.s32.totalorder %s29, 1
      %s621 = scalar_select %p620, %s29, 1
      %s622 = smul.addr %s621, 4
      %s623 = smul.addr %s622, 4
      %s624 = scalar_lea.vmem %s4, %s623
      %p625 = pneg %p139
      %p626 = pneg %p136
      %p627 = scmp.lt.s32.totalorder %s29, 1
      %s628 = scalar_select %p627, %s29, 1
      %s629 = smul.addr %s628, 4
      %s630 = smul.addr %s629, 8
      %s631 = scalar_lea.vmem %s5, %s630
      %p632 = pneg %p165
      %p633 = pneg %p162
      %p634 = scmp.lt.s32.totalorder %s29, 1
      %s635 = scalar_select %p634, %s29, 1
      %s636 = smul.addr %s635, 4
      %s637 = smul.addr %s636, 4
      %s638 = scalar_lea.vmem %s6, %s637
      %p639 = pneg %p191
      %p640 = pneg %p188
      %p641 = scmp.lt.s32.totalorder %s29, 1
      %s642 = scalar_select %p641, %s29, 1
      %s643 = smul.addr %s642, 4
      %s644 = smul.addr %s643, 8
      %s645 = scalar_lea.vmem %s7, %s644
      %p646 = pneg %p217
      %p647 = pneg %p214
      %p648 = scmp.lt.s32.totalorder %s29, 1
      %s649 = scalar_select %p648, %s29, 1
      %s650 = smul.addr %s649, 4
      %s651 = scalar_lea.vmem %s8, %s650
      %p652 = pneg %p243
      %p653 = pneg %p240
      %p654 = scmp.lt.s32.totalorder %s29, 1
      %s655 = scalar_select %p654, %s29, 1
      %s656 = scalar_lea.vmem %s9, %s655
      %p657 = pneg %p269
      %p658 = pneg %p266
      %p659 = scmp.lt.s32.totalorder %s29, 1
      %s660 = scalar_select %p659, %s29, 1
      %s661 = smul.addr %s660, 4
      %s662 = smul.addr %s661, 4
      %s663 = scalar_lea.vmem %s10, %s662
      %p664 = pneg %p295
      %p665 = pneg %p292
      %p666 = scmp.lt.s32.totalorder %s29, 1
      %s667 = scalar_select %p666, %s29, 1
      %s668 = smul.addr %s667, 4
      %s669 = smul.addr %s668, 8
      %s670 = scalar_lea.vmem %s11, %s669
      %p671 = pneg %p321
      %p672 = pneg %p318
      %p673 = scmp.lt.s32.totalorder %s29, 1
      %s674 = scalar_select %p673, %s29, 1
      %s675 = smul.addr %s674, 4
      %s676 = smul.addr %s675, 4
      %s677 = scalar_lea.vmem %s12, %s676
      %p678 = pneg %p347
      %p679 = pneg %p344
      %p680 = scmp.lt.s32.totalorder %s29, 1
      %s681 = scalar_select %p680, %s29, 1
      %s682 = smul.addr %s681, 4
      %s683 = smul.addr %s682, 8
      %s684 = scalar_lea.vmem %s13, %s683
      %p685 = pneg %p373
      %p686 = pneg %p370
      %p687 = scmp.lt.s32.totalorder %s29, 1
      %s688 = scalar_select %p687, %s29, 1
      %s689 = scalar_lea.vmem %s14, %s688
      %p690 = pneg %p399
      %p691 = pneg %p396
      %p692 = scmp.lt.s32.totalorder %s29, 1
      %s693 = scalar_select %p692, %s29, 1
      %s694 = scalar_lea.vmem %s15, %s693
      %p695 = pneg %p425
      %p696 = pneg %p422
      %p697 = pneg %p451
      %p698 = pneg %p448
      %p699 = scmp.lt.s32.totalorder %s29, 1
      %s700 = scalar_select %p699, %s29, 1
      %s701 = smul.addr %s700, 2
      %s702 = scalar_lea.vmem %s16, %s701
      %p703 = pneg %p477
      %p704 = pneg %p474
      %p705 = scmp.lt.s32.totalorder %s29, 1
      %s706 = scalar_select %p705, %s29, 1
      %s707 = scalar_lea.vmem %s17, %s706
      %p708 = scmp.lt.s32.totalorder %s29, 1
      %s709 = scalar_select %p708, %s29, 1
      %s710 = smul.addr %s709, 2
      %s711 = scalar_lea.vmem %s1, %s710
      %p712 = scmp.lt.s32.totalorder %s29, 1
      %s713 = scalar_select %p712, %s29, 1
      %s714 = smul.addr %s713, 4
      %s715 = smul.addr %s714, 4
      %s716 = scalar_lea.vmem %s4, %s715
      %p717 = scmp.lt.s32.totalorder %s29, 1
      %s718 = scalar_select %p717, %s29, 1
      %s719 = smul.addr %s718, 4
      %s720 = smul.addr %s719, 8
      %s721 = scalar_lea.vmem %s5, %s720
      %p722 = scmp.lt.s32.totalorder %s29, 1
      %s723 = scalar_select %p722, %s29, 1
      %s724 = smul.addr %s723, 4
      %s725 = smul.addr %s724, 4
      %s726 = scalar_lea.vmem %s6, %s725
      %p727 = scmp.lt.s32.totalorder %s29, 1
      %s728 = scalar_select %p727, %s29, 1
      %s729 = smul.addr %s728, 4
      %s730 = smul.addr %s729, 8
      %s731 = scalar_lea.vmem %s7, %s730
      %p732 = scmp.lt.s32.totalorder %s29, 1
      %s733 = scalar_select %p732, %s29, 1
      %s734 = smul.addr %s733, 4
      %s735 = scalar_lea.vmem %s8, %s734
      %p736 = scmp.lt.s32.totalorder %s29, 1
      %s737 = scalar_select %p736, %s29, 1
      %s738 = scalar_lea.vmem %s9, %s737
      %p739 = scmp.lt.s32.totalorder %s29, 1
      %s740 = scalar_select %p739, %s29, 1
      %s741 = smul.addr %s740, 4
      %s742 = smul.addr %s741, 4
      %s743 = scalar_lea.vmem %s10, %s742
      %p744 = scmp.lt.s32.totalorder %s29, 1
      %s745 = scalar_select %p744, %s29, 1
      %s746 = smul.addr %s745, 4
      %s747 = smul.addr %s746, 8
      %s748 = scalar_lea.vmem %s11, %s747
      %p749 = scmp.lt.s32.totalorder %s29, 1
      %s750 = scalar_select %p749, %s29, 1
      %s751 = smul.addr %s750, 4
      %s752 = smul.addr %s751, 4
      %s753 = scalar_lea.vmem %s12, %s752
      %p754 = scmp.lt.s32.totalorder %s29, 1
      %s755 = scalar_select %p754, %s29, 1
      %s756 = smul.addr %s755, 4
      %s757 = smul.addr %s756, 8
      %s758 = scalar_lea.vmem %s13, %s757
      %p759 = scmp.lt.s32.totalorder %s29, 1
      %s760 = scalar_select %p759, %s29, 1
      %s761 = scalar_lea.vmem %s14, %s760
      %p762 = scmp.lt.s32.totalorder %s29, 1
      %s763 = scalar_select %p762, %s29, 1
      %s764 = scalar_lea.vmem %s15, %s763
      %p765 = scmp.lt.s32.totalorder %s29, 1
      %s766 = scalar_select %p765, %s29, 1
      %s767 = smul.addr %s766, 2
      %s768 = scalar_lea.vmem %s16, %s767
      %p769 = scmp.lt.s32.totalorder %s29, 1
      %s770 = scalar_select %p769, %s29, 1
      %s771 = scalar_lea.vmem %s17, %s770
      %v773 = vlaneseq
      %v774 = vand.u32 %v773, 127
      %v775 = vld [vmem:[%s2] sm:$0xf]
      %v776 = vld [vmem:[%s2 + $0x4] sm:$0xf]
      %v777 = vld [vmem:[%s2 + $0x8] sm:$0xf]
      %v778 = vld [vmem:[%s2 + $0xc] sm:$0xf]
      %v779 = vld [vmem:[%s3] sm:$0xff]
      %v780 = vld [vmem:[%s3 + $0x8] sm:$0xff]
      %v781 = vld [vmem:[%s3 + $0x10] sm:$0xff]
      %v782 = vld [vmem:[%s3 + $0x18] sm:$0xff]
      %v783 = vld [vmem:[%s735] sm:$0xf]
      %v784 = vld [vmem:[%s738] sm:$0x1]
      %v785 = vld [vmem:[%s0] sm:$0xff]
      %vm786 = vcmask 982016
      %787 = vst.msk [vmem:[#allocation2] sm:$0xff] %vm786, %v785
      %789 = vrot.lane.b32.xlu0 %v785, 127
      %v790 = vpop.permute.xlu0 %789
      %792 = vst.msk [vmem:[#allocation2 + $0x8] sm:$0xff] %vm786, %v790
      %793 = vrot.lane.b32.xlu0 %v785, 126
      %v794 = vpop.permute.xlu0 %793
      %796 = vst.msk [vmem:[#allocation2 + $0x10] sm:$0xff] %vm786, %v794
      %797 = vrot.lane.b32.xlu0 %v785, 125
      %v798 = vpop.permute.xlu0 %797
      %800 = vst.msk [vmem:[#allocation2 + $0x18] sm:$0xff] %vm786, %v798
      %801 = vrot.lane.b32.xlu0 %v785, 124
      %v802 = vpop.permute.xlu0 %801
      %804 = vst.msk [vmem:[#allocation2 + $0x20] sm:$0xff] %vm786, %v802
      %805 = vrot.lane.b32.xlu0 %v785, 123
      %v806 = vpop.permute.xlu0 %805
      %808 = vst.msk [vmem:[#allocation2 + $0x28] sm:$0xff] %vm786, %v806
      %809 = vrot.lane.b32.xlu0 %v785, 122
      %v810 = vpop.permute.xlu0 %809
      %812 = vst.msk [vmem:[#allocation2 + $0x30] sm:$0xff] %vm786, %v810
      %813 = vrot.lane.b32.xlu0 %v785, 121
      %v814 = vpop.permute.xlu0 %813
      %816 = vst.msk [vmem:[#allocation2 + $0x38] sm:$0xff] %vm786, %v814
      %817 = vrot.lane.b32.xlu0 %v785, 120
      %v818 = vpop.permute.xlu0 %817
      %820 = vst.msk [vmem:[#allocation2 + $0x40] sm:$0xff] %vm786, %v818
      %v821 = vld [vmem:[#allocation2] sm:$0xff]
      %v822 = vld [vmem:[#allocation2 + $0x8] sm:$0xff]
      %v823 = vld [vmem:[#allocation2 + $0x10] sm:$0xff]
      %v824 = vld [vmem:[#allocation2 + $0x18] sm:$0xff]
      %v825 = vld [vmem:[#allocation2 + $0x20] sm:$0xff]
      %v826 = vld [vmem:[#allocation2 + $0x28] sm:$0xff]
      %v827 = vld [vmem:[#allocation2 + $0x30] sm:$0xff]
      %v828 = vld [vmem:[#allocation2 + $0x38] sm:$0xff]
      %v829 = vld [vmem:[#allocation2 + $0x40] sm:$0xff]
      %v830 = vpack.c.bf16 %v822, %v821
      %v831 = vpack.c.bf16 %v824, %v823
      %v832 = vpack.c.bf16 %v826, %v825
      %v833 = vpack.c.bf16 %v828, %v827
      %v834 = vpack.c.bf16 %v829, %v829
      %836 = vset.pattern.permute.xlu0 0
      %837 = vperm.xlu0 %836, %v779
      %v838 = vpop.permute.xlu0 %837
      %841 = vset.pattern.permute.xlu0 0
      %842 = vperm.xlu0 %841, %v780
      %v843 = vpop.permute.xlu0 %842
      %846 = vset.pattern.permute.xlu0 0
      %847 = vperm.xlu0 %846, %v781
      %v848 = vpop.permute.xlu0 %847
      %851 = vset.pattern.permute.xlu0 0
      %852 = vperm.xlu0 %851, %v782
      %v853 = vpop.permute.xlu0 %852
      %v859 = vunpack.c.l.b16 %v775
      %v860 = vunpack.c.l.b16 %v776
      %v861 = vunpack.c.l.b16 %v777
      %v862 = vunpack.c.l.b16 %v778
      %v863 = vpack.c.b16 %v860, %v859
      %v864 = vpack.c.b16 %v862, %v861
      %vm865 = vcmask 588800
      %v867 = vsel %vm865, %v863, 0
      %v870 = vsel %vm865, %v864, 0
      %vm872 = vcmask 1043456
      %v874 = vsel %vm872, %v834, 0
      %876 = vmatprep.subr.bf16.mxu0 0
      %877 = vmatpush1.bf16.msra.mxu0 0
      %878 = vmatprep.subr.bf16.mxu0 0
      %879 = vmatpush1.bf16.msra.mxu0 0
      %880 = vmatprep.subr.bf16.mxu0 0
      %881 = vmatpush1.bf16.msra.mxu0 0
      %882 = vmatprep.subr.bf16.mxu0 0
      %883 = vmatpush1.bf16.msra.mxu0 %v874
      %884 = vmatprep.subr.bf16.mxu0 0
      %885 = vmatpush1.bf16.msra.mxu0 %v833
      %886 = vmatprep.subr.bf16.mxu0 0
      %887 = vmatpush1.bf16.msra.mxu0 %v832
      %888 = vmatprep.subr.bf16.mxu0 0
      %889 = vmatpush1.bf16.msra.mxu0 %v831
      %890 = vmatprep.subr.bf16.mxu0 0
      %891 = vmatpush1.bf16.msra.mxu0 %v830
      %892 = vmatprep.subr.bf16.mxu0 0
      %893 = vmatpush2.bf16.msra.mxu0 0
      %894 = vmatprep.subr.bf16.mxu0 0
      %895 = vmatpush2.bf16.msra.mxu0 0
      %896 = vmatprep.subr.bf16.mxu0 0
      %897 = vmatpush2.bf16.msra.mxu0 0
      %898 = vmatprep.subr.bf16.mxu0 0
      %899 = vmatpush2.bf16.msra.mxu0 0
      %900 = vmatprep.subr.bf16.mxu0 0
      %901 = vmatpush2.bf16.msra.mxu0 0
      %902 = vmatprep.subr.bf16.mxu0 0
      %903 = vmatpush2.bf16.msra.mxu0 0
      %904 = vmatprep.subr.bf16.mxu0 0
      %905 = vmatpush2.bf16.msra.mxu0 0
      %906 = vmatprep.subr.bf16.mxu0 0
      %907 = vmatpush2.bf16.msra.mxu0 0
      %908 = vmatprep.mubr.bf16.mxu0 0
      %909 = vmatmul.mubr.bf16.gmra.mxu0 %v867
      %v910 = vpop.f32.mrf.mxu0
      %v911 = vadd.f32 %v838, %v910
      %v912 = vpop.f32.mrf.mxu0
      %v913 = vpop.f32.mrf.mxu0
      %v914 = vadd.f32 %v843, %v913
      %v915 = vpop.f32.mrf.mxu0
      %916 = vmatprep.mubr.bf16.mxu0 0
      %917 = vmatmul.mubr.bf16.gmra.mxu0 %v870
      %v918 = vpop.f32.mrf.mxu0
      %v919 = vadd.f32 %v848, %v918
      %v920 = vpop.f32.mrf.mxu0
      %v921 = vpop.f32.mrf.mxu0
      %v922 = vadd.f32 %v853, %v921
      %v923 = vpop.f32.mrf.mxu0
      %924 = vdwg.mxu0
      %925 = vst [vmem:[#allocation3] sm:$0xff] 0.0
      %926 = vst [vmem:[#allocation3 + $0x8] sm:$0xff] 0.0
      %vm927 = vcmask 113664
      %928 = vst.msk [vmem:[#allocation3 + $0x10] sm:$0xff] %vm927, 0.0
      %929 = vst [vmem:[#allocation3 + $0x18] sm:$0xff] 0.0
      %930 = vst [vmem:[#allocation3 + $0x20] sm:$0xff] 0.0
      %931 = vst.msk [vmem:[#allocation3 + $0x28] sm:$0xff] %vm927, 0.0
      %932 = vst [vmem:[#allocation3 + $0x30] sm:$0xff] 0.0
      %933 = vst [vmem:[#allocation3 + $0x38] sm:$0xff] 0.0
      %934 = vst.msk [vmem:[#allocation3 + $0x40] sm:$0xff] %vm927, 0.0
      %935 = vst [vmem:[#allocation3 + $0x48] sm:$0xff] 0.0
      %936 = vst [vmem:[#allocation3 + $0x50] sm:$0xff] 0.0
      %937 = vst.msk [vmem:[#allocation3 + $0x58] sm:$0xff] %vm927, 0.0
      %938 = vst.msk [vmem:[#allocation3 + $0x8] sm:$0xff] %vm786, %v911
      %939 = vst.msk [vmem:[#allocation3 + $0x20] sm:$0xff] %vm786, %v914
      %940 = vst.msk [vmem:[#allocation3 + $0x38] sm:$0xff] %vm786, %v919
      %941 = vst.msk [vmem:[#allocation3 + $0x50] sm:$0xff] %vm786, %v922
      %v942 = vld [vmem:[#allocation3] sm:$0xff]
      %v943 = vld [vmem:[#allocation3 + $0x8] sm:$0xff]
      %v944 = vld [vmem:[#allocation3 + $0x18] sm:$0xff]
      %v945 = vld [vmem:[#allocation3 + $0x20] sm:$0xff]
      %v946 = vld [vmem:[#allocation3 + $0x30] sm:$0xff]
      %v947 = vld [vmem:[#allocation3 + $0x38] sm:$0xff]
      %v948 = vld [vmem:[#allocation3 + $0x48] sm:$0xff]
      %v949 = vld [vmem:[#allocation3 + $0x50] sm:$0xff]
      %958 = vrot.lane.b32.xlu0 %v942, 2
      %v959 = vpop.permute.xlu0 %958
      %960 = vrot.lane.b32.xlu0 %v943, 2
      %v961 = vpop.permute.xlu0 %960
      %962 = vrot.lane.b32.xlu0 %v944, 2
      %v963 = vpop.permute.xlu0 %962
      %964 = vrot.lane.b32.xlu0 %v945, 2
      %v965 = vpop.permute.xlu0 %964
      %966 = vrot.lane.b32.xlu0 %v946, 2
      %v967 = vpop.permute.xlu0 %966
      %968 = vrot.lane.b32.xlu0 %v947, 2
      %v969 = vpop.permute.xlu0 %968
      %970 = vrot.lane.b32.xlu0 %v948, 2
      %v971 = vpop.permute.xlu0 %970
      %972 = vrot.lane.b32.xlu0 %v949, 2
      %v973 = vpop.permute.xlu0 %972
      %vm974 = vcmask 15360
      %v975 = vsel %vm974, %v959, %v961
      %v976 = vsel %vm974, %v963, %v965
      %v977 = vsel %vm974, %v967, %v969
      %v978 = vsel %vm974, %v971, %v973
      %983 = vst.msk [vmem:[#allocation4] sm:$0xff] %vm786, %v975
      %984 = vst.msk [vmem:[#allocation4 + $0x8] sm:$0xff] %vm786, %v976
      %985 = vst.msk [vmem:[#allocation4 + $0x10] sm:$0xff] %vm786, %v977
      %986 = vst.msk [vmem:[#allocation4 + $0x18] sm:$0xff] %vm786, %v978
      %987 = vst.msk [vmem:[#allocation4 + $0x20] sm:$0xff] %vm786, %v943
      %988 = vst.msk [vmem:[#allocation4 + $0x28] sm:$0xff] %vm786, %v945
      %989 = vst.msk [vmem:[#allocation4 + $0x30] sm:$0xff] %vm786, %v947
      %990 = vst.msk [vmem:[#allocation4 + $0x38] sm:$0xff] %vm786, %v949
      %991 = vrot.lane.b32.xlu0 %v943, 126
      %v992 = vpop.permute.xlu0 %991
      %993 = vrot.lane.b32.xlu0 %v945, 126
      %v994 = vpop.permute.xlu0 %993
      %995 = vrot.lane.b32.xlu0 %v947, 126
      %v996 = vpop.permute.xlu0 %995
      %997 = vrot.lane.b32.xlu0 %v949, 126
      %v998 = vpop.permute.xlu0 %997
      %1003 = vst.msk [vmem:[#allocation4 + $0x40] sm:$0xff] %vm786, %v992
      %1004 = vst.msk [vmem:[#allocation4 + $0x48] sm:$0xff] %vm786, %v994
      %1005 = vst.msk [vmem:[#allocation4 + $0x50] sm:$0xff] %vm786, %v996
      %1006 = vst.msk [vmem:[#allocation4 + $0x58] sm:$0xff] %vm786, %v998
      %v1007 = vld [vmem:[%s716] sm:$0xf]
      %v1008 = vld [vmem:[%s716 + $0x4] sm:$0xf]
      %v1009 = vld [vmem:[%s716 + $0x8] sm:$0xf]
      %v1010 = vld [vmem:[%s716 + $0xc] sm:$0xf]
      %v1011 = vld [vmem:[#allocation4] sm:$0xff]
      %v1012 = vld [vmem:[#allocation4 + $0x8] sm:$0xff]
      %v1013 = vld [vmem:[#allocation4 + $0x10] sm:$0xff]
      %v1014 = vld [vmem:[#allocation4 + $0x18] sm:$0xff]
      %v1015 = vld [vmem:[#allocation4 + $0x20] sm:$0xff]
      %v1016 = vld [vmem:[#allocation4 + $0x28] sm:$0xff]
      %v1017 = vld [vmem:[#allocation4 + $0x30] sm:$0xff]
      %v1018 = vld [vmem:[#allocation4 + $0x38] sm:$0xff]
      %v1019 = vld [vmem:[#allocation4 + $0x40] sm:$0xff]
      %v1020 = vld [vmem:[#allocation4 + $0x48] sm:$0xff]
      %v1021 = vld [vmem:[#allocation4 + $0x50] sm:$0xff]
      %v1022 = vld [vmem:[#allocation4 + $0x58] sm:$0xff]
      %v1023 = vpack.c.bf16 %v1012, %v1011
      %v1024 = vpack.c.bf16 %v1014, %v1013
      %v1025 = vpack.c.bf16 %v1016, %v1015
      %v1026 = vpack.c.bf16 %v1018, %v1017
      %v1027 = vpack.c.bf16 %v1020, %v1019
      %v1028 = vpack.c.bf16 %v1022, %v1021
      %v1029 = vld [vmem:[%s721] sm:$0xff]
      %v1030 = vld [vmem:[%s721 + $0x8] sm:$0xff]
      %v1031 = vld [vmem:[%s721 + $0x10] sm:$0xff]
      %v1032 = vld [vmem:[%s721 + $0x18] sm:$0xff]
      %1034 = vset.pattern.permute.xlu0 0
      %1035 = vperm.xlu0 %1034, %v1029
      %v1036 = vpop.permute.xlu0 %1035
      %1039 = vset.pattern.permute.xlu0 0
      %1040 = vperm.xlu0 %1039, %v1030
      %v1041 = vpop.permute.xlu0 %1040
      %1044 = vset.pattern.permute.xlu0 0
      %1045 = vperm.xlu0 %1044, %v1031
      %v1046 = vpop.permute.xlu0 %1045
      %1049 = vset.pattern.permute.xlu0 0
      %1050 = vperm.xlu0 %1049, %v1032
      %v1051 = vpop.permute.xlu0 %1050
      %v1057 = vunpack.c.l.b16 %v1007
      %v1058 = vunpack.c.l.b16 %v1008
      %v1059 = vunpack.c.l.b16 %v1009
      %v1060 = vunpack.c.l.b16 %v1010
      %v1061 = vpack.c.b16 %v1058, %v1057
      %v1062 = vpack.c.b16 %v1060, %v1059
      %vm1063 = vcmask 785408
      %v1065 = vsel %vm1063, %v1061, 0
      %v1068 = vsel %vm1063, %v1062, 0
      %1070 = vmatprep.subr.bf16.mxu0 0
      %1071 = vmatpush1.bf16.msra.mxu0 0
      %1072 = vmatprep.subr.bf16.mxu0 0
      %1073 = vmatpush1.bf16.msra.mxu0 0
      %1074 = vmatprep.subr.bf16.mxu0 0
      %1075 = vmatpush1.bf16.msra.mxu0 %v1028
      %1076 = vmatprep.subr.bf16.mxu0 0
      %1077 = vmatpush1.bf16.msra.mxu0 %v1027
      %1078 = vmatprep.subr.bf16.mxu0 0
      %1079 = vmatpush1.bf16.msra.mxu0 %v1026
      %1080 = vmatprep.subr.bf16.mxu0 0
      %1081 = vmatpush1.bf16.msra.mxu0 %v1025
      %1082 = vmatprep.subr.bf16.mxu0 0
      %1083 = vmatpush1.bf16.msra.mxu0 %v1024
      %1084 = vmatprep.subr.bf16.mxu0 0
      %1085 = vmatpush1.bf16.msra.mxu0 %v1023
      %1086 = vmatprep.subr.bf16.mxu0 0
      %1087 = vmatpush2.bf16.msra.mxu0 0
      %1088 = vmatprep.subr.bf16.mxu0 0
      %1089 = vmatpush2.bf16.msra.mxu0 0
      %1090 = vmatprep.subr.bf16.mxu0 0
      %1091 = vmatpush2.bf16.msra.mxu0 0
      %1092 = vmatprep.subr.bf16.mxu0 0
      %1093 = vmatpush2.bf16.msra.mxu0 0
      %1094 = vmatprep.subr.bf16.mxu0 0
      %1095 = vmatpush2.bf16.msra.mxu0 0
      %1096 = vmatprep.subr.bf16.mxu0 0
      %1097 = vmatpush2.bf16.msra.mxu0 0
      %1098 = vmatprep.subr.bf16.mxu0 0
      %1099 = vmatpush2.bf16.msra.mxu0 0
      %1100 = vmatprep.subr.bf16.mxu0 0
      %1101 = vmatpush2.bf16.msra.mxu0 0
      %1102 = vmatprep.mubr.bf16.mxu0 0
      %1103 = vmatmul.mubr.bf16.gmra.mxu0 %v1065
      %v1104 = vpop.f32.mrf.mxu0
      %v1105 = vadd.f32 %v1036, %v1104
      %v1106 = vpop.f32.mrf.mxu0
      %v1107 = vpop.f32.mrf.mxu0
      %v1108 = vadd.f32 %v1041, %v1107
      %v1109 = vpop.f32.mrf.mxu0
      %1110 = vmatprep.mubr.bf16.mxu0 0
      %1111 = vmatmul.mubr.bf16.gmra.mxu0 %v1068
      %v1112 = vpop.f32.mrf.mxu0
      %v1113 = vadd.f32 %v1046, %v1112
      %v1114 = vpop.f32.mrf.mxu0
      %v1115 = vpop.f32.mrf.mxu0
      %v1116 = vadd.f32 %v1051, %v1115
      %v1117 = vpop.f32.mrf.mxu0
      %1118 = vdwg.mxu0
      %v1119 = vmax.f32 %v1105, 0.0
      %v1120 = vmax.f32 %v1108, 0.0
      %v1121 = vmax.f32 %v1113, 0.0
      %v1122 = vmax.f32 %v1116, 0.0
      %v1123 = vadd.f32 %v911, %v1119
      %v1124 = vadd.f32 %v914, %v1120
      %v1125 = vadd.f32 %v919, %v1121
      %v1126 = vadd.f32 %v922, %v1122
      %1127 = vst.msk [vmem:[#allocation3 + $0x8] sm:$0xff] %vm786, %v1123
      %1128 = vst.msk [vmem:[#allocation3 + $0x20] sm:$0xff] %vm786, %v1124
      %1129 = vst.msk [vmem:[#allocation3 + $0x38] sm:$0xff] %vm786, %v1125
      %1130 = vst.msk [vmem:[#allocation3 + $0x50] sm:$0xff] %vm786, %v1126
      %v1131 = vld [vmem:[#allocation3] sm:$0xff]
      %v1132 = vld [vmem:[#allocation3 + $0x8] sm:$0xff]
      %v1133 = vld [vmem:[#allocation3 + $0x18] sm:$0xff]
      %v1134 = vld [vmem:[#allocation3 + $0x20] sm:$0xff]
      %v1135 = vld [vmem:[#allocation3 + $0x30] sm:$0xff]
      %v1136 = vld [vmem:[#allocation3 + $0x38] sm:$0xff]
      %v1137 = vld [vmem:[#allocation3 + $0x48] sm:$0xff]
      %v1138 = vld [vmem:[#allocation3 + $0x50] sm:$0xff]
      %1147 = vrot.lane.b32.xlu0 %v1131, 4
      %v1148 = vpop.permute.xlu0 %1147
      %1149 = vrot.lane.b32.xlu0 %v1132, 4
      %v1150 = vpop.permute.xlu0 %1149
      %1151 = vrot.lane.b32.xlu0 %v1133, 4
      %v1152 = vpop.permute.xlu0 %1151
      %1153 = vrot.lane.b32.xlu0 %v1134, 4
      %v1154 = vpop.permute.xlu0 %1153
      %1155 = vrot.lane.b32.xlu0 %v1135, 4
      %v1156 = vpop.permute.xlu0 %1155
      %1157 = vrot.lane.b32.xlu0 %v1136, 4
      %v1158 = vpop.permute.xlu0 %1157
      %1159 = vrot.lane.b32.xlu0 %v1137, 4
      %v1160 = vpop.permute.xlu0 %1159
      %1161 = vrot.lane.b32.xlu0 %v1138, 4
      %v1162 = vpop.permute.xlu0 %1161
      %vm1163 = vcmask 31744
      %v1164 = vsel %vm1163, %v1148, %v1150
      %v1165 = vsel %vm1163, %v1152, %v1154
      %v1166 = vsel %vm1163, %v1156, %v1158
      %v1167 = vsel %vm1163, %v1160, %v1162
      %1172 = vst.msk [vmem:[#allocation4] sm:$0xff] %vm786, %v1164
      %1173 = vst.msk [vmem:[#allocation4 + $0x8] sm:$0xff] %vm786, %v1165
      %1174 = vst.msk [vmem:[#allocation4 + $0x10] sm:$0xff] %vm786, %v1166
      %1175 = vst.msk [vmem:[#allocation4 + $0x18] sm:$0xff] %vm786, %v1167
      %1176 = vst.msk [vmem:[#allocation4 + $0x20] sm:$0xff] %vm786, %v1132
      %1177 = vst.msk [vmem:[#allocation4 + $0x28] sm:$0xff] %vm786, %v1134
      %1178 = vst.msk [vmem:[#allocation4 + $0x30] sm:$0xff] %vm786, %v1136
      %1179 = vst.msk [vmem:[#allocation4 + $0x38] sm:$0xff] %vm786, %v1138
      %1180 = vrot.lane.b32.xlu0 %v1132, 124
      %v1181 = vpop.permute.xlu0 %1180
      %1182 = vrot.lane.b32.xlu0 %v1134, 124
      %v1183 = vpop.permute.xlu0 %1182
      %1184 = vrot.lane.b32.xlu0 %v1136, 124
      %v1185 = vpop.permute.xlu0 %1184
      %1186 = vrot.lane.b32.xlu0 %v1138, 124
      %v1187 = vpop.permute.xlu0 %1186
      %1192 = vst.msk [vmem:[#allocation4 + $0x40] sm:$0xff] %vm786, %v1181
      %1193 = vst.msk [vmem:[#allocation4 + $0x48] sm:$0xff] %vm786, %v1183
      %1194 = vst.msk [vmem:[#allocation4 + $0x50] sm:$0xff] %vm786, %v1185
      %1195 = vst.msk [vmem:[#allocation4 + $0x58] sm:$0xff] %vm786, %v1187
      %v1196 = vld [vmem:[%s726] sm:$0xf]
      %v1197 = vld [vmem:[%s726 + $0x4] sm:$0xf]
      %v1198 = vld [vmem:[%s726 + $0x8] sm:$0xf]
      %v1199 = vld [vmem:[%s726 + $0xc] sm:$0xf]
      %v1200 = vld [vmem:[#allocation4] sm:$0xff]
      %v1201 = vld [vmem:[#allocation4 + $0x8] sm:$0xff]
      %v1202 = vld [vmem:[#allocation4 + $0x10] sm:$0xff]
      %v1203 = vld [vmem:[#allocation4 + $0x18] sm:$0xff]
      %v1204 = vld [vmem:[#allocation4 + $0x20] sm:$0xff]
      %v1205 = vld [vmem:[#allocation4 + $0x28] sm:$0xff]
      %v1206 = vld [vmem:[#allocation4 + $0x30] sm:$0xff]
      %v1207 = vld [vmem:[#allocation4 + $0x38] sm:$0xff]
      %v1208 = vld [vmem:[#allocation4 + $0x40] sm:$0xff]
      %v1209 = vld [vmem:[#allocation4 + $0x48] sm:$0xff]
      %v1210 = vld [vmem:[#allocation4 + $0x50] sm:$0xff]
      %v1211 = vld [vmem:[#allocation4 + $0x58] sm:$0xff]
      %v1212 = vpack.c.bf16 %v1201, %v1200
      %v1213 = vpack.c.bf16 %v1203, %v1202
      %v1214 = vpack.c.bf16 %v1205, %v1204
      %v1215 = vpack.c.bf16 %v1207, %v1206
      %v1216 = vpack.c.bf16 %v1209, %v1208
      %v1217 = vpack.c.bf16 %v1211, %v1210
      %v1218 = vld [vmem:[%s731] sm:$0xff]
      %v1219 = vld [vmem:[%s731 + $0x8] sm:$0xff]
      %v1220 = vld [vmem:[%s731 + $0x10] sm:$0xff]
      %v1221 = vld [vmem:[%s731 + $0x18] sm:$0xff]
      %1223 = vset.pattern.permute.xlu0 0
      %1224 = vperm.xlu0 %1223, %v1218
      %v1225 = vpop.permute.xlu0 %1224
      %1228 = vset.pattern.permute.xlu0 0
      %1229 = vperm.xlu0 %1228, %v1219
      %v1230 = vpop.permute.xlu0 %1229
      %1233 = vset.pattern.permute.xlu0 0
      %1234 = vperm.xlu0 %1233, %v1220
      %v1235 = vpop.permute.xlu0 %1234
      %1238 = vset.pattern.permute.xlu0 0
      %1239 = vperm.xlu0 %1238, %v1221
      %v1240 = vpop.permute.xlu0 %1239
      %v1246 = vunpack.c.l.b16 %v1196
      %v1247 = vunpack.c.l.b16 %v1197
      %v1248 = vunpack.c.l.b16 %v1198
      %v1249 = vunpack.c.l.b16 %v1199
      %v1250 = vpack.c.b16 %v1247, %v1246
      %v1251 = vpack.c.b16 %v1249, %v1248
      %v1253 = vsel %vm1063, %v1250, 0
      %v1256 = vsel %vm1063, %v1251, 0
      %1258 = vmatprep.subr.bf16.mxu0 0
      %1259 = vmatpush1.bf16.msra.mxu0 0
      %1260 = vmatprep.subr.bf16.mxu0 0
      %1261 = vmatpush1.bf16.msra.mxu0 0
      %1262 = vmatprep.subr.bf16.mxu0 0
      %1263 = vmatpush1.bf16.msra.mxu0 %v1217
      %1264 = vmatprep.subr.bf16.mxu0 0
      %1265 = vmatpush1.bf16.msra.mxu0 %v1216
      %1266 = vmatprep.subr.bf16.mxu0 0
      %1267 = vmatpush1.bf16.msra.mxu0 %v1215
      %1268 = vmatprep.subr.bf16.mxu0 0
      %1269 = vmatpush1.bf16.msra.mxu0 %v1214
      %1270 = vmatprep.subr.bf16.mxu0 0
      %1271 = vmatpush1.bf16.msra.mxu0 %v1213
      %1272 = vmatprep.subr.bf16.mxu0 0
      %1273 = vmatpush1.bf16.msra.mxu0 %v1212
      %1274 = vmatprep.subr.bf16.mxu0 0
      %1275 = vmatpush2.bf16.msra.mxu0 0
      %1276 = vmatprep.subr.bf16.mxu0 0
      %1277 = vmatpush2.bf16.msra.mxu0 0
      %1278 = vmatprep.subr.bf16.mxu0 0
      %1279 = vmatpush2.bf16.msra.mxu0 0
      %1280 = vmatprep.subr.bf16.mxu0 0
      %1281 = vmatpush2.bf16.msra.mxu0 0
      %1282 = vmatprep.subr.bf16.mxu0 0
      %1283 = vmatpush2.bf16.msra.mxu0 0
      %1284 = vmatprep.subr.bf16.mxu0 0
      %1285 = vmatpush2.bf16.msra.mxu0 0
      %1286 = vmatprep.subr.bf16.mxu0 0
      %1287 = vmatpush2.bf16.msra.mxu0 0
      %1288 = vmatprep.subr.bf16.mxu0 0
      %1289 = vmatpush2.bf16.msra.mxu0 0
      %1290 = vmatprep.mubr.bf16.mxu0 0
      %1291 = vmatmul.mubr.bf16.gmra.mxu0 %v1253
      %v1292 = vpop.f32.mrf.mxu0
      %v1293 = vadd.f32 %v1225, %v1292
      %v1294 = vpop.f32.mrf.mxu0
      %v1295 = vpop.f32.mrf.mxu0
      %v1296 = vadd.f32 %v1230, %v1295
      %v1297 = vpop.f32.mrf.mxu0
      %1298 = vmatprep.mubr.bf16.mxu0 0
      %1299 = vmatmul.mubr.bf16.gmra.mxu0 %v1256
      %v1300 = vpop.f32.mrf.mxu0
      %v1301 = vadd.f32 %v1235, %v1300
      %v1302 = vpop.f32.mrf.mxu0
      %v1303 = vpop.f32.mrf.mxu0
      %v1304 = vadd.f32 %v1240, %v1303
      %v1305 = vpop.f32.mrf.mxu0
      %1306 = vdwg.mxu0
      %v1307 = vmax.f32 %v1293, 0.0
      %v1308 = vmax.f32 %v1296, 0.0
      %v1309 = vmax.f32 %v1301, 0.0
      %v1310 = vmax.f32 %v1304, 0.0
      %v1311 = vadd.f32 %v1123, %v1307
      %v1312 = vadd.f32 %v1124, %v1308
      %v1313 = vadd.f32 %v1125, %v1309
      %v1314 = vadd.f32 %v1126, %v1310
      %1315 = vst.msk [vmem:[#allocation3 + $0x8] sm:$0xff] %vm786, %v1311
      %1316 = vst.msk [vmem:[#allocation3 + $0x20] sm:$0xff] %vm786, %v1312
      %1317 = vst.msk [vmem:[#allocation3 + $0x38] sm:$0xff] %vm786, %v1313
      %1318 = vst.msk [vmem:[#allocation3 + $0x50] sm:$0xff] %vm786, %v1314
      %v1319 = vld [vmem:[#allocation3 + $0x8] sm:$0xff]
      %v1320 = vld [vmem:[#allocation3 + $0x10] sm:$0xff]
      %v1321 = vld [vmem:[#allocation3 + $0x20] sm:$0xff]
      %v1322 = vld [vmem:[#allocation3 + $0x28] sm:$0xff]
      %v1323 = vld [vmem:[#allocation3 + $0x38] sm:$0xff]
      %v1324 = vld [vmem:[#allocation3 + $0x40] sm:$0xff]
      %v1325 = vld [vmem:[#allocation3 + $0x50] sm:$0xff]
      %v1326 = vld [vmem:[#allocation3 + $0x58] sm:$0xff]
      %1327 = vst [vmem:[#allocation5] sm:$0xff] %v1319
      %1328 = vst [vmem:[#allocation5 + $0x8] sm:$0xff] %v1321
      %1329 = vst [vmem:[#allocation5 + $0x10] sm:$0xff] %v1323
      %1330 = vst [vmem:[#allocation5 + $0x18] sm:$0xff] %v1325
      %1339 = vrot.lane.b32.xlu0 %v1319, 127
      %v1340 = vpop.permute.xlu0 %1339
      %1341 = vrot.lane.b32.xlu0 %v1320, 127
      %v1342 = vpop.permute.xlu0 %1341
      %1343 = vrot.lane.b32.xlu0 %v1321, 127
      %v1344 = vpop.permute.xlu0 %1343
      %1345 = vrot.lane.b32.xlu0 %v1322, 127
      %v1346 = vpop.permute.xlu0 %1345
      %1347 = vrot.lane.b32.xlu0 %v1323, 127
      %v1348 = vpop.permute.xlu0 %1347
      %1349 = vrot.lane.b32.xlu0 %v1324, 127
      %v1350 = vpop.permute.xlu0 %1349
      %1351 = vrot.lane.b32.xlu0 %v1325, 127
      %v1352 = vpop.permute.xlu0 %1351
      %1353 = vrot.lane.b32.xlu0 %v1326, 127
      %v1354 = vpop.permute.xlu0 %1353
      %vm1355 = vcmask 1039360
      %v1356 = vsel %vm1355, %v1340, %v1342
      %v1357 = vsel %vm1355, %v1344, %v1346
      %v1358 = vsel %vm1355, %v1348, %v1350
      %v1359 = vsel %vm1355, %v1352, %v1354
      %1364 = vst [vmem:[#allocation5 + $0x20] sm:$0xff] %v1356
      %1365 = vst [vmem:[#allocation5 + $0x28] sm:$0xff] %v1357
      %1366 = vst [vmem:[#allocation5 + $0x30] sm:$0xff] %v1358
      %1367 = vst [vmem:[#allocation5 + $0x38] sm:$0xff] %v1359
      %1368 = vrot.lane.b32.xlu0 %v1319, 126
      %v1369 = vpop.permute.xlu0 %1368
      %1370 = vrot.lane.b32.xlu0 %v1320, 126
      %v1371 = vpop.permute.xlu0 %1370
      %1372 = vrot.lane.b32.xlu0 %v1321, 126
      %v1373 = vpop.permute.xlu0 %1372
      %1374 = vrot.lane.b32.xlu0 %v1322, 126
      %v1375 = vpop.permute.xlu0 %1374
      %1376 = vrot.lane.b32.xlu0 %v1323, 126
      %v1377 = vpop.permute.xlu0 %1376
      %1378 = vrot.lane.b32.xlu0 %v1324, 126
      %v1379 = vpop.permute.xlu0 %1378
      %1380 = vrot.lane.b32.xlu0 %v1325, 126
      %v1381 = vpop.permute.xlu0 %1380
      %1382 = vrot.lane.b32.xlu0 %v1326, 126
      %v1383 = vpop.permute.xlu0 %1382
      %vm1384 = vcmask 1031168
      %v1385 = vsel %vm1384, %v1369, %v1371
      %v1386 = vsel %vm1384, %v1373, %v1375
      %v1387 = vsel %vm1384, %v1377, %v1379
      %v1388 = vsel %vm1384, %v1381, %v1383
      %1393 = vst [vmem:[#allocation5 + $0x40] sm:$0xff] %v1385
      %1394 = vst [vmem:[#allocation5 + $0x48] sm:$0xff] %v1386
      %1395 = vst [vmem:[#allocation5 + $0x50] sm:$0xff] %v1387
      %1396 = vst [vmem:[#allocation5 + $0x58] sm:$0xff] %v1388
      %1397 = vrot.lane.b32.xlu0 %v1319, 125
      %v1398 = vpop.permute.xlu0 %1397
      %1399 = vrot.lane.b32.xlu0 %v1320, 125
      %v1400 = vpop.permute.xlu0 %1399
      %1401 = vrot.lane.b32.xlu0 %v1321, 125
      %v1402 = vpop.permute.xlu0 %1401
      %1403 = vrot.lane.b32.xlu0 %v1322, 125
      %v1404 = vpop.permute.xlu0 %1403
      %1405 = vrot.lane.b32.xlu0 %v1323, 125
      %v1406 = vpop.permute.xlu0 %1405
      %1407 = vrot.lane.b32.xlu0 %v1324, 125
      %v1408 = vpop.permute.xlu0 %1407
      %1409 = vrot.lane.b32.xlu0 %v1325, 125
      %v1410 = vpop.permute.xlu0 %1409
      %1411 = vrot.lane.b32.xlu0 %v1326, 125
      %v1412 = vpop.permute.xlu0 %1411
      %vm1413 = vcmask 1022976
      %v1414 = vsel %vm1413, %v1398, %v1400
      %v1415 = vsel %vm1413, %v1402, %v1404
      %v1416 = vsel %vm1413, %v1406, %v1408
      %v1417 = vsel %vm1413, %v1410, %v1412
      %1422 = vst [vmem:[#allocation5 + $0x60] sm:$0xff] %v1414
      %1423 = vst [vmem:[#allocation5 + $0x68] sm:$0xff] %v1415
      %1424 = vst [vmem:[#allocation5 + $0x70] sm:$0xff] %v1416
      %1425 = vst [vmem:[#allocation5 + $0x78] sm:$0xff] %v1417
      %1426 = vrot.lane.b32.xlu0 %v1319, 124
      %v1427 = vpop.permute.xlu0 %1426
      %1428 = vrot.lane.b32.xlu0 %v1320, 124
      %v1429 = vpop.permute.xlu0 %1428
      %1430 = vrot.lane.b32.xlu0 %v1321, 124
      %v1431 = vpop.permute.xlu0 %1430
      %1432 = vrot.lane.b32.xlu0 %v1322, 124
      %v1433 = vpop.permute.xlu0 %1432
      %1434 = vrot.lane.b32.xlu0 %v1323, 124
      %v1435 = vpop.permute.xlu0 %1434
      %1436 = vrot.lane.b32.xlu0 %v1324, 124
      %v1437 = vpop.permute.xlu0 %1436
      %1438 = vrot.lane.b32.xlu0 %v1325, 124
      %v1439 = vpop.permute.xlu0 %1438
      %1440 = vrot.lane.b32.xlu0 %v1326, 124
      %v1441 = vpop.permute.xlu0 %1440
      %vm1442 = vcmask 1014784
      %v1443 = vsel %vm1442, %v1427, %v1429
      %v1444 = vsel %vm1442, %v1431, %v1433
      %v1445 = vsel %vm1442, %v1435, %v1437
      %v1446 = vsel %vm1442, %v1439, %v1441
      %1451 = vst [vmem:[#allocation5 + $0x80] sm:$0xff] %v1443
      %1452 = vst [vmem:[#allocation5 + $0x88] sm:$0xff] %v1444
      %1453 = vst [vmem:[#allocation5 + $0x90] sm:$0xff] %v1445
      %1454 = vst [vmem:[#allocation5 + $0x98] sm:$0xff] %v1446
      %1455 = vrot.lane.b32.xlu0 %v1319, 123
      %v1456 = vpop.permute.xlu0 %1455
      %1457 = vrot.lane.b32.xlu0 %v1320, 123
      %v1458 = vpop.permute.xlu0 %1457
      %1459 = vrot.lane.b32.xlu0 %v1321, 123
      %v1460 = vpop.permute.xlu0 %1459
      %1461 = vrot.lane.b32.xlu0 %v1322, 123
      %v1462 = vpop.permute.xlu0 %1461
      %1463 = vrot.lane.b32.xlu0 %v1323, 123
      %v1464 = vpop.permute.xlu0 %1463
      %1465 = vrot.lane.b32.xlu0 %v1324, 123
      %v1466 = vpop.permute.xlu0 %1465
      %1467 = vrot.lane.b32.xlu0 %v1325, 123
      %v1468 = vpop.permute.xlu0 %1467
      %1469 = vrot.lane.b32.xlu0 %v1326, 123
      %v1470 = vpop.permute.xlu0 %1469
      %vm1471 = vcmask 1006592
      %v1472 = vsel %vm1471, %v1456, %v1458
      %v1473 = vsel %vm1471, %v1460, %v1462
      %v1474 = vsel %vm1471, %v1464, %v1466
      %v1475 = vsel %vm1471, %v1468, %v1470
      %1480 = vst [vmem:[#allocation5 + $0xa0] sm:$0xff] %v1472
      %1481 = vst [vmem:[#allocation5 + $0xa8] sm:$0xff] %v1473
      %1482 = vst [vmem:[#allocation5 + $0xb0] sm:$0xff] %v1474
      %1483 = vst [vmem:[#allocation5 + $0xb8] sm:$0xff] %v1475
      %1484 = vrot.lane.b32.xlu0 %v1319, 122
      %v1485 = vpop.permute.xlu0 %1484
      %1486 = vrot.lane.b32.xlu0 %v1320, 122
      %v1487 = vpop.permute.xlu0 %1486
      %1488 = vrot.lane.b32.xlu0 %v1321, 122
      %v1489 = vpop.permute.xlu0 %1488
      %1490 = vrot.lane.b32.xlu0 %v1322, 122
      %v1491 = vpop.permute.xlu0 %1490
      %1492 = vrot.lane.b32.xlu0 %v1323, 122
      %v1493 = vpop.permute.xlu0 %1492
      %1494 = vrot.lane.b32.xlu0 %v1324, 122
      %v1495 = vpop.permute.xlu0 %1494
      %1496 = vrot.lane.b32.xlu0 %v1325, 122
      %v1497 = vpop.permute.xlu0 %1496
      %1498 = vrot.lane.b32.xlu0 %v1326, 122
      %v1499 = vpop.permute.xlu0 %1498
      %vm1500 = vcmask 998400
      %v1501 = vsel %vm1500, %v1485, %v1487
      %v1502 = vsel %vm1500, %v1489, %v1491
      %v1503 = vsel %vm1500, %v1493, %v1495
      %v1504 = vsel %vm1500, %v1497, %v1499
      %1509 = vst [vmem:[#allocation5 + $0xc0] sm:$0xff] %v1501
      %1510 = vst [vmem:[#allocation5 + $0xc8] sm:$0xff] %v1502
      %1511 = vst [vmem:[#allocation5 + $0xd0] sm:$0xff] %v1503
      %1512 = vst [vmem:[#allocation5 + $0xd8] sm:$0xff] %v1504
      %1513 = vrot.lane.b32.xlu0 %v1319, 121
      %v1514 = vpop.permute.xlu0 %1513
      %1515 = vrot.lane.b32.xlu0 %v1320, 121
      %v1516 = vpop.permute.xlu0 %1515
      %1517 = vrot.lane.b32.xlu0 %v1321, 121
      %v1518 = vpop.permute.xlu0 %1517
      %1519 = vrot.lane.b32.xlu0 %v1322, 121
      %v1520 = vpop.permute.xlu0 %1519
      %1521 = vrot.lane.b32.xlu0 %v1323, 121
      %v1522 = vpop.permute.xlu0 %1521
      %1523 = vrot.lane.b32.xlu0 %v1324, 121
      %v1524 = vpop.permute.xlu0 %1523
      %1525 = vrot.lane.b32.xlu0 %v1325, 121
      %v1526 = vpop.permute.xlu0 %1525
      %1527 = vrot.lane.b32.xlu0 %v1326, 121
      %v1528 = vpop.permute.xlu0 %1527
      %vm1529 = vcmask 990208
      %v1530 = vsel %vm1529, %v1514, %v1516
      %v1531 = vsel %vm1529, %v1518, %v1520
      %v1532 = vsel %vm1529, %v1522, %v1524
      %v1533 = vsel %vm1529, %v1526, %v1528
      %1538 = vst [vmem:[#allocation5 + $0xe0] sm:$0xff] %v1530
      %1539 = vst [vmem:[#allocation5 + $0xe8] sm:$0xff] %v1531
      %1540 = vst [vmem:[#allocation5 + $0xf0] sm:$0xff] %v1532
      %1541 = vst [vmem:[#allocation5 + $0xf8] sm:$0xff] %v1533
      %1542 = vrot.lane.b32.xlu0 %v1319, 120
      %v1543 = vpop.permute.xlu0 %1542
      %1544 = vrot.lane.b32.xlu0 %v1320, 120
      %v1545 = vpop.permute.xlu0 %1544
      %1546 = vrot.lane.b32.xlu0 %v1321, 120
      %v1547 = vpop.permute.xlu0 %1546
      %1548 = vrot.lane.b32.xlu0 %v1322, 120
      %v1549 = vpop.permute.xlu0 %1548
      %1550 = vrot.lane.b32.xlu0 %v1323, 120
      %v1551 = vpop.permute.xlu0 %1550
      %1552 = vrot.lane.b32.xlu0 %v1324, 120
      %v1553 = vpop.permute.xlu0 %1552
      %1554 = vrot.lane.b32.xlu0 %v1325, 120
      %v1555 = vpop.permute.xlu0 %1554
      %1556 = vrot.lane.b32.xlu0 %v1326, 120
      %v1557 = vpop.permute.xlu0 %1556
      %v1558 = vsel %vm786, %v1543, %v1545
      %v1559 = vsel %vm786, %v1547, %v1549
      %v1560 = vsel %vm786, %v1551, %v1553
      %v1561 = vsel %vm786, %v1555, %v1557
      %1566 = vst [vmem:[#allocation5 + $0x100] sm:$0xff] %v1558
      %1567 = vst [vmem:[#allocation5 + $0x108] sm:$0xff] %v1559
      %1568 = vst [vmem:[#allocation5 + $0x110] sm:$0xff] %v1560
      %1569 = vst [vmem:[#allocation5 + $0x118] sm:$0xff] %v1561
      %1570 = vrot.lane.b32.xlu0 %v1319, 119
      %v1571 = vpop.permute.xlu0 %1570
      %1572 = vrot.lane.b32.xlu0 %v1320, 119
      %v1573 = vpop.permute.xlu0 %1572
      %1574 = vrot.lane.b32.xlu0 %v1321, 119
      %v1575 = vpop.permute.xlu0 %1574
      %1576 = vrot.lane.b32.xlu0 %v1322, 119
      %v1577 = vpop.permute.xlu0 %1576
      %1578 = vrot.lane.b32.xlu0 %v1323, 119
      %v1579 = vpop.permute.xlu0 %1578
      %1580 = vrot.lane.b32.xlu0 %v1324, 119
      %v1581 = vpop.permute.xlu0 %1580
      %1582 = vrot.lane.b32.xlu0 %v1325, 119
      %v1583 = vpop.permute.xlu0 %1582
      %1584 = vrot.lane.b32.xlu0 %v1326, 119
      %v1585 = vpop.permute.xlu0 %1584
      %vm1586 = vcmask 973824
      %v1587 = vsel %vm1586, %v1571, %v1573
      %v1588 = vsel %vm1586, %v1575, %v1577
      %v1589 = vsel %vm1586, %v1579, %v1581
      %v1590 = vsel %vm1586, %v1583, %v1585
      %1595 = vst [vmem:[#allocation5 + $0x120] sm:$0xff] %v1587
      %1596 = vst [vmem:[#allocation5 + $0x128] sm:$0xff] %v1588
      %1597 = vst [vmem:[#allocation5 + $0x130] sm:$0xff] %v1589
      %1598 = vst [vmem:[#allocation5 + $0x138] sm:$0xff] %v1590
      %1599 = vrot.lane.b32.xlu0 %v1319, 118
      %v1600 = vpop.permute.xlu0 %1599
      %1601 = vrot.lane.b32.xlu0 %v1320, 118
      %v1602 = vpop.permute.xlu0 %1601
      %1603 = vrot.lane.b32.xlu0 %v1321, 118
      %v1604 = vpop.permute.xlu0 %1603
      %1605 = vrot.lane.b32.xlu0 %v1322, 118
      %v1606 = vpop.permute.xlu0 %1605
      %1607 = vrot.lane.b32.xlu0 %v1323, 118
      %v1608 = vpop.permute.xlu0 %1607
      %1609 = vrot.lane.b32.xlu0 %v1324, 118
      %v1610 = vpop.permute.xlu0 %1609
      %1611 = vrot.lane.b32.xlu0 %v1325, 118
      %v1612 = vpop.permute.xlu0 %1611
      %1613 = vrot.lane.b32.xlu0 %v1326, 118
      %v1614 = vpop.permute.xlu0 %1613
      %vm1615 = vcmask 965632
      %v1616 = vsel %vm1615, %v1600, %v1602
      %v1617 = vsel %vm1615, %v1604, %v1606
      %v1618 = vsel %vm1615, %v1608, %v1610
      %v1619 = vsel %vm1615, %v1612, %v1614
      %1624 = vst [vmem:[#allocation5 + $0x140] sm:$0xff] %v1616
      %1625 = vst [vmem:[#allocation5 + $0x148] sm:$0xff] %v1617
      %1626 = vst [vmem:[#allocation5 + $0x150] sm:$0xff] %v1618
      %1627 = vst [vmem:[#allocation5 + $0x158] sm:$0xff] %v1619
      %1628 = vrot.lane.b32.xlu0 %v1319, 117
      %v1629 = vpop.permute.xlu0 %1628
      %1630 = vrot.lane.b32.xlu0 %v1320, 117
      %v1631 = vpop.permute.xlu0 %1630
      %1632 = vrot.lane.b32.xlu0 %v1321, 117
      %v1633 = vpop.permute.xlu0 %1632
      %1634 = vrot.lane.b32.xlu0 %v1322, 117
      %v1635 = vpop.permute.xlu0 %1634
      %1636 = vrot.lane.b32.xlu0 %v1323, 117
      %v1637 = vpop.permute.xlu0 %1636
      %1638 = vrot.lane.b32.xlu0 %v1324, 117
      %v1639 = vpop.permute.xlu0 %1638
      %1640 = vrot.lane.b32.xlu0 %v1325, 117
      %v1641 = vpop.permute.xlu0 %1640
      %1642 = vrot.lane.b32.xlu0 %v1326, 117
      %v1643 = vpop.permute.xlu0 %1642
      %vm1644 = vcmask 957440
      %v1645 = vsel %vm1644, %v1629, %v1631
      %v1646 = vsel %vm1644, %v1633, %v1635
      %v1647 = vsel %vm1644, %v1637, %v1639
      %v1648 = vsel %vm1644, %v1641, %v1643
      %1653 = vst [vmem:[#allocation5 + $0x160] sm:$0xff] %v1645
      %1654 = vst [vmem:[#allocation5 + $0x168] sm:$0xff] %v1646
      %1655 = vst [vmem:[#allocation5 + $0x170] sm:$0xff] %v1647
      %1656 = vst [vmem:[#allocation5 + $0x178] sm:$0xff] %v1648
      %1657 = vrot.lane.b32.xlu0 %v1319, 116
      %v1658 = vpop.permute.xlu0 %1657
      %1659 = vrot.lane.b32.xlu0 %v1320, 116
      %v1660 = vpop.permute.xlu0 %1659
      %1661 = vrot.lane.b32.xlu0 %v1321, 116
      %v1662 = vpop.permute.xlu0 %1661
      %1663 = vrot.lane.b32.xlu0 %v1322, 116
      %v1664 = vpop.permute.xlu0 %1663
      %1665 = vrot.lane.b32.xlu0 %v1323, 116
      %v1666 = vpop.permute.xlu0 %1665
      %1667 = vrot.lane.b32.xlu0 %v1324, 116
      %v1668 = vpop.permute.xlu0 %1667
      %1669 = vrot.lane.b32.xlu0 %v1325, 116
      %v1670 = vpop.permute.xlu0 %1669
      %1671 = vrot.lane.b32.xlu0 %v1326, 116
      %v1672 = vpop.permute.xlu0 %1671
      %vm1673 = vcmask 949248
      %v1674 = vsel %vm1673, %v1658, %v1660
      %v1675 = vsel %vm1673, %v1662, %v1664
      %v1676 = vsel %vm1673, %v1666, %v1668
      %v1677 = vsel %vm1673, %v1670, %v1672
      %1682 = vst [vmem:[#allocation5 + $0x180] sm:$0xff] %v1674
      %1683 = vst [vmem:[#allocation5 + $0x188] sm:$0xff] %v1675
      %1684 = vst [vmem:[#allocation5 + $0x190] sm:$0xff] %v1676
      %1685 = vst [vmem:[#allocation5 + $0x198] sm:$0xff] %v1677
      %1686 = vrot.lane.b32.xlu0 %v1319, 115
      %v1687 = vpop.permute.xlu0 %1686
      %1688 = vrot.lane.b32.xlu0 %v1320, 115
      %v1689 = vpop.permute.xlu0 %1688
      %1690 = vrot.lane.b32.xlu0 %v1321, 115
      %v1691 = vpop.permute.xlu0 %1690
      %1692 = vrot.lane.b32.xlu0 %v1322, 115
      %v1693 = vpop.permute.xlu0 %1692
      %1694 = vrot.lane.b32.xlu0 %v1323, 115
      %v1695 = vpop.permute.xlu0 %1694
      %1696 = vrot.lane.b32.xlu0 %v1324, 115
      %v1697 = vpop.permute.xlu0 %1696
      %1698 = vrot.lane.b32.xlu0 %v1325, 115
      %v1699 = vpop.permute.xlu0 %1698
      %1700 = vrot.lane.b32.xlu0 %v1326, 115
      %v1701 = vpop.permute.xlu0 %1700
      %vm1702 = vcmask 941056
      %v1703 = vsel %vm1702, %v1687, %v1689
      %v1704 = vsel %vm1702, %v1691, %v1693
      %v1705 = vsel %vm1702, %v1695, %v1697
      %v1706 = vsel %vm1702, %v1699, %v1701
      %1711 = vst [vmem:[#allocation5 + $0x1a0] sm:$0xff] %v1703
      %1712 = vst [vmem:[#allocation5 + $0x1a8] sm:$0xff] %v1704
      %1713 = vst [vmem:[#allocation5 + $0x1b0] sm:$0xff] %v1705
      %1714 = vst [vmem:[#allocation5 + $0x1b8] sm:$0xff] %v1706
      %1715 = vrot.lane.b32.xlu0 %v1319, 114
      %v1716 = vpop.permute.xlu0 %1715
      %1717 = vrot.lane.b32.xlu0 %v1320, 114
      %v1718 = vpop.permute.xlu0 %1717
      %1719 = vrot.lane.b32.xlu0 %v1321, 114
      %v1720 = vpop.permute.xlu0 %1719
      %1721 = vrot.lane.b32.xlu0 %v1322, 114
      %v1722 = vpop.permute.xlu0 %1721
      %1723 = vrot.lane.b32.xlu0 %v1323, 114
      %v1724 = vpop.permute.xlu0 %1723
      %1725 = vrot.lane.b32.xlu0 %v1324, 114
      %v1726 = vpop.permute.xlu0 %1725
      %1727 = vrot.lane.b32.xlu0 %v1325, 114
      %v1728 = vpop.permute.xlu0 %1727
      %1729 = vrot.lane.b32.xlu0 %v1326, 114
      %v1730 = vpop.permute.xlu0 %1729
      %vm1731 = vcmask 932864
      %v1732 = vsel %vm1731, %v1716, %v1718
      %v1733 = vsel %vm1731, %v1720, %v1722
      %v1734 = vsel %vm1731, %v1724, %v1726
      %v1735 = vsel %vm1731, %v1728, %v1730
      %1740 = vst [vmem:[#allocation5 + $0x1c0] sm:$0xff] %v1732
      %1741 = vst [vmem:[#allocation5 + $0x1c8] sm:$0xff] %v1733
      %1742 = vst [vmem:[#allocation5 + $0x1d0] sm:$0xff] %v1734
      %1743 = vst [vmem:[#allocation5 + $0x1d8] sm:$0xff] %v1735
      %v1744 = vld [vmem:[#allocation5] sm:$0xff]
      %v1745 = vld [vmem:[#allocation5 + $0x8] sm:$0xff]
      %v1746 = vld [vmem:[#allocation5 + $0x10] sm:$0xff]
      %v1747 = vld [vmem:[#allocation5 + $0x18] sm:$0xff]
      %v1748 = vld [vmem:[#allocation5 + $0x20] sm:$0xff]
      %v1749 = vld [vmem:[#allocation5 + $0x28] sm:$0xff]
      %v1750 = vld [vmem:[#allocation5 + $0x30] sm:$0xff]
      %v1751 = vld [vmem:[#allocation5 + $0x38] sm:$0xff]
      %v1752 = vld [vmem:[#allocation5 + $0x40] sm:$0xff]
      %v1753 = vld [vmem:[#allocation5 + $0x48] sm:$0xff]
      %v1754 = vld [vmem:[#allocation5 + $0x50] sm:$0xff]
      %v1755 = vld [vmem:[#allocation5 + $0x58] sm:$0xff]
      %v1756 = vld [vmem:[#allocation5 + $0x60] sm:$0xff]
      %v1757 = vld [vmem:[#allocation5 + $0x68] sm:$0xff]
      %v1758 = vld [vmem:[#allocation5 + $0x70] sm:$0xff]
      %v1759 = vld [vmem:[#allocation5 + $0x78] sm:$0xff]
      %v1760 = vld [vmem:[#allocation5 + $0x80] sm:$0xff]
      %v1761 = vld [vmem:[#allocation5 + $0x88] sm:$0xff]
      %v1762 = vld [vmem:[#allocation5 + $0x90] sm:$0xff]
      %v1763 = vld [vmem:[#allocation5 + $0x98] sm:$0xff]
      %v1764 = vld [vmem:[#allocation5 + $0xa0] sm:$0xff]
      %v1765 = vld [vmem:[#allocation5 + $0xa8] sm:$0xff]
      %v1766 = vld [vmem:[#allocation5 + $0xb0] sm:$0xff]
      %v1767 = vld [vmem:[#allocation5 + $0xb8] sm:$0xff]
      %v1768 = vld [vmem:[#allocation5 + $0xc0] sm:$0xff]
      %v1769 = vld [vmem:[#allocation5 + $0xc8] sm:$0xff]
      %v1770 = vld [vmem:[#allocation5 + $0xd0] sm:$0xff]
      %v1771 = vld [vmem:[#allocation5 + $0xd8] sm:$0xff]
      %v1772 = vld [vmem:[#allocation5 + $0xe0] sm:$0xff]
      %v1773 = vld [vmem:[#allocation5 + $0xe8] sm:$0xff]
      %v1774 = vld [vmem:[#allocation5 + $0xf0] sm:$0xff]
      %v1775 = vld [vmem:[#allocation5 + $0xf8] sm:$0xff]
      %v1776 = vld [vmem:[#allocation5 + $0x100] sm:$0xff]
      %v1777 = vld [vmem:[#allocation5 + $0x108] sm:$0xff]
      %v1778 = vld [vmem:[#allocation5 + $0x110] sm:$0xff]
      %v1779 = vld [vmem:[#allocation5 + $0x118] sm:$0xff]
      %v1780 = vld [vmem:[#allocation5 + $0x120] sm:$0xff]
      %v1781 = vld [vmem:[#allocation5 + $0x128] sm:$0xff]
      %v1782 = vld [vmem:[#allocation5 + $0x130] sm:$0xff]
      %v1783 = vld [vmem:[#allocation5 + $0x138] sm:$0xff]
      %v1784 = vld [vmem:[#allocation5 + $0x140] sm:$0xff]
      %v1785 = vld [vmem:[#allocation5 + $0x148] sm:$0xff]
      %v1786 = vld [vmem:[#allocation5 + $0x150] sm:$0xff]
      %v1787 = vld [vmem:[#allocation5 + $0x158] sm:$0xff]
      %v1788 = vld [vmem:[#allocation5 + $0x160] sm:$0xff]
      %v1789 = vld [vmem:[#allocation5 + $0x168] sm:$0xff]
      %v1790 = vld [vmem:[#allocation5 + $0x170] sm:$0xff]
      %v1791 = vld [vmem:[#allocation5 + $0x178] sm:$0xff]
      %v1792 = vld [vmem:[#allocation5 + $0x180] sm:$0xff]
      %v1793 = vld [vmem:[#allocation5 + $0x188] sm:$0xff]
      %v1794 = vld [vmem:[#allocation5 + $0x190] sm:$0xff]
      %v1795 = vld [vmem:[#allocation5 + $0x198] sm:$0xff]
      %v1796 = vld [vmem:[#allocation5 + $0x1a0] sm:$0xff]
      %v1797 = vld [vmem:[#allocation5 + $0x1a8] sm:$0xff]
      %v1798 = vld [vmem:[#allocation5 + $0x1b0] sm:$0xff]
      %v1799 = vld [vmem:[#allocation5 + $0x1b8] sm:$0xff]
      %v1800 = vld [vmem:[#allocation5 + $0x1c0] sm:$0xff]
      %v1801 = vld [vmem:[#allocation5 + $0x1c8] sm:$0xff]
      %v1802 = vld [vmem:[#allocation5 + $0x1d0] sm:$0xff]
      %v1803 = vld [vmem:[#allocation5 + $0x1d8] sm:$0xff]
      %v1804 = vpack.c.bf16 %v1745, %v1744
      %v1805 = vpack.c.bf16 %v1747, %v1746
      %v1806 = vpack.c.bf16 %v1749, %v1748
      %v1807 = vpack.c.bf16 %v1751, %v1750
      %v1808 = vpack.c.bf16 %v1753, %v1752
      %v1809 = vpack.c.bf16 %v1755, %v1754
      %v1810 = vpack.c.bf16 %v1757, %v1756
      %v1811 = vpack.c.bf16 %v1759, %v1758
      %v1812 = vpack.c.bf16 %v1761, %v1760
      %v1813 = vpack.c.bf16 %v1763, %v1762
      %v1814 = vpack.c.bf16 %v1765, %v1764
      %v1815 = vpack.c.bf16 %v1767, %v1766
      %v1816 = vpack.c.bf16 %v1769, %v1768
      %v1817 = vpack.c.bf16 %v1771, %v1770
      %v1818 = vpack.c.bf16 %v1773, %v1772
      %v1819 = vpack.c.bf16 %v1775, %v1774
      %v1820 = vpack.c.bf16 %v1777, %v1776
      %v1821 = vpack.c.bf16 %v1779, %v1778
      %v1822 = vpack.c.bf16 %v1781, %v1780
      %v1823 = vpack.c.bf16 %v1783, %v1782
      %v1824 = vpack.c.bf16 %v1785, %v1784
      %v1825 = vpack.c.bf16 %v1787, %v1786
      %v1826 = vpack.c.bf16 %v1789, %v1788
      %v1827 = vpack.c.bf16 %v1791, %v1790
      %v1828 = vpack.c.bf16 %v1793, %v1792
      %v1829 = vpack.c.bf16 %v1795, %v1794
      %v1830 = vpack.c.bf16 %v1797, %v1796
      %v1831 = vpack.c.bf16 %v1799, %v1798
      %v1832 = vpack.c.bf16 %v1801, %v1800
      %v1833 = vpack.c.bf16 %v1803, %v1802
      %1835 = vset.pattern.permute.xlu0 0
      %1836 = vperm.xlu0 %1835, %v784
      %v1837 = vpop.permute.xlu0 %1836
      %v1839 = vlaneseq
      %v1840 = vshrl.u32 %v1839, 7
      %v1841 = vsub.s32 0, %v1840
      %v1842 = vrot.slane %v1837, %v1841
      %v1845 = vunpack.c.l.s4 1966171168
      %v1846 = vunpack.c.0.s8 %v1845
      %v1847 = vlaneseq
      %v1848 = vshrl.u32 %v1847, 7
      %v1849 = vsub.s32 %v1846, %v1848
      %v1850 = vrot.slane %v783, %v1849
      %v1851 = vcombine.high %v1850, %v1850
      %v1853 = vunpack.c.l.s4 1966171168
      %v1854 = vunpack.c.0.s8 %v1853
      %v1855 = vlaneseq
      %v1856 = vshrl.u32 %v1855, 7
      %v1857 = vsub.s32 %v1854, %v1856
      %v1858 = vrot.slane %v1850, %v1857
      %v1860 = vunpack.c.l.s4 1966171168
      %v1861 = vunpack.c.0.s8 %v1860
      %v1862 = vlaneseq
      %v1863 = vshrl.u32 %v1862, 7
      %v1864 = vsub.s32 %v1861, %v1863
      %v1865 = vrot.slane %v1851, %v1864
      %v1866 = vcombine.high %v1858, %v1858
      %v1867 = vcombine.high %v1865, %v1865
      %v1872 = vsel %vm1063, %v1867, 0
      %1874 = vmatprep.subr.bf16.mxu0 0
      %1875 = vmatpush1.bf16.msra.mxu0 %v1811
      %1876 = vmatprep.subr.bf16.mxu0 0
      %1877 = vmatpush1.bf16.msra.mxu0 %v1810
      %1878 = vmatprep.subr.bf16.mxu0 0
      %1879 = vmatpush1.bf16.msra.mxu0 %v1809
      %1880 = vmatprep.subr.bf16.mxu0 0
      %1881 = vmatpush1.bf16.msra.mxu0 %v1808
      %1882 = vmatprep.subr.bf16.mxu0 0
      %1883 = vmatpush1.bf16.msra.mxu0 %v1807
      %1884 = vmatprep.subr.bf16.mxu0 0
      %1885 = vmatpush1.bf16.msra.mxu0 %v1806
      %1886 = vmatprep.subr.bf16.mxu0 0
      %1887 = vmatpush1.bf16.msra.mxu0 %v1805
      %1888 = vmatprep.subr.bf16.mxu0 0
      %1889 = vmatpush1.bf16.msra.mxu0 %v1804
      %1890 = vmatprep.subr.bf16.mxu0 0
      %1891 = vmatpush2.bf16.msra.mxu0 %v1819
      %1892 = vmatprep.subr.bf16.mxu0 0
      %1893 = vmatpush2.bf16.msra.mxu0 %v1818
      %1894 = vmatprep.subr.bf16.mxu0 0
      %1895 = vmatpush2.bf16.msra.mxu0 %v1817
      %1896 = vmatprep.subr.bf16.mxu0 0
      %1897 = vmatpush2.bf16.msra.mxu0 %v1816
      %1898 = vmatprep.subr.bf16.mxu0 0
      %1899 = vmatpush2.bf16.msra.mxu0 %v1815
      %1900 = vmatprep.subr.bf16.mxu0 0
      %1901 = vmatpush2.bf16.msra.mxu0 %v1814
      %1902 = vmatprep.subr.bf16.mxu0 0
      %1903 = vmatpush2.bf16.msra.mxu0 %v1813
      %1904 = vmatprep.subr.bf16.mxu0 0
      %1905 = vmatpush2.bf16.msra.mxu0 %v1812
      %1906 = vmatprep.mubr.bf16.mxu0 %v1865
      %1907 = vmatmul.mubr.bf16.gmra.mxu0 %v1858
      %v1908 = vpop.f32.mrf.mxu0
      %v1909 = vadd.f32 %v1842, %v1908
      %v1910 = vpop.f32.mrf.mxu0
      %v1911 = vpop.f32.mrf.mxu0
      %v1912 = vpop.f32.mrf.mxu0
      %1913 = vdwg.mxu0
      %1914 = vmatprep.subr.bf16.mxu0 0
      %1915 = vmatpush1.bf16.msra.mxu0 %v1827
      %1916 = vmatprep.subr.bf16.mxu0 0
      %1917 = vmatpush1.bf16.msra.mxu0 %v1826
      %1918 = vmatprep.subr.bf16.mxu0 0
      %1919 = vmatpush1.bf16.msra.mxu0 %v1825
      %1920 = vmatprep.subr.bf16.mxu0 0
      %1921 = vmatpush1.bf16.msra.mxu0 %v1824
      %1922 = vmatprep.subr.bf16.mxu0 0
      %1923 = vmatpush1.bf16.msra.mxu0 %v1823
      %1924 = vmatprep.subr.bf16.mxu0 0
      %1925 = vmatpush1.bf16.msra.mxu0 %v1822
      %1926 = vmatprep.subr.bf16.mxu0 0
      %1927 = vmatpush1.bf16.msra.mxu0 %v1821
      %1928 = vmatprep.subr.bf16.mxu0 0
      %1929 = vmatpush1.bf16.msra.mxu0 %v1820
      %1930 = vmatprep.subr.bf16.mxu0 0
      %1931 = vmatpush2.bf16.msra.mxu0 0
      %1932 = vmatprep.subr.bf16.mxu0 0
      %1933 = vmatpush2.bf16.msra.mxu0 0
      %1934 = vmatprep.subr.bf16.mxu0 0
      %1935 = vmatpush2.bf16.msra.mxu0 %v1833
      %1936 = vmatprep.subr.bf16.mxu0 0
      %1937 = vmatpush2.bf16.msra.mxu0 %v1832
      %1938 = vmatprep.subr.bf16.mxu0 0
      %1939 = vmatpush2.bf16.msra.mxu0 %v1831
      %1940 = vmatprep.subr.bf16.mxu0 0
      %1941 = vmatpush2.bf16.msra.mxu0 %v1830
      %1942 = vmatprep.subr.bf16.mxu0 0
      %1943 = vmatpush2.bf16.msra.mxu0 %v1829
      %1944 = vmatprep.subr.bf16.mxu0 0
      %1945 = vmatpush2.bf16.msra.mxu0 %v1828
      %1946 = vmatprep.mubr.bf16.mxu0 %v1872
      %1947 = vmatmul.mubr.bf16.gmra.mxu0 %v1866
      %v1948 = vpop.f32.mrf.mxu0
      %v1949 = vadd.f32 %v1909, %v1948
      %v1950 = vpop.f32.mrf.mxu0
      %v1951 = vpop.f32.mrf.mxu0
      %v1952 = vpop.f32.mrf.mxu0
      %1953 = vdwg.mxu0
      %vm1954 = vcmp.lt.s32.totalorder %v774, 106
      %v1955 = vsel %vm1954, %v1949, -1e+30
      %vm1956 = vcmask 1040384
      %v1957 = vsel %vm1956, %v1955, -inf
      %1958 = vmax.xlane.f32.xlu0 %v1957
      %v1959 = vpop.xlane.xlu0 %1958
      %v1960 = vsub.f32 %v1955, %v1959
      %v1961 = vmul.f32 %v1960, 1.442695
      %v1962 = vpow.pop %v1961
      %v1963 = vsel %vm1956, %v1962, 0.0
      %1964 = vadd.xlane.f32.xlu0 %v1963
      %v1965 = vpop.xlane.xlu0 %1964
      %v1966 = vrcp.pop %v1965
      %v1967 = vmul.f32 %v1962, %v1966
      %1968 = vst [vmem:[%s768] sm:$0x1] %v1967
      %v1969 = vsel %vm786, %v1311, 0.0
      %1970 = vadd.xlane.f32.xlu0 %v1969
      %v1971 = vpop.xlane.xlu0 %1970
      %v1972 = vsel %vm786, %v1312, 0.0
      %1973 = vadd.xlane.f32.xlu0 %v1972
      %v1974 = vpop.xlane.xlu0 %1973
      %v1975 = vsel %vm786, %v1313, 0.0
      %1976 = vadd.xlane.f32.xlu0 %v1975
      %v1977 = vpop.xlane.xlu0 %1976
      %v1978 = vsel %vm786, %v1314, 0.0
      %1979 = vadd.xlane.f32.xlu0 %v1978
      %v1980 = vpop.xlane.xlu0 %1979
      %v1981 = vrcp.pop 120.0
      %v1982 = vmul.f32 %v1971, %v1981
      %v1983 = vmul.f32 %v1974, %v1981
      %v1984 = vmul.f32 %v1977, %v1981
      %v1985 = vmul.f32 %v1980, %v1981
      %vm1986 = vcmp.eq.s32.totalorder %v774, 0
      %v1987 = vsel %vm1986, 1, 0
      %v1988 = vcvt.s32.f32 %v1987
      %v1989 = vmul.f32 %v1982, %v1988
      %v1990 = vmul.f32 %v1983, %v1988
      %v1991 = vmul.f32 %v1984, %v1988
      %v1992 = vmul.f32 %v1985, %v1988
      %v1993 = vadd.f32 %v1989, 0.0
      %v1994 = vadd.f32 %v1990, 0.0
      %v1995 = vadd.f32 %v1991, 0.0
      %v1996 = vadd.f32 %v1992, 0.0
      %s1997 = scalar_lea.vmem %s0, 8
      %v1998 = vld [vmem:[%s1997] sm:$0xff]
      %1999 = vst.msk [vmem:[#allocation2] sm:$0xff] %vm786, %v1998
      %2001 = vrot.lane.b32.xlu0 %v1998, 127
      %v2002 = vpop.permute.xlu0 %2001
      %2004 = vst.msk [vmem:[#allocation2 + $0x8] sm:$0xff] %vm786, %v2002
      %2005 = vrot.lane.b32.xlu0 %v1998, 126
      %v2006 = vpop.permute.xlu0 %2005
      %2008 = vst.msk [vmem:[#allocation2 + $0x10] sm:$0xff] %vm786, %v2006
      %2009 = vrot.lane.b32.xlu0 %v1998, 125
      %v2010 = vpop.permute.xlu0 %2009
      %2012 = vst.msk [vmem:[#allocation2 + $0x18] sm:$0xff] %vm786, %v2010
      %2013 = vrot.lane.b32.xlu0 %v1998, 124
      %v2014 = vpop.permute.xlu0 %2013
      %2016 = vst.msk [vmem:[#allocation2 + $0x20] sm:$0xff] %vm786, %v2014
      %2017 = vrot.lane.b32.xlu0 %v1998, 123
      %v2018 = vpop.permute.xlu0 %2017
      %2020 = vst.msk [vmem:[#allocation2 + $0x28] sm:$0xff] %vm786, %v2018
      %2021 = vrot.lane.b32.xlu0 %v1998, 122
      %v2022 = vpop.permute.xlu0 %2021
      %2024 = vst.msk [vmem:[#allocation2 + $0x30] sm:$0xff] %vm786, %v2022
      %2025 = vrot.lane.b32.xlu0 %v1998, 121
      %v2026 = vpop.permute.xlu0 %2025
      %2028 = vst.msk [vmem:[#allocation2 + $0x38] sm:$0xff] %vm786, %v2026
      %2029 = vrot.lane.b32.xlu0 %v1998, 120
      %v2030 = vpop.permute.xlu0 %2029
      %2032 = vst.msk [vmem:[#allocation2 + $0x40] sm:$0xff] %vm786, %v2030
      %v2033 = vld [vmem:[#allocation2] sm:$0xff]
      %v2034 = vld [vmem:[#allocation2 + $0x8] sm:$0xff]
      %v2035 = vld [vmem:[#allocation2 + $0x10] sm:$0xff]
      %v2036 = vld [vmem:[#allocation2 + $0x18] sm:$0xff]
      %v2037 = vld [vmem:[#allocation2 + $0x20] sm:$0xff]
      %v2038 = vld [vmem:[#allocation2 + $0x28] sm:$0xff]
      %v2039 = vld [vmem:[#allocation2 + $0x30] sm:$0xff]
      %v2040 = vld [vmem:[#allocation2 + $0x38] sm:$0xff]
      %v2041 = vld [vmem:[#allocation2 + $0x40] sm:$0xff]
      %v2042 = vpack.c.bf16 %v2034, %v2033
      %v2043 = vpack.c.bf16 %v2036, %v2035
      %v2044 = vpack.c.bf16 %v2038, %v2037
      %v2045 = vpack.c.bf16 %v2040, %v2039
      %v2046 = vpack.c.bf16 %v2041, %v2041
      %v2048 = vsel %vm872, %v2046, 0
      %2050 = vmatprep.subr.bf16.mxu0 0
      %2051 = vmatpush1.bf16.msra.mxu0 0
      %2052 = vmatprep.subr.bf16.mxu0 0
      %2053 = vmatpush1.bf16.msra.mxu0 0
      %2054 = vmatprep.subr.bf16.mxu0 0
      %2055 = vmatpush1.bf16.msra.mxu0 0
      %2056 = vmatprep.subr.bf16.mxu0 0
      %2057 = vmatpush1.bf16.msra.mxu0 %v2048
      %2058 = vmatprep.subr.bf16.mxu0 0
      %2059 = vmatpush1.bf16.msra.mxu0 %v2045
      %2060 = vmatprep.subr.bf16.mxu0 0
      %2061 = vmatpush1.bf16.msra.mxu0 %v2044
      %2062 = vmatprep.subr.bf16.mxu0 0
      %2063 = vmatpush1.bf16.msra.mxu0 %v2043
      %2064 = vmatprep.subr.bf16.mxu0 0
      %2065 = vmatpush1.bf16.msra.mxu0 %v2042
      %2066 = vmatprep.subr.bf16.mxu0 0
      %2067 = vmatpush2.bf16.msra.mxu0 0
      %2068 = vmatprep.subr.bf16.mxu0 0
      %2069 = vmatpush2.bf16.msra.mxu0 0
      %2070 = vmatprep.subr.bf16.mxu0 0
      %2071 = vmatpush2.bf16.msra.mxu0 0
      %2072 = vmatprep.subr.bf16.mxu0 0
      %2073 = vmatpush2.bf16.msra.mxu0 0
      %2074 = vmatprep.subr.bf16.mxu0 0
      %2075 = vmatpush2.bf16.msra.mxu0 0
      %2076 = vmatprep.subr.bf16.mxu0 0
      %2077 = vmatpush2.bf16.msra.mxu0 0
      %2078 = vmatprep.subr.bf16.mxu0 0
      %2079 = vmatpush2.bf16.msra.mxu0 0
      %2080 = vmatprep.subr.bf16.mxu0 0
      %2081 = vmatpush2.bf16.msra.mxu0 0
      %2082 = vmatprep.mubr.bf16.mxu0 0
      %2083 = vmatmul.mubr.bf16.gmra.mxu0 %v867
      %v2084 = vpop.f32.mrf.mxu0
      %v2085 = vadd.f32 %v838, %v2084
      %v2086 = vpop.f32.mrf.mxu0
      %v2087 = vpop.f32.mrf.mxu0
      %v2088 = vadd.f32 %v843, %v2087
      %v2089 = vpop.f32.mrf.mxu0
      %2090 = vmatprep.mubr.bf16.mxu0 0
      %2091 = vmatmul.mubr.bf16.gmra.mxu0 %v870
      %v2092 = vpop.f32.mrf.mxu0
      %v2093 = vadd.f32 %v848, %v2092
      %v2094 = vpop.f32.mrf.mxu0
      %v2095 = vpop.f32.mrf.mxu0
      %v2096 = vadd.f32 %v853, %v2095
      %v2097 = vpop.f32.mrf.mxu0
      %2098 = vdwg.mxu0
      %2099 = vst [vmem:[#allocation3] sm:$0xff] 0.0
      %2100 = vst [vmem:[#allocation3 + $0x8] sm:$0xff] 0.0
      %2101 = vst.msk [vmem:[#allocation3 + $0x10] sm:$0xff] %vm927, 0.0
      %2102 = vst [vmem:[#allocation3 + $0x18] sm:$0xff] 0.0
      %2103 = vst [vmem:[#allocation3 + $0x20] sm:$0xff] 0.0
      %2104 = vst.msk [vmem:[#allocation3 + $0x28] sm:$0xff] %vm927, 0.0
      %2105 = vst [vmem:[#allocation3 + $0x30] sm:$0xff] 0.0
      %2106 = vst [vmem:[#allocation3 + $0x38] sm:$0xff] 0.0
      %2107 = vst.msk [vmem:[#allocation3 + $0x40] sm:$0xff] %vm927, 0.0
      %2108 = vst [vmem:[#allocation3 + $0x48] sm:$0xff] 0.0
      %2109 = vst [vmem:[#allocation3 + $0x50] sm:$0xff] 0.0
      %2110 = vst.msk [vmem:[#allocation3 + $0x58] sm:$0xff] %vm927, 0.0
      %2111 = vst.msk [vmem:[#allocation3 + $0x8] sm:$0xff] %vm786, %v2085
      %2112 = vst.msk [vmem:[#allocation3 + $0x20] sm:$0xff] %vm786, %v2088
      %2113 = vst.msk [vmem:[#allocation3 + $0x38] sm:$0xff] %vm786, %v2093
      %2114 = vst.msk [vmem:[#allocation3 + $0x50] sm:$0xff] %vm786, %v2096
      %v2115 = vld [vmem:[#allocation3] sm:$0xff]
      %v2116 = vld [vmem:[#allocation3 + $0x8] sm:$0xff]
      %v2117 = vld [vmem:[#allocation3 + $0x18] sm:$0xff]
      %v2118 = vld [vmem:[#allocation3 + $0x20] sm:$0xff]
      %v2119 = vld [vmem:[#allocation3 + $0x30] sm:$0xff]
      %v2120 = vld [vmem:[#allocation3 + $0x38] sm:$0xff]
      %v2121 = vld [vmem:[#allocation3 + $0x48] sm:$0xff]
      %v2122 = vld [vmem:[#allocation3 + $0x50] sm:$0xff]
      %2131 = vrot.lane.b32.xlu0 %v2115, 2
      %v2132 = vpop.permute.xlu0 %2131
      %2133 = vrot.lane.b32.xlu0 %v2116, 2
      %v2134 = vpop.permute.xlu0 %2133
      %2135 = vrot.lane.b32.xlu0 %v2117, 2
      %v2136 = vpop.permute.xlu0 %2135
      %2137 = vrot.lane.b32.xlu0 %v2118, 2
      %v2138 = vpop.permute.xlu0 %2137
      %2139 = vrot.lane.b32.xlu0 %v2119, 2
      %v2140 = vpop.permute.xlu0 %2139
      %2141 = vrot.lane.b32.xlu0 %v2120, 2
      %v2142 = vpop.permute.xlu0 %2141
      %2143 = vrot.lane.b32.xlu0 %v2121, 2
      %v2144 = vpop.permute.xlu0 %2143
      %2145 = vrot.lane.b32.xlu0 %v2122, 2
      %v2146 = vpop.permute.xlu0 %2145
      %v2147 = vsel %vm974, %v2132, %v2134
      %v2148 = vsel %vm974, %v2136, %v2138
      %v2149 = vsel %vm974, %v2140, %v2142
      %v2150 = vsel %vm974, %v2144, %v2146
      %2155 = vst.msk [vmem:[#allocation4] sm:$0xff] %vm786, %v2147
      %2156 = vst.msk [vmem:[#allocation4 + $0x8] sm:$0xff] %vm786, %v2148
      %2157 = vst.msk [vmem:[#allocation4 + $0x10] sm:$0xff] %vm786, %v2149
      %2158 = vst.msk [vmem:[#allocation4 + $0x18] sm:$0xff] %vm786, %v2150
      %2159 = vst.msk [vmem:[#allocation4 + $0x20] sm:$0xff] %vm786, %v2116
      %2160 = vst.msk [vmem:[#allocation4 + $0x28] sm:$0xff] %vm786, %v2118
      %2161 = vst.msk [vmem:[#allocation4 + $0x30] sm:$0xff] %vm786, %v2120
      %2162 = vst.msk [vmem:[#allocation4 + $0x38] sm:$0xff] %vm786, %v2122
      %2163 = vrot.lane.b32.xlu0 %v2116, 126
      %v2164 = vpop.permute.xlu0 %2163
      %2165 = vrot.lane.b32.xlu0 %v2118, 126
      %v2166 = vpop.permute.xlu0 %2165
      %2167 = vrot.lane.b32.xlu0 %v2120, 126
      %v2168 = vpop.permute.xlu0 %2167
      %2169 = vrot.lane.b32.xlu0 %v2122, 126
      %v2170 = vpop.permute.xlu0 %2169
      %2175 = vst.msk [vmem:[#allocation4 + $0x40] sm:$0xff] %vm786, %v2164
      %2176 = vst.msk [vmem:[#allocation4 + $0x48] sm:$0xff] %vm786, %v2166
      %2177 = vst.msk [vmem:[#allocation4 + $0x50] sm:$0xff] %vm786, %v2168
      %2178 = vst.msk [vmem:[#allocation4 + $0x58] sm:$0xff] %vm786, %v2170
      %v2179 = vld [vmem:[%s716] sm:$0xf]
      %v2180 = vld [vmem:[%s716 + $0x4] sm:$0xf]
      %v2181 = vld [vmem:[%s716 + $0x8] sm:$0xf]
      %v2182 = vld [vmem:[%s716 + $0xc] sm:$0xf]
      %v2183 = vld [vmem:[#allocation4] sm:$0xff]
      %v2184 = vld [vmem:[#allocation4 + $0x8] sm:$0xff]
      %v2185 = vld [vmem:[#allocation4 + $0x10] sm:$0xff]
      %v2186 = vld [vmem:[#allocation4 + $0x18] sm:$0xff]
      %v2187 = vld [vmem:[#allocation4 + $0x20] sm:$0xff]
      %v2188 = vld [vmem:[#allocation4 + $0x28] sm:$0xff]
      %v2189 = vld [vmem:[#allocation4 + $0x30] sm:$0xff]
      %v2190 = vld [vmem:[#allocation4 + $0x38] sm:$0xff]
      %v2191 = vld [vmem:[#allocation4 + $0x40] sm:$0xff]
      %v2192 = vld [vmem:[#allocation4 + $0x48] sm:$0xff]
      %v2193 = vld [vmem:[#allocation4 + $0x50] sm:$0xff]
      %v2194 = vld [vmem:[#allocation4 + $0x58] sm:$0xff]
      %v2195 = vpack.c.bf16 %v2184, %v2183
      %v2196 = vpack.c.bf16 %v2186, %v2185
      %v2197 = vpack.c.bf16 %v2188, %v2187
      %v2198 = vpack.c.bf16 %v2190, %v2189
      %v2199 = vpack.c.bf16 %v2192, %v2191
      %v2200 = vpack.c.bf16 %v2194, %v2193
      %v2201 = vld [vmem:[%s721] sm:$0xff]
      %v2202 = vld [vmem:[%s721 + $0x8] sm:$0xff]
      %v2203 = vld [vmem:[%s721 + $0x10] sm:$0xff]
      %v2204 = vld [vmem:[%s721 + $0x18] sm:$0xff]
      %2206 = vset.pattern.permute.xlu0 0
      %2207 = vperm.xlu0 %2206, %v2201
      %v2208 = vpop.permute.xlu0 %2207
      %2211 = vset.pattern.permute.xlu0 0
      %2212 = vperm.xlu0 %2211, %v2202
      %v2213 = vpop.permute.xlu0 %2212
      %2216 = vset.pattern.permute.xlu0 0
      %2217 = vperm.xlu0 %2216, %v2203
      %v2218 = vpop.permute.xlu0 %2217
      %2221 = vset.pattern.permute.xlu0 0
      %2222 = vperm.xlu0 %2221, %v2204
      %v2223 = vpop.permute.xlu0 %2222
      %v2229 = vunpack.c.l.b16 %v2179
      %v2230 = vunpack.c.l.b16 %v2180
      %v2231 = vunpack.c.l.b16 %v2181
      %v2232 = vunpack.c.l.b16 %v2182
      %v2233 = vpack.c.b16 %v2230, %v2229
      %v2234 = vpack.c.b16 %v2232, %v2231
      %v2236 = vsel %vm1063, %v2233, 0
      %v2239 = vsel %vm1063, %v2234, 0
      %2241 = vmatprep.subr.bf16.mxu0 0
      %2242 = vmatpush1.bf16.msra.mxu0 0
      %2243 = vmatprep.subr.bf16.mxu0 0
      %2244 = vmatpush1.bf16.msra.mxu0 0
      %2245 = vmatprep.subr.bf16.mxu0 0
      %2246 = vmatpush1.bf16.msra.mxu0 %v2200
      %2247 = vmatprep.subr.bf16.mxu0 0
      %2248 = vmatpush1.bf16.msra.mxu0 %v2199
      %2249 = vmatprep.subr.bf16.mxu0 0
      %2250 = vmatpush1.bf16.msra.mxu0 %v2198
      %2251 = vmatprep.subr.bf16.mxu0 0
      %2252 = vmatpush1.bf16.msra.mxu0 %v2197
      %2253 = vmatprep.subr.bf16.mxu0 0
      %2254 = vmatpush1.bf16.msra.mxu0 %v2196
      %2255 = vmatprep.subr.bf16.mxu0 0
      %2256 = vmatpush1.bf16.msra.mxu0 %v2195
      %2257 = vmatprep.subr.bf16.mxu0 0
      %2258 = vmatpush2.bf16.msra.mxu0 0
      %2259 = vmatprep.subr.bf16.mxu0 0
      %2260 = vmatpush2.bf16.msra.mxu0 0
      %2261 = vmatprep.subr.bf16.mxu0 0
      %2262 = vmatpush2.bf16.msra.mxu0 0
      %2263 = vmatprep.subr.bf16.mxu0 0
      %2264 = vmatpush2.bf16.msra.mxu0 0
      %2265 = vmatprep.subr.bf16.mxu0 0
      %2266 = vmatpush2.bf16.msra.mxu0 0
      %2267 = vmatprep.subr.bf16.mxu0 0
      %2268 = vmatpush2.bf16.msra.mxu0 0
      %2269 = vmatprep.subr.bf16.mxu0 0
      %2270 = vmatpush2.bf16.msra.mxu0 0
      %2271 = vmatprep.subr.bf16.mxu0 0
      %2272 = vmatpush2.bf16.msra.mxu0 0
      %2273 = vmatprep.mubr.bf16.mxu0 0
      %2274 = vmatmul.mubr.bf16.gmra.mxu0 %v2236
      %v2275 = vpop.f32.mrf.mxu0
      %v2276 = vadd.f32 %v2208, %v2275
      %v2277 = vpop.f32.mrf.mxu0
      %v2278 = vpop.f32.mrf.mxu0
      %v2279 = vadd.f32 %v2213, %v2278
      %v2280 = vpop.f32.mrf.mxu0
      %2281 = vmatprep.mubr.bf16.mxu0 0
      %2282 = vmatmul.mubr.bf16.gmra.mxu0 %v2239
      %v2283 = vpop.f32.mrf.mxu0
      %v2284 = vadd.f32 %v2218, %v2283
      %v2285 = vpop.f32.mrf.mxu0
      %v2286 = vpop.f32.mrf.mxu0
      %v2287 = vadd.f32 %v2223, %v2286
      %v2288 = vpop.f32.mrf.mxu0
      %2289 = vdwg.mxu0
      %v2290 = vmax.f32 %v2276, 0.0
      %v2291 = vmax.f32 %v2279, 0.0
      %v2292 = vmax.f32 %v2284, 0.0
      %v2293 = vmax.f32 %v2287, 0.0
      %v2294 = vadd.f32 %v2085, %v2290
      %v2295 = vadd.f32 %v2088, %v2291
      %v2296 = vadd.f32 %v2093, %v2292
      %v2297 = vadd.f32 %v2096, %v2293
      %2298 = vst.msk [vmem:[#allocation3 + $0x8] sm:$0xff] %vm786, %v2294
      %2299 = vst.msk [vmem:[#allocation3 + $0x20] sm:$0xff] %vm786, %v2295
      %2300 = vst.msk [vmem:[#allocation3 + $0x38] sm:$0xff] %vm786, %v2296
      %2301 = vst.msk [vmem:[#allocation3 + $0x50] sm:$0xff] %vm786, %v2297
      %v2302 = vld [vmem:[#allocation3] sm:$0xff]
      %v2303 = vld [vmem:[#allocation3 + $0x8] sm:$0xff]
      %v2304 = vld [vmem:[#allocation3 + $0x18] sm:$0xff]
      %v2305 = vld [vmem:[#allocation3 + $0x20] sm:$0xff]
      %v2306 = vld [vmem:[#allocation3 + $0x30] sm:$0xff]
      %v2307 = vld [vmem:[#allocation3 + $0x38] sm:$0xff]
      %v2308 = vld [vmem:[#allocation3 + $0x48] sm:$0xff]
      %v2309 = vld [vmem:[#allocation3 + $0x50] sm:$0xff]
      %2318 = vrot.lane.b32.xlu0 %v2302, 4
      %v2319 = vpop.permute.xlu0 %2318
      %2320 = vrot.lane.b32.xlu0 %v2303, 4
      %v2321 = vpop.permute.xlu0 %2320
      %2322 = vrot.lane.b32.xlu0 %v2304, 4
      %v2323 = vpop.permute.xlu0 %2322
      %2324 = vrot.lane.b32.xlu0 %v2305, 4
      %v2325 = vpop.permute.xlu0 %2324
      %2326 = vrot.lane.b32.xlu0 %v2306, 4
      %v2327 = vpop.permute.xlu0 %2326
      %2328 = vrot.lane.b32.xlu0 %v2307, 4
      %v2329 = vpop.permute.xlu0 %2328
      %2330 = vrot.lane.b32.xlu0 %v2308, 4
      %v2331 = vpop.permute.xlu0 %2330
      %2332 = vrot.lane.b32.xlu0 %v2309, 4
      %v2333 = vpop.permute.xlu0 %2332
      %v2334 = vsel %vm1163, %v2319, %v2321
      %v2335 = vsel %vm1163, %v2323, %v2325
      %v2336 = vsel %vm1163, %v2327, %v2329
      %v2337 = vsel %vm1163, %v2331, %v2333
      %2342 = vst.msk [vmem:[#allocation4] sm:$0xff] %vm786, %v2334
      %2343 = vst.msk [vmem:[#allocation4 + $0x8] sm:$0xff] %vm786, %v2335
      %2344 = vst.msk [vmem:[#allocation4 + $0x10] sm:$0xff] %vm786, %v2336
      %2345 = vst.msk [vmem:[#allocation4 + $0x18] sm:$0xff] %vm786, %v2337
      %2346 = vst.msk [vmem:[#allocation4 + $0x20] sm:$0xff] %vm786, %v2303
      %2347 = vst.msk [vmem:[#allocation4 + $0x28] sm:$0xff] %vm786, %v2305
      %2348 = vst.msk [vmem:[#allocation4 + $0x30] sm:$0xff] %vm786, %v2307
      %2349 = vst.msk [vmem:[#allocation4 + $0x38] sm:$0xff] %vm786, %v2309
      %2350 = vrot.lane.b32.xlu0 %v2303, 124
      %v2351 = vpop.permute.xlu0 %2350
      %2352 = vrot.lane.b32.xlu0 %v2305, 124
      %v2353 = vpop.permute.xlu0 %2352
      %2354 = vrot.lane.b32.xlu0 %v2307, 124
      %v2355 = vpop.permute.xlu0 %2354
      %2356 = vrot.lane.b32.xlu0 %v2309, 124
      %v2357 = vpop.permute.xlu0 %2356
      %2362 = vst.msk [vmem:[#allocation4 + $0x40] sm:$0xff] %vm786, %v2351
      %2363 = vst.msk [vmem:[#allocation4 + $0x48] sm:$0xff] %vm786, %v2353
      %2364 = vst.msk [vmem:[#allocation4 + $0x50] sm:$0xff] %vm786, %v2355
      %2365 = vst.msk [vmem:[#allocation4 + $0x58] sm:$0xff] %vm786, %v2357
      %v2366 = vld [vmem:[%s726] sm:$0xf]
      %v2367 = vld [vmem:[%s726 + $0x4] sm:$0xf]
      %v2368 = vld [vmem:[%s726 + $0x8] sm:$0xf]
      %v2369 = vld [vmem:[%s726 + $0xc] sm:$0xf]
      %v2370 = vld [vmem:[#allocation4] sm:$0xff]
      %v2371 = vld [vmem:[#allocation4 + $0x8] sm:$0xff]
      %v2372 = vld [vmem:[#allocation4 + $0x10] sm:$0xff]
      %v2373 = vld [vmem:[#allocation4 + $0x18] sm:$0xff]
      %v2374 = vld [vmem:[#allocation4 + $0x20] sm:$0xff]
      %v2375 = vld [vmem:[#allocation4 + $0x28] sm:$0xff]
      %v2376 = vld [vmem:[#allocation4 + $0x30] sm:$0xff]
      %v2377 = vld [vmem:[#allocation4 + $0x38] sm:$0xff]
      %v2378 = vld [vmem:[#allocation4 + $0x40] sm:$0xff]
      %v2379 = vld [vmem:[#allocation4 + $0x48] sm:$0xff]
      %v2380 = vld [vmem:[#allocation4 + $0x50] sm:$0xff]
      %v2381 = vld [vmem:[#allocation4 + $0x58] sm:$0xff]
      %v2382 = vpack.c.bf16 %v2371, %v2370
      %v2383 = vpack.c.bf16 %v2373, %v2372
      %v2384 = vpack.c.bf16 %v2375, %v2374
      %v2385 = vpack.c.bf16 %v2377, %v2376
      %v2386 = vpack.c.bf16 %v2379, %v2378
      %v2387 = vpack.c.bf16 %v2381, %v2380
      %v2388 = vld [vmem:[%s731] sm:$0xff]
      %v2389 = vld [vmem:[%s731 + $0x8] sm:$0xff]
      %v2390 = vld [vmem:[%s731 + $0x10] sm:$0xff]
      %v2391 = vld [vmem:[%s731 + $0x18] sm:$0xff]
      %2393 = vset.pattern.permute.xlu0 0
      %2394 = vperm.xlu0 %2393, %v2388
      %v2395 = vpop.permute.xlu0 %2394
      %2398 = vset.pattern.permute.xlu0 0
      %2399 = vperm.xlu0 %2398, %v2389
      %v2400 = vpop.permute.xlu0 %2399
      %2403 = vset.pattern.permute.xlu0 0
      %2404 = vperm.xlu0 %2403, %v2390
      %v2405 = vpop.permute.xlu0 %2404
      %2408 = vset.pattern.permute.xlu0 0
      %2409 = vperm.xlu0 %2408, %v2391
      %v2410 = vpop.permute.xlu0 %2409
      %v2416 = vunpack.c.l.b16 %v2366
      %v2417 = vunpack.c.l.b16 %v2367
      %v2418 = vunpack.c.l.b16 %v2368
      %v2419 = vunpack.c.l.b16 %v2369
      %v2420 = vpack.c.b16 %v2417, %v2416
      %v2421 = vpack.c.b16 %v2419, %v2418
      %v2423 = vsel %vm1063, %v2420, 0
      %v2426 = vsel %vm1063, %v2421, 0
      %2428 = vmatprep.subr.bf16.mxu0 0
      %2429 = vmatpush1.bf16.msra.mxu0 0
      %2430 = vmatprep.subr.bf16.mxu0 0
      %2431 = vmatpush1.bf16.msra.mxu0 0
      %2432 = vmatprep.subr.bf16.mxu0 0
      %2433 = vmatpush1.bf16.msra.mxu0 %v2387
      %2434 = vmatprep.subr.bf16.mxu0 0
      %2435 = vmatpush1.bf16.msra.mxu0 %v2386
      %2436 = vmatprep.subr.bf16.mxu0 0
      %2437 = vmatpush1.bf16.msra.mxu0 %v2385
      %2438 = vmatprep.subr.bf16.mxu0 0
      %2439 = vmatpush1.bf16.msra.mxu0 %v2384
      %2440 = vmatprep.subr.bf16.mxu0 0
      %2441 = vmatpush1.bf16.msra.mxu0 %v2383
      %2442 = vmatprep.subr.bf16.mxu0 0
      %2443 = vmatpush1.bf16.msra.mxu0 %v2382
      %2444 = vmatprep.subr.bf16.mxu0 0
      %2445 = vmatpush2.bf16.msra.mxu0 0
      %2446 = vmatprep.subr.bf16.mxu0 0
      %2447 = vmatpush2.bf16.msra.mxu0 0
      %2448 = vmatprep.subr.bf16.mxu0 0
      %2449 = vmatpush2.bf16.msra.mxu0 0
      %2450 = vmatprep.subr.bf16.mxu0 0
      %2451 = vmatpush2.bf16.msra.mxu0 0
      %2452 = vmatprep.subr.bf16.mxu0 0
      %2453 = vmatpush2.bf16.msra.mxu0 0
      %2454 = vmatprep.subr.bf16.mxu0 0
      %2455 = vmatpush2.bf16.msra.mxu0 0
      %2456 = vmatprep.subr.bf16.mxu0 0
      %2457 = vmatpush2.bf16.msra.mxu0 0
      %2458 = vmatprep.subr.bf16.mxu0 0
      %2459 = vmatpush2.bf16.msra.mxu0 0
      %2460 = vmatprep.mubr.bf16.mxu0 0
      %2461 = vmatmul.mubr.bf16.gmra.mxu0 %v2423
      %v2462 = vpop.f32.mrf.mxu0
      %v2463 = vadd.f32 %v2395, %v2462
      %v2464 = vpop.f32.mrf.mxu0
      %v2465 = vpop.f32.mrf.mxu0
      %v2466 = vadd.f32 %v2400, %v2465
      %v2467 = vpop.f32.mrf.mxu0
      %2468 = vmatprep.mubr.bf16.mxu0 0
      %2469 = vmatmul.mubr.bf16.gmra.mxu0 %v2426
      %v2470 = vpop.f32.mrf.mxu0
      %v2471 = vadd.f32 %v2405, %v2470
      %v2472 = vpop.f32.mrf.mxu0
      %v2473 = vpop.f32.mrf.mxu0
      %v2474 = vadd.f32 %v2410, %v2473
      %v2475 = vpop.f32.mrf.mxu0
      %2476 = vdwg.mxu0
      %v2477 = vmax.f32 %v2463, 0.0
      %v2478 = vmax.f32 %v2466, 0.0
      %v2479 = vmax.f32 %v2471, 0.0
      %v2480 = vmax.f32 %v2474, 0.0
      %v2481 = vadd.f32 %v2294, %v2477
      %v2482 = vadd.f32 %v2295, %v2478
      %v2483 = vadd.f32 %v2296, %v2479
      %v2484 = vadd.f32 %v2297, %v2480
      %2485 = vst.msk [vmem:[#allocation3 + $0x8] sm:$0xff] %vm786, %v2481
      %2486 = vst.msk [vmem:[#allocation3 + $0x20] sm:$0xff] %vm786, %v2482
      %2487 = vst.msk [vmem:[#allocation3 + $0x38] sm:$0xff] %vm786, %v2483
      %2488 = vst.msk [vmem:[#allocation3 + $0x50] sm:$0xff] %vm786, %v2484
      %v2489 = vld [vmem:[#allocation3 + $0x8] sm:$0xff]
      %v2490 = vld [vmem:[#allocation3 + $0x10] sm:$0xff]
      %v2491 = vld [vmem:[#allocation3 + $0x20] sm:$0xff]
      %v2492 = vld [vmem:[#allocation3 + $0x28] sm:$0xff]
      %v2493 = vld [vmem:[#allocation3 + $0x38] sm:$0xff]
      %v2494 = vld [vmem:[#allocation3 + $0x40] sm:$0xff]
      %v2495 = vld [vmem:[#allocation3 + $0x50] sm:$0xff]
      %v2496 = vld [vmem:[#allocation3 + $0x58] sm:$0xff]
      %2497 = vst [vmem:[#allocation5] sm:$0xff] %v2489
      %2498 = vst [vmem:[#allocation5 + $0x8] sm:$0xff] %v2491
      %2499 = vst [vmem:[#allocation5 + $0x10] sm:$0xff] %v2493
      %2500 = vst [vmem:[#allocation5 + $0x18] sm:$0xff] %v2495
      %2509 = vrot.lane.b32.xlu0 %v2489, 127
      %v2510 = vpop.permute.xlu0 %2509
      %2511 = vrot.lane.b32.xlu0 %v2490, 127
      %v2512 = vpop.permute.xlu0 %2511
      %2513 = vrot.lane.b32.xlu0 %v2491, 127
      %v2514 = vpop.permute.xlu0 %2513
      %2515 = vrot.lane.b32.xlu0 %v2492, 127
      %v2516 = vpop.permute.xlu0 %2515
      %2517 = vrot.lane.b32.xlu0 %v2493, 127
      %v2518 = vpop.permute.xlu0 %2517
      %2519 = vrot.lane.b32.xlu0 %v2494, 127
      %v2520 = vpop.permute.xlu0 %2519
      %2521 = vrot.lane.b32.xlu0 %v2495, 127
      %v2522 = vpop.permute.xlu0 %2521
      %2523 = vrot.lane.b32.xlu0 %v2496, 127
      %v2524 = vpop.permute.xlu0 %2523
      %v2525 = vsel %vm1355, %v2510, %v2512
      %v2526 = vsel %vm1355, %v2514, %v2516
      %v2527 = vsel %vm1355, %v2518, %v2520
      %v2528 = vsel %vm1355, %v2522, %v2524
      %2533 = vst [vmem:[#allocation5 + $0x20] sm:$0xff] %v2525
      %2534 = vst [vmem:[#allocation5 + $0x28] sm:$0xff] %v2526
      %2535 = vst [vmem:[#allocation5 + $0x30] sm:$0xff] %v2527
      %2536 = vst [vmem:[#allocation5 + $0x38] sm:$0xff] %v2528
      %2537 = vrot.lane.b32.xlu0 %v2489, 126
      %v2538 = vpop.permute.xlu0 %2537
      %2539 = vrot.lane.b32.xlu0 %v2490, 126
      %v2540 = vpop.permute.xlu0 %2539
      %2541 = vrot.lane.b32.xlu0 %v2491, 126
      %v2542 = vpop.permute.xlu0 %2541
      %2543 = vrot.lane.b32.xlu0 %v2492, 126
      %v2544 = vpop.permute.xlu0 %2543
      %2545 = vrot.lane.b32.xlu0 %v2493, 126
      %v2546 = vpop.permute.xlu0 %2545
      %2547 = vrot.lane.b32.xlu0 %v2494, 126
      %v2548 = vpop.permute.xlu0 %2547
      %2549 = vrot.lane.b32.xlu0 %v2495, 126
      %v2550 = vpop.permute.xlu0 %2549
      %2551 = vrot.lane.b32.xlu0 %v2496, 126
      %v2552 = vpop.permute.xlu0 %2551
      %v2553 = vsel %vm1384, %v2538, %v2540
      %v2554 = vsel %vm1384, %v2542, %v2544
      %v2555 = vsel %vm1384, %v2546, %v2548
      %v2556 = vsel %vm1384, %v2550, %v2552
      %2561 = vst [vmem:[#allocation5 + $0x40] sm:$0xff] %v2553
      %2562 = vst [vmem:[#allocation5 + $0x48] sm:$0xff] %v2554
      %2563 = vst [vmem:[#allocation5 + $0x50] sm:$0xff] %v2555
      %2564 = vst [vmem:[#allocation5 + $0x58] sm:$0xff] %v2556
      %2565 = vrot.lane.b32.xlu0 %v2489, 125
      %v2566 = vpop.permute.xlu0 %2565
      %2567 = vrot.lane.b32.xlu0 %v2490, 125
      %v2568 = vpop.permute.xlu0 %2567
      %2569 = vrot.lane.b32.xlu0 %v2491, 125
      %v2570 = vpop.permute.xlu0 %2569
      %2571 = vrot.lane.b32.xlu0 %v2492, 125
      %v2572 = vpop.permute.xlu0 %2571
      %2573 = vrot.lane.b32.xlu0 %v2493, 125
      %v2574 = vpop.permute.xlu0 %2573
      %2575 = vrot.lane.b32.xlu0 %v2494, 125
      %v2576 = vpop.permute.xlu0 %2575
      %2577 = vrot.lane.b32.xlu0 %v2495, 125
      %v2578 = vpop.permute.xlu0 %2577
      %2579 = vrot.lane.b32.xlu0 %v2496, 125
      %v2580 = vpop.permute.xlu0 %2579
      %v2581 = vsel %vm1413, %v2566, %v2568
      %v2582 = vsel %vm1413, %v2570, %v2572
      %v2583 = vsel %vm1413, %v2574, %v2576
      %v2584 = vsel %vm1413, %v2578, %v2580
      %2589 = vst [vmem:[#allocation5 + $0x60] sm:$0xff] %v2581
      %2590 = vst [vmem:[#allocation5 + $0x68] sm:$0xff] %v2582
      %2591 = vst [vmem:[#allocation5 + $0x70] sm:$0xff] %v2583
      %2592 = vst [vmem:[#allocation5 + $0x78] sm:$0xff] %v2584
      %2593 = vrot.lane.b32.xlu0 %v2489, 124
      %v2594 = vpop.permute.xlu0 %2593
      %2595 = vrot.lane.b32.xlu0 %v2490, 124
      %v2596 = vpop.permute.xlu0 %2595
      %2597 = vrot.lane.b32.xlu0 %v2491, 124
      %v2598 = vpop.permute.xlu0 %2597
      %2599 = vrot.lane.b32.xlu0 %v2492, 124
      %v2600 = vpop.permute.xlu0 %2599
      %2601 = vrot.lane.b32.xlu0 %v2493, 124
      %v2602 = vpop.permute.xlu0 %2601
      %2603 = vrot.lane.b32.xlu0 %v2494, 124
      %v2604 = vpop.permute.xlu0 %2603
      %2605 = vrot.lane.b32.xlu0 %v2495, 124
      %v2606 = vpop.permute.xlu0 %2605
      %2607 = vrot.lane.b32.xlu0 %v2496, 124
      %v2608 = vpop.permute.xlu0 %2607
      %v2609 = vsel %vm1442, %v2594, %v2596
      %v2610 = vsel %vm1442, %v2598, %v2600
      %v2611 = vsel %vm1442, %v2602, %v2604
      %v2612 = vsel %vm1442, %v2606, %v2608
      %2617 = vst [vmem:[#allocation5 + $0x80] sm:$0xff] %v2609
      %2618 = vst [vmem:[#allocation5 + $0x88] sm:$0xff] %v2610
      %2619 = vst [vmem:[#allocation5 + $0x90] sm:$0xff] %v2611
      %2620 = vst [vmem:[#allocation5 + $0x98] sm:$0xff] %v2612
      %2621 = vrot.lane.b32.xlu0 %v2489, 123
      %v2622 = vpop.permute.xlu0 %2621
      %2623 = vrot.lane.b32.xlu0 %v2490, 123
      %v2624 = vpop.permute.xlu0 %2623
      %2625 = vrot.lane.b32.xlu0 %v2491, 123
      %v2626 = vpop.permute.xlu0 %2625
      %2627 = vrot.lane.b32.xlu0 %v2492, 123
      %v2628 = vpop.permute.xlu0 %2627
      %2629 = vrot.lane.b32.xlu0 %v2493, 123
      %v2630 = vpop.permute.xlu0 %2629
      %2631 = vrot.lane.b32.xlu0 %v2494, 123
      %v2632 = vpop.permute.xlu0 %2631
      %2633 = vrot.lane.b32.xlu0 %v2495, 123
      %v2634 = vpop.permute.xlu0 %2633
      %2635 = vrot.lane.b32.xlu0 %v2496, 123
      %v2636 = vpop.permute.xlu0 %2635
      %v2637 = vsel %vm1471, %v2622, %v2624
      %v2638 = vsel %vm1471, %v2626, %v2628
      %v2639 = vsel %vm1471, %v2630, %v2632
      %v2640 = vsel %vm1471, %v2634, %v2636
      %2645 = vst [vmem:[#allocation5 + $0xa0] sm:$0xff] %v2637
      %2646 = vst [vmem:[#allocation5 + $0xa8] sm:$0xff] %v2638
      %2647 = vst [vmem:[#allocation5 + $0xb0] sm:$0xff] %v2639
      %2648 = vst [vmem:[#allocation5 + $0xb8] sm:$0xff] %v2640
      %2649 = vrot.lane.b32.xlu0 %v2489, 122
      %v2650 = vpop.permute.xlu0 %2649
      %2651 = vrot.lane.b32.xlu0 %v2490, 122
      %v2652 = vpop.permute.xlu0 %2651
      %2653 = vrot.lane.b32.xlu0 %v2491, 122
      %v2654 = vpop.permute.xlu0 %2653
      %2655 = vrot.lane.b32.xlu0 %v2492, 122
      %v2656 = vpop.permute.xlu0 %2655
      %2657 = vrot.lane.b32.xlu0 %v2493, 122
      %v2658 = vpop.permute.xlu0 %2657
      %2659 = vrot.lane.b32.xlu0 %v2494, 122
      %v2660 = vpop.permute.xlu0 %2659
      %2661 = vrot.lane.b32.xlu0 %v2495, 122
      %v2662 = vpop.permute.xlu0 %2661
      %2663 = vrot.lane.b32.xlu0 %v2496, 122
      %v2664 = vpop.permute.xlu0 %2663
      %v2665 = vsel %vm1500, %v2650, %v2652
      %v2666 = vsel %vm1500, %v2654, %v2656
      %v2667 = vsel %vm1500, %v2658, %v2660
      %v2668 = vsel %vm1500, %v2662, %v2664
      %2673 = vst [vmem:[#allocation5 + $0xc0] sm:$0xff] %v2665
      %2674 = vst [vmem:[#allocation5 + $0xc8] sm:$0xff] %v2666
      %2675 = vst [vmem:[#allocation5 + $0xd0] sm:$0xff] %v2667
      %2676 = vst [vmem:[#allocation5 + $0xd8] sm:$0xff] %v2668
      %2677 = vrot.lane.b32.xlu0 %v2489, 121
      %v2678 = vpop.permute.xlu0 %2677
      %2679 = vrot.lane.b32.xlu0 %v2490, 121
      %v2680 = vpop.permute.xlu0 %2679
      %2681 = vrot.lane.b32.xlu0 %v2491, 121
      %v2682 = vpop.permute.xlu0 %2681
      %2683 = vrot.lane.b32.xlu0 %v2492, 121
      %v2684 = vpop.permute.xlu0 %2683
      %2685 = vrot.lane.b32.xlu0 %v2493, 121
      %v2686 = vpop.permute.xlu0 %2685
      %2687 = vrot.lane.b32.xlu0 %v2494, 121
      %v2688 = vpop.permute.xlu0 %2687
      %2689 = vrot.lane.b32.xlu0 %v2495, 121
      %v2690 = vpop.permute.xlu0 %2689
      %2691 = vrot.lane.b32.xlu0 %v2496, 121
      %v2692 = vpop.permute.xlu0 %2691
      %v2693 = vsel %vm1529, %v2678, %v2680
      %v2694 = vsel %vm1529, %v2682, %v2684
      %v2695 = vsel %vm1529, %v2686, %v2688
      %v2696 = vsel %vm1529, %v2690, %v2692
      %2701 = vst [vmem:[#allocation5 + $0xe0] sm:$0xff] %v2693
      %2702 = vst [vmem:[#allocation5 + $0xe8] sm:$0xff] %v2694
      %2703 = vst [vmem:[#allocation5 + $0xf0] sm:$0xff] %v2695
      %2704 = vst [vmem:[#allocation5 + $0xf8] sm:$0xff] %v2696
      %2705 = vrot.lane.b32.xlu0 %v2489, 120
      %v2706 = vpop.permute.xlu0 %2705
      %2707 = vrot.lane.b32.xlu0 %v2490, 120
      %v2708 = vpop.permute.xlu0 %2707
      %2709 = vrot.lane.b32.xlu0 %v2491, 120
      %v2710 = vpop.permute.xlu0 %2709
      %2711 = vrot.lane.b32.xlu0 %v2492, 120
      %v2712 = vpop.permute.xlu0 %2711
      %2713 = vrot.lane.b32.xlu0 %v2493, 120
      %v2714 = vpop.permute.xlu0 %2713
      %2715 = vrot.lane.b32.xlu0 %v2494, 120
      %v2716 = vpop.permute.xlu0 %2715
      %2717 = vrot.lane.b32.xlu0 %v2495, 120
      %v2718 = vpop.permute.xlu0 %2717
      %2719 = vrot.lane.b32.xlu0 %v2496, 120
      %v2720 = vpop.permute.xlu0 %2719
      %v2721 = vsel %vm786, %v2706, %v2708
      %v2722 = vsel %vm786, %v2710, %v2712
      %v2723 = vsel %vm786, %v2714, %v2716
      %v2724 = vsel %vm786, %v2718, %v2720
      %2729 = vst [vmem:[#allocation5 + $0x100] sm:$0xff] %v2721
      %2730 = vst [vmem:[#allocation5 + $0x108] sm:$0xff] %v2722
      %2731 = vst [vmem:[#allocation5 + $0x110] sm:$0xff] %v2723
      %2732 = vst [vmem:[#allocation5 + $0x118] sm:$0xff] %v2724
      %2733 = vrot.lane.b32.xlu0 %v2489, 119
      %v2734 = vpop.permute.xlu0 %2733
      %2735 = vrot.lane.b32.xlu0 %v2490, 119
      %v2736 = vpop.permute.xlu0 %2735
      %2737 = vrot.lane.b32.xlu0 %v2491, 119
      %v2738 = vpop.permute.xlu0 %2737
      %2739 = vrot.lane.b32.xlu0 %v2492, 119
      %v2740 = vpop.permute.xlu0 %2739
      %2741 = vrot.lane.b32.xlu0 %v2493, 119
      %v2742 = vpop.permute.xlu0 %2741
      %2743 = vrot.lane.b32.xlu0 %v2494, 119
      %v2744 = vpop.permute.xlu0 %2743
      %2745 = vrot.lane.b32.xlu0 %v2495, 119
      %v2746 = vpop.permute.xlu0 %2745
      %2747 = vrot.lane.b32.xlu0 %v2496, 119
      %v2748 = vpop.permute.xlu0 %2747
      %v2749 = vsel %vm1586, %v2734, %v2736
      %v2750 = vsel %vm1586, %v2738, %v2740
      %v2751 = vsel %vm1586, %v2742, %v2744
      %v2752 = vsel %vm1586, %v2746, %v2748
      %2757 = vst [vmem:[#allocation5 + $0x120] sm:$0xff] %v2749
      %2758 = vst [vmem:[#allocation5 + $0x128] sm:$0xff] %v2750
      %2759 = vst [vmem:[#allocation5 + $0x130] sm:$0xff] %v2751
      %2760 = vst [vmem:[#allocation5 + $0x138] sm:$0xff] %v2752
      %2761 = vrot.lane.b32.xlu0 %v2489, 118
      %v2762 = vpop.permute.xlu0 %2761
      %2763 = vrot.lane.b32.xlu0 %v2490, 118
      %v2764 = vpop.permute.xlu0 %2763
      %2765 = vrot.lane.b32.xlu0 %v2491, 118
      %v2766 = vpop.permute.xlu0 %2765
      %2767 = vrot.lane.b32.xlu0 %v2492, 118
      %v2768 = vpop.permute.xlu0 %2767
      %2769 = vrot.lane.b32.xlu0 %v2493, 118
      %v2770 = vpop.permute.xlu0 %2769
      %2771 = vrot.lane.b32.xlu0 %v2494, 118
      %v2772 = vpop.permute.xlu0 %2771
      %2773 = vrot.lane.b32.xlu0 %v2495, 118
      %v2774 = vpop.permute.xlu0 %2773
      %2775 = vrot.lane.b32.xlu0 %v2496, 118
      %v2776 = vpop.permute.xlu0 %2775
      %v2777 = vsel %vm1615, %v2762, %v2764
      %v2778 = vsel %vm1615, %v2766, %v2768
      %v2779 = vsel %vm1615, %v2770, %v2772
      %v2780 = vsel %vm1615, %v2774, %v2776
      %2785 = vst [vmem:[#allocation5 + $0x140] sm:$0xff] %v2777
      %2786 = vst [vmem:[#allocation5 + $0x148] sm:$0xff] %v2778
      %2787 = vst [vmem:[#allocation5 + $0x150] sm:$0xff] %v2779
      %2788 = vst [vmem:[#allocation5 + $0x158] sm:$0xff] %v2780
      %2789 = vrot.lane.b32.xlu0 %v2489, 117
      %v2790 = vpop.permute.xlu0 %2789
      %2791 = vrot.lane.b32.xlu0 %v2490, 117
      %v2792 = vpop.permute.xlu0 %2791
      %2793 = vrot.lane.b32.xlu0 %v2491, 117
      %v2794 = vpop.permute.xlu0 %2793
      %2795 = vrot.lane.b32.xlu0 %v2492, 117
      %v2796 = vpop.permute.xlu0 %2795
      %2797 = vrot.lane.b32.xlu0 %v2493, 117
      %v2798 = vpop.permute.xlu0 %2797
      %2799 = vrot.lane.b32.xlu0 %v2494, 117
      %v2800 = vpop.permute.xlu0 %2799
      %2801 = vrot.lane.b32.xlu0 %v2495, 117
      %v2802 = vpop.permute.xlu0 %2801
      %2803 = vrot.lane.b32.xlu0 %v2496, 117
      %v2804 = vpop.permute.xlu0 %2803
      %v2805 = vsel %vm1644, %v2790, %v2792
      %v2806 = vsel %vm1644, %v2794, %v2796
      %v2807 = vsel %vm1644, %v2798, %v2800
      %v2808 = vsel %vm1644, %v2802, %v2804
      %2813 = vst [vmem:[#allocation5 + $0x160] sm:$0xff] %v2805
      %2814 = vst [vmem:[#allocation5 + $0x168] sm:$0xff] %v2806
      %2815 = vst [vmem:[#allocation5 + $0x170] sm:$0xff] %v2807
      %2816 = vst [vmem:[#allocation5 + $0x178] sm:$0xff] %v2808
      %2817 = vrot.lane.b32.xlu0 %v2489, 116
      %v2818 = vpop.permute.xlu0 %2817
      %2819 = vrot.lane.b32.xlu0 %v2490, 116
      %v2820 = vpop.permute.xlu0 %2819
      %2821 = vrot.lane.b32.xlu0 %v2491, 116
      %v2822 = vpop.permute.xlu0 %2821
      %2823 = vrot.lane.b32.xlu0 %v2492, 116
      %v2824 = vpop.permute.xlu0 %2823
      %2825 = vrot.lane.b32.xlu0 %v2493, 116
      %v2826 = vpop.permute.xlu0 %2825
      %2827 = vrot.lane.b32.xlu0 %v2494, 116
      %v2828 = vpop.permute.xlu0 %2827
      %2829 = vrot.lane.b32.xlu0 %v2495, 116
      %v2830 = vpop.permute.xlu0 %2829
      %2831 = vrot.lane.b32.xlu0 %v2496, 116
      %v2832 = vpop.permute.xlu0 %2831
      %v2833 = vsel %vm1673, %v2818, %v2820
      %v2834 = vsel %vm1673, %v2822, %v2824
      %v2835 = vsel %vm1673, %v2826, %v2828
      %v2836 = vsel %vm1673, %v2830, %v2832
      %2841 = vst [vmem:[#allocation5 + $0x180] sm:$0xff] %v2833
      %2842 = vst [vmem:[#allocation5 + $0x188] sm:$0xff] %v2834
      %2843 = vst [vmem:[#allocation5 + $0x190] sm:$0xff] %v2835
      %2844 = vst [vmem:[#allocation5 + $0x198] sm:$0xff] %v2836
      %2845 = vrot.lane.b32.xlu0 %v2489, 115
      %v2846 = vpop.permute.xlu0 %2845
      %2847 = vrot.lane.b32.xlu0 %v2490, 115
      %v2848 = vpop.permute.xlu0 %2847
      %2849 = vrot.lane.b32.xlu0 %v2491, 115
      %v2850 = vpop.permute.xlu0 %2849
      %2851 = vrot.lane.b32.xlu0 %v2492, 115
      %v2852 = vpop.permute.xlu0 %2851
      %2853 = vrot.lane.b32.xlu0 %v2493, 115
      %v2854 = vpop.permute.xlu0 %2853
      %2855 = vrot.lane.b32.xlu0 %v2494, 115
      %v2856 = vpop.permute.xlu0 %2855
      %2857 = vrot.lane.b32.xlu0 %v2495, 115
      %v2858 = vpop.permute.xlu0 %2857
      %2859 = vrot.lane.b32.xlu0 %v2496, 115
      %v2860 = vpop.permute.xlu0 %2859
      %v2861 = vsel %vm1702, %v2846, %v2848
      %v2862 = vsel %vm1702, %v2850, %v2852
      %v2863 = vsel %vm1702, %v2854, %v2856
      %v2864 = vsel %vm1702, %v2858, %v2860
      %2869 = vst [vmem:[#allocation5 + $0x1a0] sm:$0xff] %v2861
      %2870 = vst [vmem:[#allocation5 + $0x1a8] sm:$0xff] %v2862
      %2871 = vst [vmem:[#allocation5 + $0x1b0] sm:$0xff] %v2863
      %2872 = vst [vmem:[#allocation5 + $0x1b8] sm:$0xff] %v2864
      %2873 = vrot.lane.b32.xlu0 %v2489, 114
      %v2874 = vpop.permute.xlu0 %2873
      %2875 = vrot.lane.b32.xlu0 %v2490, 114
      %v2876 = vpop.permute.xlu0 %2875
      %2877 = vrot.lane.b32.xlu0 %v2491, 114
      %v2878 = vpop.permute.xlu0 %2877
      %2879 = vrot.lane.b32.xlu0 %v2492, 114
      %v2880 = vpop.permute.xlu0 %2879
      %2881 = vrot.lane.b32.xlu0 %v2493, 114
      %v2882 = vpop.permute.xlu0 %2881
      %2883 = vrot.lane.b32.xlu0 %v2494, 114
      %v2884 = vpop.permute.xlu0 %2883
      %2885 = vrot.lane.b32.xlu0 %v2495, 114
      %v2886 = vpop.permute.xlu0 %2885
      %2887 = vrot.lane.b32.xlu0 %v2496, 114
      %v2888 = vpop.permute.xlu0 %2887
      %v2889 = vsel %vm1731, %v2874, %v2876
      %v2890 = vsel %vm1731, %v2878, %v2880
      %v2891 = vsel %vm1731, %v2882, %v2884
      %v2892 = vsel %vm1731, %v2886, %v2888
      %2897 = vst [vmem:[#allocation5 + $0x1c0] sm:$0xff] %v2889
      %2898 = vst [vmem:[#allocation5 + $0x1c8] sm:$0xff] %v2890
      %2899 = vst [vmem:[#allocation5 + $0x1d0] sm:$0xff] %v2891
      %2900 = vst [vmem:[#allocation5 + $0x1d8] sm:$0xff] %v2892
      %v2901 = vld [vmem:[#allocation5] sm:$0xff]
      %v2902 = vld [vmem:[#allocation5 + $0x8] sm:$0xff]
      %v2903 = vld [vmem:[#allocation5 + $0x10] sm:$0xff]
      %v2904 = vld [vmem:[#allocation5 + $0x18] sm:$0xff]
      %v2905 = vld [vmem:[#allocation5 + $0x20] sm:$0xff]
      %v2906 = vld [vmem:[#allocation5 + $0x28] sm:$0xff]
      %v2907 = vld [vmem:[#allocation5 + $0x30] sm:$0xff]
      %v2908 = vld [vmem:[#allocation5 + $0x38] sm:$0xff]
      %v2909 = vld [vmem:[#allocation5 + $0x40] sm:$0xff]
      %v2910 = vld [vmem:[#allocation5 + $0x48] sm:$0xff]
      %v2911 = vld [vmem:[#allocation5 + $0x50] sm:$0xff]
      %v2912 = vld [vmem:[#allocation5 + $0x58] sm:$0xff]
      %v2913 = vld [vmem:[#allocation5 + $0x60] sm:$0xff]
      %v2914 = vld [vmem:[#allocation5 + $0x68] sm:$0xff]
      %v2915 = vld [vmem:[#allocation5 + $0x70] sm:$0xff]
      %v2916 = vld [vmem:[#allocation5 + $0x78] sm:$0xff]
      %v2917 = vld [vmem:[#allocation5 + $0x80] sm:$0xff]
      %v2918 = vld [vmem:[#allocation5 + $0x88] sm:$0xff]
      %v2919 = vld [vmem:[#allocation5 + $0x90] sm:$0xff]
      %v2920 = vld [vmem:[#allocation5 + $0x98] sm:$0xff]
      %v2921 = vld [vmem:[#allocation5 + $0xa0] sm:$0xff]
      %v2922 = vld [vmem:[#allocation5 + $0xa8] sm:$0xff]
      %v2923 = vld [vmem:[#allocation5 + $0xb0] sm:$0xff]
      %v2924 = vld [vmem:[#allocation5 + $0xb8] sm:$0xff]
      %v2925 = vld [vmem:[#allocation5 + $0xc0] sm:$0xff]
      %v2926 = vld [vmem:[#allocation5 + $0xc8] sm:$0xff]
      %v2927 = vld [vmem:[#allocation5 + $0xd0] sm:$0xff]
      %v2928 = vld [vmem:[#allocation5 + $0xd8] sm:$0xff]
      %v2929 = vld [vmem:[#allocation5 + $0xe0] sm:$0xff]
      %v2930 = vld [vmem:[#allocation5 + $0xe8] sm:$0xff]
      %v2931 = vld [vmem:[#allocation5 + $0xf0] sm:$0xff]
      %v2932 = vld [vmem:[#allocation5 + $0xf8] sm:$0xff]
      %v2933 = vld [vmem:[#allocation5 + $0x100] sm:$0xff]
      %v2934 = vld [vmem:[#allocation5 + $0x108] sm:$0xff]
      %v2935 = vld [vmem:[#allocation5 + $0x110] sm:$0xff]
      %v2936 = vld [vmem:[#allocation5 + $0x118] sm:$0xff]
      %v2937 = vld [vmem:[#allocation5 + $0x120] sm:$0xff]
      %v2938 = vld [vmem:[#allocation5 + $0x128] sm:$0xff]
      %v2939 = vld [vmem:[#allocation5 + $0x130] sm:$0xff]
      %v2940 = vld [vmem:[#allocation5 + $0x138] sm:$0xff]
      %v2941 = vld [vmem:[#allocation5 + $0x140] sm:$0xff]
      %v2942 = vld [vmem:[#allocation5 + $0x148] sm:$0xff]
      %v2943 = vld [vmem:[#allocation5 + $0x150] sm:$0xff]
      %v2944 = vld [vmem:[#allocation5 + $0x158] sm:$0xff]
      %v2945 = vld [vmem:[#allocation5 + $0x160] sm:$0xff]
      %v2946 = vld [vmem:[#allocation5 + $0x168] sm:$0xff]
      %v2947 = vld [vmem:[#allocation5 + $0x170] sm:$0xff]
      %v2948 = vld [vmem:[#allocation5 + $0x178] sm:$0xff]
      %v2949 = vld [vmem:[#allocation5 + $0x180] sm:$0xff]
      %v2950 = vld [vmem:[#allocation5 + $0x188] sm:$0xff]
      %v2951 = vld [vmem:[#allocation5 + $0x190] sm:$0xff]
      %v2952 = vld [vmem:[#allocation5 + $0x198] sm:$0xff]
      %v2953 = vld [vmem:[#allocation5 + $0x1a0] sm:$0xff]
      %v2954 = vld [vmem:[#allocation5 + $0x1a8] sm:$0xff]
      %v2955 = vld [vmem:[#allocation5 + $0x1b0] sm:$0xff]
      %v2956 = vld [vmem:[#allocation5 + $0x1b8] sm:$0xff]
      %v2957 = vld [vmem:[#allocation5 + $0x1c0] sm:$0xff]
      %v2958 = vld [vmem:[#allocation5 + $0x1c8] sm:$0xff]
      %v2959 = vld [vmem:[#allocation5 + $0x1d0] sm:$0xff]
      %v2960 = vld [vmem:[#allocation5 + $0x1d8] sm:$0xff]
      %v2961 = vpack.c.bf16 %v2902, %v2901
      %v2962 = vpack.c.bf16 %v2904, %v2903
      %v2963 = vpack.c.bf16 %v2906, %v2905
      %v2964 = vpack.c.bf16 %v2908, %v2907
      %v2965 = vpack.c.bf16 %v2910, %v2909
      %v2966 = vpack.c.bf16 %v2912, %v2911
      %v2967 = vpack.c.bf16 %v2914, %v2913
      %v2968 = vpack.c.bf16 %v2916, %v2915
      %v2969 = vpack.c.bf16 %v2918, %v2917
      %v2970 = vpack.c.bf16 %v2920, %v2919
      %v2971 = vpack.c.bf16 %v2922, %v2921
      %v2972 = vpack.c.bf16 %v2924, %v2923
      %v2973 = vpack.c.bf16 %v2926, %v2925
      %v2974 = vpack.c.bf16 %v2928, %v2927
      %v2975 = vpack.c.bf16 %v2930, %v2929
      %v2976 = vpack.c.bf16 %v2932, %v2931
      %v2977 = vpack.c.bf16 %v2934, %v2933
      %v2978 = vpack.c.bf16 %v2936, %v2935
      %v2979 = vpack.c.bf16 %v2938, %v2937
      %v2980 = vpack.c.bf16 %v2940, %v2939
      %v2981 = vpack.c.bf16 %v2942, %v2941
      %v2982 = vpack.c.bf16 %v2944, %v2943
      %v2983 = vpack.c.bf16 %v2946, %v2945
      %v2984 = vpack.c.bf16 %v2948, %v2947
      %v2985 = vpack.c.bf16 %v2950, %v2949
      %v2986 = vpack.c.bf16 %v2952, %v2951
      %v2987 = vpack.c.bf16 %v2954, %v2953
      %v2988 = vpack.c.bf16 %v2956, %v2955
      %v2989 = vpack.c.bf16 %v2958, %v2957
      %v2990 = vpack.c.bf16 %v2960, %v2959
      %2991 = vmatprep.subr.bf16.mxu0 0
      %2992 = vmatpush1.bf16.msra.mxu0 %v2968
      %2993 = vmatprep.subr.bf16.mxu0 0
      %2994 = vmatpush1.bf16.msra.mxu0 %v2967
      %2995 = vmatprep.subr.bf16.mxu0 0
      %2996 = vmatpush1.bf16.msra.mxu0 %v2966
      %2997 = vmatprep.subr.bf16.mxu0 0
      %2998 = vmatpush1.bf16.msra.mxu0 %v2965
      %2999 = vmatprep.subr.bf16.mxu0 0
      %3000 = vmatpush1.bf16.msra.mxu0 %v2964
      %3001 = vmatprep.subr.bf16.mxu0 0
      %3002 = vmatpush1.bf16.msra.mxu0 %v2963
      %3003 = vmatprep.subr.bf16.mxu0 0
      %3004 = vmatpush1.bf16.msra.mxu0 %v2962
      %3005 = vmatprep.subr.bf16.mxu0 0
      %3006 = vmatpush1.bf16.msra.mxu0 %v2961
      %3007 = vmatprep.subr.bf16.mxu0 0
      %3008 = vmatpush2.bf16.msra.mxu0 %v2976
      %3009 = vmatprep.subr.bf16.mxu0 0
      %3010 = vmatpush2.bf16.msra.mxu0 %v2975
      %3011 = vmatprep.subr.bf16.mxu0 0
      %3012 = vmatpush2.bf16.msra.mxu0 %v2974
      %3013 = vmatprep.subr.bf16.mxu0 0
      %3014 = vmatpush2.bf16.msra.mxu0 %v2973
      %3015 = vmatprep.subr.bf16.mxu0 0
      %3016 = vmatpush2.bf16.msra.mxu0 %v2972
      %3017 = vmatprep.subr.bf16.mxu0 0
      %3018 = vmatpush2.bf16.msra.mxu0 %v2971
      %3019 = vmatprep.subr.bf16.mxu0 0
      %3020 = vmatpush2.bf16.msra.mxu0 %v2970
      %3021 = vmatprep.subr.bf16.mxu0 0
      %3022 = vmatpush2.bf16.msra.mxu0 %v2969
      %3023 = vmatprep.mubr.bf16.mxu0 %v1865
      %3024 = vmatmul.mubr.bf16.gmra.mxu0 %v1858
      %v3025 = vpop.f32.mrf.mxu0
      %v3026 = vadd.f32 %v1842, %v3025
      %v3027 = vpop.f32.mrf.mxu0
      %v3028 = vpop.f32.mrf.mxu0
      %v3029 = vpop.f32.mrf.mxu0
      %3030 = vdwg.mxu0
      %3031 = vmatprep.subr.bf16.mxu0 0
      %3032 = vmatpush1.bf16.msra.mxu0 %v2984
      %3033 = vmatprep.subr.bf16.mxu0 0
      %3034 = vmatpush1.bf16.msra.mxu0 %v2983
      %3035 = vmatprep.subr.bf16.mxu0 0
      %3036 = vmatpush1.bf16.msra.mxu0 %v2982
      %3037 = vmatprep.subr.bf16.mxu0 0
      %3038 = vmatpush1.bf16.msra.mxu0 %v2981
      %3039 = vmatprep.subr.bf16.mxu0 0
      %3040 = vmatpush1.bf16.msra.mxu0 %v2980
      %3041 = vmatprep.subr.bf16.mxu0 0
      %3042 = vmatpush1.bf16.msra.mxu0 %v2979
      %3043 = vmatprep.subr.bf16.mxu0 0
      %3044 = vmatpush1.bf16.msra.mxu0 %v2978
      %3045 = vmatprep.subr.bf16.mxu0 0
      %3046 = vmatpush1.bf16.msra.mxu0 %v2977
      %3047 = vmatprep.subr.bf16.mxu0 0
      %3048 = vmatpush2.bf16.msra.mxu0 0
      %3049 = vmatprep.subr.bf16.mxu0 0
      %3050 = vmatpush2.bf16.msra.mxu0 0
      %3051 = vmatprep.subr.bf16.mxu0 0
      %3052 = vmatpush2.bf16.msra.mxu0 %v2990
      %3053 = vmatprep.subr.bf16.mxu0 0
      %3054 = vmatpush2.bf16.msra.mxu0 %v2989
      %3055 = vmatprep.subr.bf16.mxu0 0
      %3056 = vmatpush2.bf16.msra.mxu0 %v2988
      %3057 = vmatprep.subr.bf16.mxu0 0
      %3058 = vmatpush2.bf16.msra.mxu0 %v2987
      %3059 = vmatprep.subr.bf16.mxu0 0
      %3060 = vmatpush2.bf16.msra.mxu0 %v2986
      %3061 = vmatprep.subr.bf16.mxu0 0
      %3062 = vmatpush2.bf16.msra.mxu0 %v2985
      %3063 = vmatprep.mubr.bf16.mxu0 %v1872
      %3064 = vmatmul.mubr.bf16.gmra.mxu0 %v1866
      %v3065 = vpop.f32.mrf.mxu0
      %v3066 = vadd.f32 %v3026, %v3065
      %v3067 = vpop.f32.mrf.mxu0
      %v3068 = vpop.f32.mrf.mxu0
      %v3069 = vpop.f32.mrf.mxu0
      %3070 = vdwg.mxu0
      %v3071 = vsel %vm1954, %v3066, -1e+30
      %v3072 = vsel %vm1956, %v3071, -inf
      %3073 = vmax.xlane.f32.xlu0 %v3072
      %v3074 = vpop.xlane.xlu0 %3073
      %v3075 = vsub.f32 %v3071, %v3074
      %v3076 = vmul.f32 %v3075, 1.442695
      %v3077 = vpow.pop %v3076
      %v3078 = vsel %vm1956, %v3077, 0.0
      %3079 = vadd.xlane.f32.xlu0 %v3078
      %v3080 = vpop.xlane.xlu0 %3079
      %v3081 = vrcp.pop %v3080
      %v3082 = vmul.f32 %v3077, %v3081
      %s3083 = scalar_lea.vmem %s768, 1
      %3084 = vst [vmem:[%s3083] sm:$0x1] %v3082
      %v3085 = vsel %vm786, %v2481, 0.0
      %3086 = vadd.xlane.f32.xlu0 %v3085
      %v3087 = vpop.xlane.xlu0 %3086
      %v3088 = vsel %vm786, %v2482, 0.0
      %3089 = vadd.xlane.f32.xlu0 %v3088
      %v3090 = vpop.xlane.xlu0 %3089
      %v3091 = vsel %vm786, %v2483, 0.0
      %3092 = vadd.xlane.f32.xlu0 %v3091
      %v3093 = vpop.xlane.xlu0 %3092
      %v3094 = vsel %vm786, %v2484, 0.0
      %3095 = vadd.xlane.f32.xlu0 %v3094
      %v3096 = vpop.xlane.xlu0 %3095
      %v3097 = vmul.f32 %v3087, %v1981
      %v3098 = vmul.f32 %v3090, %v1981
      %v3099 = vmul.f32 %v3093, %v1981
      %v3100 = vmul.f32 %v3096, %v1981
      %vm3101 = vcmp.eq.s32.totalorder %v774, 1
      %v3102 = vsel %vm3101, 1, 0
      %v3103 = vcvt.s32.f32 %v3102
      %v3104 = vmul.f32 %v3097, %v3103
      %v3105 = vmul.f32 %v3098, %v3103
      %v3106 = vmul.f32 %v3099, %v3103
      %v3107 = vmul.f32 %v3100, %v3103
      %v3108 = vadd.f32 %v1993, %v3104
      %v3109 = vadd.f32 %v1994, %v3105
      %v3110 = vadd.f32 %v1995, %v3106
      %v3111 = vadd.f32 %v1996, %v3107
      %v3112 = vld [vmem:[%s743] sm:$0xf]
      %v3113 = vld [vmem:[%s743 + $0x4] sm:$0xf]
      %v3114 = vld [vmem:[%s743 + $0x8] sm:$0xf]
      %v3115 = vld [vmem:[%s743 + $0xc] sm:$0xf]
      %v3116 = vpack.c.bf16 %v3109, %v3108
      %v3117 = vpack.c.bf16 %v3111, %v3110
      %v3118 = vld [vmem:[%s748] sm:$0xff]
      %v3119 = vld [vmem:[%s748 + $0x8] sm:$0xff]
      %v3120 = vld [vmem:[%s748 + $0x10] sm:$0xff]
      %v3121 = vld [vmem:[%s748 + $0x18] sm:$0xff]
      %3123 = vset.pattern.permute.xlu0 0
      %3124 = vperm.xlu0 %3123, %v3118
      %v3125 = vpop.permute.xlu0 %3124
      %3128 = vset.pattern.permute.xlu0 0
      %3129 = vperm.xlu0 %3128, %v3119
      %v3130 = vpop.permute.xlu0 %3129
      %3133 = vset.pattern.permute.xlu0 0
      %3134 = vperm.xlu0 %3133, %v3120
      %v3135 = vpop.permute.xlu0 %3134
      %3138 = vset.pattern.permute.xlu0 0
      %3139 = vperm.xlu0 %3138, %v3121
      %v3140 = vpop.permute.xlu0 %3139
      %v3146 = vunpack.c.l.b16 %v3112
      %v3147 = vunpack.c.l.b16 %v3113
      %v3148 = vunpack.c.l.b16 %v3114
      %v3149 = vunpack.c.l.b16 %v3115
      %v3150 = vpack.c.b16 %v3147, %v3146
      %v3151 = vpack.c.b16 %v3149, %v3148
      %vm3152 = vcmask 261120
      %v3154 = vsel %vm3152, %v3150, 0
      %v3157 = vsel %vm3152, %v3151, 0
      %3159 = vmatprep.subr.bf16.mxu0 0
      %3160 = vmatpush1.bf16.msra.mxu0 0
      %3161 = vmatprep.subr.bf16.mxu0 0
      %3162 = vmatpush1.bf16.msra.mxu0 0
      %3163 = vmatprep.subr.bf16.mxu0 0
      %3164 = vmatpush1.bf16.msra.mxu0 0
      %3165 = vmatprep.subr.bf16.mxu0 0
      %3166 = vmatpush1.bf16.msra.mxu0 0
      %3167 = vmatprep.subr.bf16.mxu0 0
      %3168 = vmatpush1.bf16.msra.mxu0 0
      %3169 = vmatprep.subr.bf16.mxu0 0
      %3170 = vmatpush1.bf16.msra.mxu0 0
      %3171 = vmatprep.subr.bf16.mxu0 0
      %3172 = vmatpush1.bf16.msra.mxu0 %v3117
      %3173 = vmatprep.subr.bf16.mxu0 0
      %3174 = vmatpush1.bf16.msra.mxu0 %v3116
      %3175 = vmatprep.subr.bf16.mxu0 0
      %3176 = vmatpush2.bf16.msra.mxu0 0
      %3177 = vmatprep.subr.bf16.mxu0 0
      %3178 = vmatpush2.bf16.msra.mxu0 0
      %3179 = vmatprep.subr.bf16.mxu0 0
      %3180 = vmatpush2.bf16.msra.mxu0 0
      %3181 = vmatprep.subr.bf16.mxu0 0
      %3182 = vmatpush2.bf16.msra.mxu0 0
      %3183 = vmatprep.subr.bf16.mxu0 0
      %3184 = vmatpush2.bf16.msra.mxu0 0
      %3185 = vmatprep.subr.bf16.mxu0 0
      %3186 = vmatpush2.bf16.msra.mxu0 0
      %3187 = vmatprep.subr.bf16.mxu0 0
      %3188 = vmatpush2.bf16.msra.mxu0 0
      %3189 = vmatprep.subr.bf16.mxu0 0
      %3190 = vmatpush2.bf16.msra.mxu0 0
      %3191 = vmatprep.mubr.bf16.mxu0 0
      %3192 = vmatmul.mubr.bf16.gmra.mxu0 %v3154
      %v3193 = vpop.f32.mrf.mxu0
      %v3194 = vadd.f32 %v3125, %v3193
      %v3195 = vpop.f32.mrf.mxu0
      %v3196 = vpop.f32.mrf.mxu0
      %v3197 = vadd.f32 %v3130, %v3196
      %v3198 = vpop.f32.mrf.mxu0
      %3199 = vmatprep.mubr.bf16.mxu0 0
      %3200 = vmatmul.mubr.bf16.gmra.mxu0 %v3157
      %v3201 = vpop.f32.mrf.mxu0
      %v3202 = vadd.f32 %v3135, %v3201
      %v3203 = vpop.f32.mrf.mxu0
      %v3204 = vpop.f32.mrf.mxu0
      %v3205 = vadd.f32 %v3140, %v3204
      %v3206 = vpop.f32.mrf.mxu0
      %3207 = vdwg.mxu0
      %v3208 = vmax.f32 %v3194, 0.0
      %v3209 = vmax.f32 %v3197, 0.0
      %v3210 = vmax.f32 %v3202, 0.0
      %v3211 = vmax.f32 %v3205, 0.0
      %v3212 = vld [vmem:[%s753] sm:$0xf]
      %v3213 = vld [vmem:[%s753 + $0x4] sm:$0xf]
      %v3214 = vld [vmem:[%s753 + $0x8] sm:$0xf]
      %v3215 = vld [vmem:[%s753 + $0xc] sm:$0xf]
      %v3216 = vpack.c.bf16 %v3209, %v3208
      %v3217 = vpack.c.bf16 %v3211, %v3210
      %v3218 = vld [vmem:[%s758] sm:$0xff]
      %v3219 = vld [vmem:[%s758 + $0x8] sm:$0xff]
      %v3220 = vld [vmem:[%s758 + $0x10] sm:$0xff]
      %v3221 = vld [vmem:[%s758 + $0x18] sm:$0xff]
      %3223 = vset.pattern.permute.xlu0 0
      %3224 = vperm.xlu0 %3223, %v3218
      %v3225 = vpop.permute.xlu0 %3224
      %3228 = vset.pattern.permute.xlu0 0
      %3229 = vperm.xlu0 %3228, %v3219
      %v3230 = vpop.permute.xlu0 %3229
      %3233 = vset.pattern.permute.xlu0 0
      %3234 = vperm.xlu0 %3233, %v3220
      %v3235 = vpop.permute.xlu0 %3234
      %3238 = vset.pattern.permute.xlu0 0
      %3239 = vperm.xlu0 %3238, %v3221
      %v3240 = vpop.permute.xlu0 %3239
      %v3246 = vunpack.c.l.b16 %v3212
      %v3247 = vunpack.c.l.b16 %v3213
      %v3248 = vunpack.c.l.b16 %v3214
      %v3249 = vunpack.c.l.b16 %v3215
      %v3250 = vpack.c.b16 %v3247, %v3246
      %v3251 = vpack.c.b16 %v3249, %v3248
      %v3253 = vsel %vm3152, %v3250, 0
      %v3256 = vsel %vm3152, %v3251, 0
      %3258 = vmatprep.subr.bf16.mxu0 0
      %3259 = vmatpush1.bf16.msra.mxu0 0
      %3260 = vmatprep.subr.bf16.mxu0 0
      %3261 = vmatpush1.bf16.msra.mxu0 0
      %3262 = vmatprep.subr.bf16.mxu0 0
      %3263 = vmatpush1.bf16.msra.mxu0 0
      %3264 = vmatprep.subr.bf16.mxu0 0
      %3265 = vmatpush1.bf16.msra.mxu0 0
      %3266 = vmatprep.subr.bf16.mxu0 0
      %3267 = vmatpush1.bf16.msra.mxu0 0
      %3268 = vmatprep.subr.bf16.mxu0 0
      %3269 = vmatpush1.bf16.msra.mxu0 0
      %3270 = vmatprep.subr.bf16.mxu0 0
      %3271 = vmatpush1.bf16.msra.mxu0 %v3217
      %3272 = vmatprep.subr.bf16.mxu0 0
      %3273 = vmatpush1.bf16.msra.mxu0 %v3216
      %3274 = vmatprep.subr.bf16.mxu0 0
      %3275 = vmatpush2.bf16.msra.mxu0 0
      %3276 = vmatprep.subr.bf16.mxu0 0
      %3277 = vmatpush2.bf16.msra.mxu0 0
      %3278 = vmatprep.subr.bf16.mxu0 0
      %3279 = vmatpush2.bf16.msra.mxu0 0
      %3280 = vmatprep.subr.bf16.mxu0 0
      %3281 = vmatpush2.bf16.msra.mxu0 0
      %3282 = vmatprep.subr.bf16.mxu0 0
      %3283 = vmatpush2.bf16.msra.mxu0 0
      %3284 = vmatprep.subr.bf16.mxu0 0
      %3285 = vmatpush2.bf16.msra.mxu0 0
      %3286 = vmatprep.subr.bf16.mxu0 0
      %3287 = vmatpush2.bf16.msra.mxu0 0
      %3288 = vmatprep.subr.bf16.mxu0 0
      %3289 = vmatpush2.bf16.msra.mxu0 0
      %3290 = vmatprep.mubr.bf16.mxu0 0
      %3291 = vmatmul.mubr.bf16.gmra.mxu0 %v3253
      %v3292 = vpop.f32.mrf.mxu0
      %v3293 = vadd.f32 %v3225, %v3292
      %v3294 = vpop.f32.mrf.mxu0
      %v3295 = vpop.f32.mrf.mxu0
      %v3296 = vadd.f32 %v3230, %v3295
      %v3297 = vpop.f32.mrf.mxu0
      %3298 = vmatprep.mubr.bf16.mxu0 0
      %3299 = vmatmul.mubr.bf16.gmra.mxu0 %v3256
      %v3300 = vpop.f32.mrf.mxu0
      %v3301 = vadd.f32 %v3235, %v3300
      %v3302 = vpop.f32.mrf.mxu0
      %v3303 = vpop.f32.mrf.mxu0
      %v3304 = vadd.f32 %v3240, %v3303
      %v3305 = vpop.f32.mrf.mxu0
      %3306 = vdwg.mxu0
      %v3307 = vmax.f32 %v3293, 0.0
      %v3308 = vmax.f32 %v3296, 0.0
      %v3309 = vmax.f32 %v3301, 0.0
      %v3310 = vmax.f32 %v3304, 0.0
      %v3311 = vld [vmem:[%s761] sm:$0x1]
      %v3312 = vpack.c.bf16 %v3308, %v3307
      %v3313 = vpack.c.bf16 %v3310, %v3309
      %v3314 = vld [vmem:[%s764] sm:$0x1]
      %3316 = vset.pattern.permute.xlu0 0
      %3317 = vperm.xlu0 %3316, %v3314
      %v3318 = vpop.permute.xlu0 %3317
      %v3320 = vlaneseq
      %v3321 = vshrl.u32 %v3320, 7
      %v3322 = vsub.s32 0, %v3321
      %v3323 = vrot.slane %v3318, %v3322
      %v3325 = vsel %vm3152, %v3311, 0
      %3327 = vmatprep.subr.bf16.mxu0 0
      %3328 = vmatpush1.bf16.msra.mxu0 0
      %3329 = vmatprep.subr.bf16.mxu0 0
      %3330 = vmatpush1.bf16.msra.mxu0 0
      %3331 = vmatprep.subr.bf16.mxu0 0
      %3332 = vmatpush1.bf16.msra.mxu0 0
      %3333 = vmatprep.subr.bf16.mxu0 0
      %3334 = vmatpush1.bf16.msra.mxu0 0
      %3335 = vmatprep.subr.bf16.mxu0 0
      %3336 = vmatpush1.bf16.msra.mxu0 0
      %3337 = vmatprep.subr.bf16.mxu0 0
      %3338 = vmatpush1.bf16.msra.mxu0 0
      %3339 = vmatprep.subr.bf16.mxu0 0
      %3340 = vmatpush1.bf16.msra.mxu0 %v3313
      %3341 = vmatprep.subr.bf16.mxu0 0
      %3342 = vmatpush1.bf16.msra.mxu0 %v3312
      %3343 = vmatprep.subr.bf16.mxu0 0
      %3344 = vmatpush2.bf16.msra.mxu0 0
      %3345 = vmatprep.subr.bf16.mxu0 0
      %3346 = vmatpush2.bf16.msra.mxu0 0
      %3347 = vmatprep.subr.bf16.mxu0 0
      %3348 = vmatpush2.bf16.msra.mxu0 0
      %3349 = vmatprep.subr.bf16.mxu0 0
      %3350 = vmatpush2.bf16.msra.mxu0 0
      %3351 = vmatprep.subr.bf16.mxu0 0
      %3352 = vmatpush2.bf16.msra.mxu0 0
      %3353 = vmatprep.subr.bf16.mxu0 0
      %3354 = vmatpush2.bf16.msra.mxu0 0
      %3355 = vmatprep.subr.bf16.mxu0 0
      %3356 = vmatpush2.bf16.msra.mxu0 0
      %3357 = vmatprep.subr.bf16.mxu0 0
      %3358 = vmatpush2.bf16.msra.mxu0 0
      %3359 = vmatprep.mubr.bf16.mxu0 0
      %3360 = vmatmul.mubr.bf16.gmra.mxu0 %v3325
      %v3361 = vpop.f32.mrf.mxu0
      %v3362 = vadd.f32 %v3323, %v3361
      %v3363 = vpop.f32.mrf.mxu0
      %v3364 = vpop.f32.mrf.mxu0
      %v3365 = vpop.f32.mrf.mxu0
      %3366 = vdwg.mxu0
      %v3367 = vmax.f32 %v3362, 0.0
      %v3368 = vand.u32 2147483647, %v3362
      %v3369 = vsub.f32 0.0, %v3368
      %v3370 = vmul.f32 %v3369, 1.442695
      %v3371 = vpow.pop %v3370
      %v3372 = vadd.f32 %v3371, 1.0
      %v3373 = vlog2.pop %v3372
      %v3374 = vmul.f32 %v3373, 0.6931472
      %v3375 = vmul.f32 -0.5, %v3371
      %v3376 = vadd.f32 %v3375, 1.0
      %v3377 = vmul.f32 %v3376, %v3371
      %v3378 = vand.u32 2147483647, %v3371
      %vm3379 = vcmp.lt.f32.partialorder %v3378, 0.0004427343
      %v3380 = vsel %vm3379, %v3377, %v3374
      %v3381 = vadd.f32 %v3367, %v3380
      %vm3382 = vcmask 8192
      %3383 = vst.msk [vmem:[%s771] sm:$0x1] %vm3382, %v3381
      %p3384 = scmp.lt.s32.totalorder %s29, 1
      %s3385 = scalar_select %p3384, %s29, 1
      %s3386 = smul.addr %s3385, 2
      %s3387 = scalar_lea.vmem %s16, %s3386
      %p3388 = scmp.lt.s32.totalorder %s29, 1
      %s3389 = scalar_select %p3388, %s29, 1
      %s3390 = scalar_lea.vmem %s17, %s3389
      // Predicated region
      $region85: #{seq_only_regressor_forward.1} parent=83 // pred_check
        %p3391 = pneg %p448
      $region86: #{seq_only_regressor_forward.1} parent=83 // pred_check_branch
        %3393 = sbr.rel (%p3391) target = $region88
      $region87: #{seq_only_regressor_forward.1} parent=83 // pred_region
        _
      $region88: #{seq_only_regressor_forward.1} parent=83 // pred_fallthru
        _
      // Predicated region
      $region89: #{seq_only_regressor_forward.1} parent=83 // pred_check
        %p3394 = pneg %p474
      $region90: #{seq_only_regressor_forward.1} parent=83 // pred_check_branch
        %3396 = sbr.rel (%p3394) target = $region92
      $region91: #{seq_only_regressor_forward.1} parent=83 // pred_region
        _
      $region92: #{seq_only_regressor_forward.1} parent=83 // pred_fallthru
        _
    $region84: #{seq_only_regressor_forward.1} parent=5 // pred_fallthru
      _
    %p3397 = scmp.le.s32.totalorder 2, %s24
    // Predicated region
    $region93: #{seq_only_regressor_forward.1} parent=5 // pred_check
      %p3398 = pneg %p3397
    $region94: #{seq_only_regressor_forward.1} parent=5 // pred_check_branch
      %3400 = sbr.rel (%p3398) target = $region96
    $region95: #{seq_only_regressor_forward.1} parent=5 // pred_region
      %s3401 = ssub.s32 %s24, 2
      // Predicated region
      $region97: #{seq_only_regressor_forward.1} parent=95 // pred_check
        %p3402 = pneg %p454
      $region98: #{seq_only_regressor_forward.1} parent=95 // pred_check_branch
        %3404 = sbr.rel (%p3402) target = $region100
      $region99: #{seq_only_regressor_forward.1} parent=95 // pred_region
        %p3405 = scmp.lt.s32.totalorder %s30, 1
        %s3406 = scalar_select %p3405, %s30, 1
        %s3407 = smul.addr %s3406, 2
        %s3408 = scalar_lea.vmem %s16, %s3407
      $region100: #{seq_only_regressor_forward.1} parent=95 // pred_fallthru
        _
      // Predicated region
      $region101: #{seq_only_regressor_forward.1} parent=95 // pred_check
        %p3409 = pneg %p480
      $region102: #{seq_only_regressor_forward.1} parent=95 // pred_check_branch
        %3411 = sbr.rel (%p3409) target = $region104
      $region103: #{seq_only_regressor_forward.1} parent=95 // pred_region
        %p3412 = scmp.lt.s32.totalorder %s30, 1
        %s3413 = scalar_select %p3412, %s30, 1
        %s3414 = scalar_lea.vmem %s17, %s3413
      $region104: #{seq_only_regressor_forward.1} parent=95 // pred_fallthru
        _
    $region96: #{seq_only_regressor_forward.1} parent=5 // pred_fallthru
      _
  $region6: #{seq_only_regressor_forward.1} parent=0 // loop_footer
    %s28 = sadd.s32 1, %s24
  $region7: #{seq_only_regressor_forward.1} parent=0 // loop_footer_branch
    %23 = sbr.rel target = $region3
  $region8: #{seq_only_regressor_forward.1} parent=0 // loop_exit
    _

</llo_original>
